<compile_context>
chip_gen: v5e
topology: v5e:2x2
jax: 0.10.0
libtpu: 0.0.40
codegen_flags: <defaults>
</compile_context>

<pallas_src>
import jax
import jax.numpy as jnp
import numpy as np
from jax.experimental import pallas as pl
from jax.experimental.pallas import tpu as pltpu


# ---------------------------------------------------------------------------
# Fused kernel: one image per grid step, everything VMEM-resident.
#
# Layouts (per image):
#   x_ref : (32, 128) f32   row  = (h%4)*8 + h//4  (image row permutation done
#                           in the wrapper), lane = w*3 + c (96 used, 32 pad).
#   o_ref : (16, 128) f32   row  = output oh (13 used), lane = ow*3 + cout.
# ---------------------------------------------------------------------------
def _fused_autoencoder_kernel(x_ref, w1_ref, b1_ref, w2_ref, b2_ref,
                              w3_ref, b3_ref, wd1_ref, bd1_ref,
                              wd2_ref, bd2_ref, o_ref):
    f32, bf16 = jnp.float32, jnp.bfloat16

    # ---- conv1: one (16,640) x (640,256) GEMM -------------------------------
    # lhs1 row r (r<7) holds the patch rows for conv1 output row 2r, row 8+r for
    # output row 2r+1 (rows 7/15 carry harmless junk that is never read later).
    # Block a (lanes [a*128,(a+1)*128)) holds image rows 2*oh1 + a.
    blocks = []
    for a in range(5):
        ce, codd = a, a + 2
        top = x_ref[pl.ds((ce % 4) * 8 + ce // 4, 8), :]      # even conv1 rows
        bot = x_ref[pl.ds((codd % 4) * 8 + codd // 4, 8), :]  # odd  conv1 rows
        blocks.append(jnp.concatenate([top, bot], axis=0))    # (16, 128) f32
    lhs1 = jnp.concatenate(blocks, axis=1).astype(bf16)       # (16, 640)
    y1 = jnp.dot(lhs1, w1_ref[...], preferred_element_type=f32)
    y1 = jnp.maximum(y1 + b1_ref[...], 0.0)                   # (16, 256) f32
    # y1 row m: conv1 row 2m ; row 8+m: conv1 row 2m+1 ; col = ow1*16 + c16.

    # ---- conv2: one (5,1280) x (1280,256) GEMM ------------------------------
    # Block i of the LHS holds the y1 rows for conv1 row 2*oh2 + i (contiguous
    # 5-row slice thanks to the parity-split row order of y1).
    starts = (0, 8, 1, 9, 2)
    lhs2 = jnp.concatenate([y1[s:s + 5, :] for s in starts],
                           axis=1).astype(bf16)                # (5, 1280)
    y2 = jnp.dot(lhs2, w2_ref[...], preferred_element_type=f32)
    y2 = jnp.maximum(y2 + b2_ref[...], 0.0)                    # (5, 256) f32
    # y2 row = oh2, col = ow2*32 + c32 (160 used; pad cols are exactly 0).

    # ---- conv3: flatten the 5x5x32 window into K, one GEMM ------------------
    lhs3 = jnp.concatenate([y2[k:k + 1, :] for k in range(5)],
                           axis=1).astype(bf16)                # (1, 1280)
    y3 = jnp.dot(lhs3, w3_ref[...], preferred_element_type=f32)
    y3 = jnp.maximum(y3 + b3_ref[...], 0.0).astype(bf16)       # (1, 32)

    # ---- dconv1 (ConvTranspose 1x1 -> 5x5): one wide GEMM -------------------
    y4 = jnp.dot(y3, wd1_ref[...], preferred_element_type=f32)
    y4 = jnp.maximum(y4 + bd1_ref[...], 0.0)                   # (1, 640) f32
    # col = ih*128 + (iw*16 + c16), 80 used per 128-lane block.

    # ---- dconv2 (ConvTranspose 5x5 -> 13x13): one M=5 GEMM + overlap-add ----
    y4m = jnp.concatenate([y4[:, ih * 128:(ih + 1) * 128] for ih in range(5)],
                          axis=0).astype(bf16)                 # (5, 128)
    wide = jnp.dot(y4m, wd2_ref[...], preferred_element_type=f32)  # (5, 640)
    # wide row = ih, col = kh*128 + (ow*3 + co) with ow = 2*iw + kw baked in.

    rows = []
    for oh in range(13):
        acc = None
        for kh in range(5):
            d = oh - kh
            if d >= 0 and d % 2 == 0 and d // 2 <= 4:          # oh = 2*ih + kh
                t = wide[d // 2:d // 2 + 1, kh * 128:(kh + 1) * 128]
                acc = t if acc is None else acc + t
        rows.append(acc)
    out16 = jnp.concatenate(rows + [jnp.zeros((3, 128), f32)], axis=0)
    o_ref[...] = out16 + bd2_ref[...]                          # single (16,128) store


# ---------------------------------------------------------------------------
# One-time, host-side weight packing into GEMM-ready bf16 layouts.
# ---------------------------------------------------------------------------
def pack_params(params):
    f32 = np.float32
    w1 = np.asarray(params["conv1_w"], f32)    # (16, 3, 5, 5)  (co, ci, a, b)
    b1 = np.asarray(params["conv1_b"], f32)
    w2 = np.asarray(params["conv2_w"], f32)    # (32, 16, 5, 5)
    b2 = np.asarray(params["conv2_b"], f32)
    w3 = np.asarray(params["conv3_w"], f32)    # (32, 32, 5, 5)
    b3 = np.asarray(params["conv3_b"], f32)
    wd1 = np.asarray(params["dconv1_w"], f32)  # (32, 16, 5, 5) (ci, co, kh, kw)
    bd1 = np.asarray(params["dconv1_b"], f32)
    wd2 = np.asarray(params["dconv2_w"], f32)  # (16, 3, 5, 5)  (ci, co, kh, kw)
    bd2 = np.asarray(params["dconv2_b"], f32)

    # conv1 shift matrix: rows = a*128 + (w*3 + ci), cols = ow1*16 + co.
    w1p = np.zeros((5, 128, 256), f32)
    for a in range(5):
        for ow1 in range(14):
            for kb in range(5):
                w = 2 * ow1 + kb
                w1p[a, w * 3:w * 3 + 3, ow1 * 16:ow1 * 16 + 16] = w1[:, :, a, kb].T
    w1p = w1p.reshape(640, 256)
    b1p = np.zeros((1, 256), f32)
    for ow1 in range(14):
        b1p[0, ow1 * 16:ow1 * 16 + 16] = b1

    # conv2 shift matrix: rows = i*256 + (ow1*16 + c16), cols = ow2*32 + c32.
    w2p = np.zeros((5, 256, 256), f32)
    for i in range(5):
        for ow2 in range(5):
            for j in range(5):
                ow1 = 2 * ow2 + j
                w2p[i, ow1 * 16:ow1 * 16 + 16,
                    ow2 * 32:ow2 * 32 + 32] = w2[:, :, i, j].T
    w2p = w2p.reshape(1280, 256)
    b2p = np.zeros((1, 256), f32)
    for ow2 in range(5):
        b2p[0, ow2 * 32:ow2 * 32 + 32] = b2

    # conv3: rows = oh2*256 + (ow2*32 + c); rows for padded cols stay zero so
    # the (exactly-zero) pad lanes of y2 cannot leak into the result.
    w3p = np.zeros((5, 256, 32), f32)
    for oh2 in range(5):
        for ow2 in range(5):
            w3p[oh2, ow2 * 32:ow2 * 32 + 32, :] = w3[:, :, oh2, ow2].T
    w3p = w3p.reshape(1280, 32)
    b3p = b3.reshape(1, 32)

    # dconv1: rows = c32 (latent), cols = ih*128 + (iw*16 + c16).
    wd1p = np.zeros((32, 5, 128), f32)
    bd1p = np.zeros((1, 5, 128), f32)
    for ih in range(5):
        for iw in range(5):
            wd1p[:, ih, iw * 16:iw * 16 + 16] = wd1[:, :, ih, iw]
            bd1p[0, ih, iw * 16:iw * 16 + 16] = bd1
    wd1p = wd1p.reshape(32, 640)
    bd1p = bd1p.reshape(1, 640)

    # dconv2: rows = iw*16 + c16, cols = kh*128 + ((2*iw + kw)*3 + co).
    wd2p = np.zeros((128, 5, 128), f32)
    for iw in range(5):
        for kh in range(5):
            for kw in range(5):
                ow = 2 * iw + kw
                wd2p[iw * 16:iw * 16 + 16, kh, ow * 3:ow * 3 + 3] = wd2[:, :, kh, kw]
    wd2p = wd2p.reshape(128, 640)
    bd2p = np.zeros((1, 128), f32)
    for ow in range(13):
        bd2p[0, ow * 3:ow * 3 + 3] = bd2

    bf16 = jnp.bfloat16
    return (jnp.asarray(w1p, bf16), jnp.asarray(b1p),
            jnp.asarray(w2p, bf16), jnp.asarray(b2p),
            jnp.asarray(w3p, bf16), jnp.asarray(b3p),
            jnp.asarray(wd1p, bf16), jnp.asarray(bd1p),
            jnp.asarray(wd2p, bf16), jnp.asarray(bd2p))


# ---------------------------------------------------------------------------
# Forward: boundary-only layout work + a single fused pallas_call.
# ---------------------------------------------------------------------------
def autoencoder_forward(packed, x):
    (w1p, b1p, w2p, b2p, w3p, b3p, wd1p, bd1p, wd2p, bd2p) = packed
    n = x.shape[0]

    # Boundary relayout only (no im2col, no inflation): NCHW -> (h, w*3+c) rows
    # padded to 128 lanes, image rows permuted h -> (h%4)*8 + h//4 so every
    # stride-2 / stride-4 row family the kernel needs is a contiguous slice.
    xh = jnp.transpose(x, (0, 2, 3, 1)).reshape(n, 32, 96)
    xh = jnp.pad(xh, ((0, 0), (0, 0), (0, 32)))                 # (n, 32, 128)
    xp = xh.reshape(n, 8, 4, 128).transpose(0, 2, 1, 3).reshape(n, 32, 128)

    # TODO(synk): for large batches, block several images per grid step (stack
    # them along the GEMM M dims) to amortize the ~0.35us/step overhead; at the
    # demo batch (n=2) one image per step keeps both v7x TensorCores busy.

    flops = 2 * n * (16 * 640 * 256 + 5 * 1280 * 256 + 1280 * 32
                     + 32 * 640 + 5 * 128 * 640)
    bytes_accessed = int(
        xp.size * 4
        + (w1p.size + w2p.size + w3p.size + wd1p.size + wd2p.size) * 2
        + (b1p.size + b2p.size + b3p.size + bd1p.size + bd2p.size) * 4
        + n * 16 * 128 * 4)

    def wspec(shape):
        return pl.BlockSpec(shape, lambda b: (0, 0))

    out = pl.pallas_call(
        _fused_autoencoder_kernel,
        out_shape=jax.ShapeDtypeStruct((n, 16, 128), jnp.float32),
        grid_spec=pltpu.PrefetchScalarGridSpec(
            num_scalar_prefetch=0,
            grid=(n,),
            in_specs=[
                pl.BlockSpec((None, 32, 128), lambda b: (b, 0, 0)),
                wspec((640, 256)), wspec((1, 256)),
                wspec((1280, 256)), wspec((1, 256)),
                wspec((1280, 32)), wspec((1, 32)),
                wspec((32, 640)), wspec((1, 640)),
                wspec((128, 640)), wspec((1, 128)),
            ],
            out_specs=pl.BlockSpec((None, 16, 128), lambda b: (b, 0, 0)),
        ),
        compiler_params=pltpu.CompilerParams(
            dimension_semantics=("parallel",)),
        cost_estimate=pl.CostEstimate(
            flops=flops, transcendentals=0, bytes_accessed=bytes_accessed),
    )(xp, w1p, b1p, w2p, b2p, w3p, b3p, wd1p, bd1p, wd2p, bd2p)

    y = out[:, :13, :39].reshape(n, 13, 13, 3)                  # (n, oh, ow, co)
    return jnp.transpose(y, (0, 3, 1, 2))                       # NCHW


# ---------------------------------------------------------------------------
# Pure-JAX (XLA) reference with PyTorch Conv2d / ConvTranspose2d semantics.
# ---------------------------------------------------------------------------
def reference_forward(params, x):
    dn = ("NCHW", "OIHW", "NCHW")

    def conv(y, w, b, stride):
        y = jax.lax.conv_general_dilated(y, w, (stride, stride), "VALID",
                                         dimension_numbers=dn)
        return y + b.reshape(1, -1, 1, 1)

    def convt(y, w, b, stride, k=5):
        wf = jnp.transpose(w, (1, 0, 2, 3))[:, :, ::-1, ::-1]
        y = jax.lax.conv_general_dilated(y, wf, (1, 1),
                                         [(k - 1, k - 1), (k - 1, k - 1)],
                                         lhs_dilation=(stride, stride),
                                         dimension_numbers=dn)
        return y + b.reshape(1, -1, 1, 1)

    r = jax.nn.relu
    y = r(conv(x, params["conv1_w"], params["conv1_b"], 2))
    y = r(conv(y, params["conv2_w"], params["conv2_b"], 2))
    y = r(conv(y, params["conv3_w"], params["conv3_b"], 2))
    y = r(convt(y, params["dconv1_w"], params["dconv1_b"], 2))
    return convt(y, params["dconv2_w"], params["dconv2_b"], 2)


# ---------------------------------------------------------------------------
# Parameter init (PyTorch-layout weights).
# ---------------------------------------------------------------------------
def init_params(key):
    ks = jax.random.split(key, 10)

    def w(k, shape, fan_in):
        return jax.random.normal(k, shape, jnp.float32) / jnp.sqrt(
            jnp.float32(fan_in))

    return {
        "conv1_w": w(ks[0], (16, 3, 5, 5), 3 * 25),
        "conv1_b": w(ks[1], (16,), 3 * 25),
        "conv2_w": w(ks[2], (32, 16, 5, 5), 16 * 25),
        "conv2_b": w(ks[3], (32,), 16 * 25),
        "conv3_w": w(ks[4], (32, 32, 5, 5), 32 * 25),
        "conv3_b": w(ks[5], (32,), 32 * 25),
        "dconv1_w": w(ks[6], (32, 16, 5, 5), 32 * 25),  # ConvTranspose2d: (Cin,Cout,KH,KW)
        "dconv1_b": w(ks[7], (16,), 32 * 25),
        "dconv2_w": w(ks[8], (16, 3, 5, 5), 16 * 25),
        "dconv2_b": w(ks[9], (3,), 16 * 25),
    }


if __name__ == "__main__":
    key = jax.random.PRNGKey(0)
    pkey, xkey = jax.random.split(key)
    params = init_params(pkey)
    packed = pack_params(params)                 # one-time host-side packing
    # Input: NCHW, batch=2, 3 channels, 32x32 (-> 14 -> 5 -> 1 -> 5 -> 13).
    x = jax.random.normal(xkey, (2, 3, 32, 32), jnp.float32)

    fwd = jax.jit(autoencoder_forward)
    out = fwd(packed, x)
    jax.block_until_ready(out)
    assert out.shape == (2, 3, 13, 13), out.shape
    assert out.dtype == jnp.float32
    assert bool(jnp.all(jnp.isfinite(out)))

    ref = reference_forward(params, x)
    err = float(jnp.max(jnp.abs(out - ref)))
    assert err < 0.1, f"max abs error vs f32 reference: {err}"

    print("KERNEL_OK")
</pallas_src>

<mosaic_0001>
module attributes {stable_mosaic.version = 11 : i64} {
  func.func @_fused_autoencoder_kernel(%arg0: i32, %arg1: memref<1x32x128xf32, #tpu.memory_space<vmem>>, %arg2: memref<640x256xbf16, #tpu.memory_space<vmem>>, %arg3: memref<1x256xf32, #tpu.memory_space<vmem>>, %arg4: memref<1280x256xbf16, #tpu.memory_space<vmem>>, %arg5: memref<1x256xf32, #tpu.memory_space<vmem>>, %arg6: memref<1280x32xbf16, #tpu.memory_space<vmem>>, %arg7: memref<1x32xf32, #tpu.memory_space<vmem>>, %arg8: memref<32x640xbf16, #tpu.memory_space<vmem>>, %arg9: memref<1x640xf32, #tpu.memory_space<vmem>>, %arg10: memref<128x640xbf16, #tpu.memory_space<vmem>>, %arg11: memref<1x128xf32, #tpu.memory_space<vmem>>, %arg12: memref<1x16x128xf32, #tpu.memory_space<vmem>>) attributes {dimension_semantics = [#tpu.dimension_semantics<parallel>], iteration_bounds = array<i64: 2>, scalar_prefetch = 0 : i64, scratch_operands = 0 : i64, tpu.core_type = #tpu.core_type<tc>, window_params = [{transform_indices = @transform_0, window_bounds = array<i64: 1, 32, 128>}, {pipeline_mode = #tpu.pipeline_mode<synchronous>, transform_indices = @transform_1, window_bounds = array<i64: 640, 256>}, {pipeline_mode = #tpu.pipeline_mode<synchronous>, transform_indices = @transform_2, window_bounds = array<i64: 1, 256>}, {pipeline_mode = #tpu.pipeline_mode<synchronous>, transform_indices = @transform_3, window_bounds = array<i64: 1280, 256>}, {pipeline_mode = #tpu.pipeline_mode<synchronous>, transform_indices = @transform_4, window_bounds = array<i64: 1, 256>}, {pipeline_mode = #tpu.pipeline_mode<synchronous>, transform_indices = @transform_5, window_bounds = array<i64: 1280, 32>}, {pipeline_mode = #tpu.pipeline_mode<synchronous>, transform_indices = @transform_6, window_bounds = array<i64: 1, 32>}, {pipeline_mode = #tpu.pipeline_mode<synchronous>, transform_indices = @transform_7, window_bounds = array<i64: 32, 640>}, {pipeline_mode = #tpu.pipeline_mode<synchronous>, transform_indices = @transform_8, window_bounds = array<i64: 1, 640>}, {pipeline_mode = #tpu.pipeline_mode<synchronous>, transform_indices = @transform_9, window_bounds = array<i64: 128, 640>}, {pipeline_mode = #tpu.pipeline_mode<synchronous>, transform_indices = @transform_10, window_bounds = array<i64: 1, 128>}, {transform_indices = @transform_11, window_bounds = array<i64: 1, 16, 128>}]} {
    %c0 = arith.constant 0 : index
    %c0_0 = arith.constant 0 : index
    %c0_1 = arith.constant 0 : index
    %0 = vector.load %arg1[%c0, %c0_0, %c0_1] : memref<1x32x128xf32, #tpu.memory_space<vmem>>, vector<1x8x128xf32>
    %1 = vector.shape_cast %0 : vector<1x8x128xf32> to vector<8x128xf32>
    %c0_2 = arith.constant 0 : index
    %c16 = arith.constant 16 : index
    %c0_3 = arith.constant 0 : index
    %2 = vector.load %arg1[%c0_2, %c16, %c0_3] : memref<1x32x128xf32, #tpu.memory_space<vmem>>, vector<1x8x128xf32>
    %3 = vector.shape_cast %2 : vector<1x8x128xf32> to vector<8x128xf32>
    %4 = tpu.concatenate %1, %3 in 0 : vector<8x128xf32>, vector<8x128xf32> -> vector<16x128xf32>
    %c0_4 = arith.constant 0 : index
    %c8 = arith.constant 8 : index
    %c0_5 = arith.constant 0 : index
    %5 = vector.load %arg1[%c0_4, %c8, %c0_5] : memref<1x32x128xf32, #tpu.memory_space<vmem>>, vector<1x8x128xf32>
    %6 = vector.shape_cast %5 : vector<1x8x128xf32> to vector<8x128xf32>
    %c0_6 = arith.constant 0 : index
    %c24 = arith.constant 24 : index
    %c0_7 = arith.constant 0 : index
    %7 = vector.load %arg1[%c0_6, %c24, %c0_7] : memref<1x32x128xf32, #tpu.memory_space<vmem>>, vector<1x8x128xf32>
    %8 = vector.shape_cast %7 : vector<1x8x128xf32> to vector<8x128xf32>
    %9 = tpu.concatenate %6, %8 in 0 : vector<8x128xf32>, vector<8x128xf32> -> vector<16x128xf32>
    %c0_8 = arith.constant 0 : index
    %c16_9 = arith.constant 16 : index
    %c0_10 = arith.constant 0 : index
    %10 = vector.load %arg1[%c0_8, %c16_9, %c0_10] : memref<1x32x128xf32, #tpu.memory_space<vmem>>, vector<1x8x128xf32>
    %11 = vector.shape_cast %10 : vector<1x8x128xf32> to vector<8x128xf32>
    %c0_11 = arith.constant 0 : index
    %c1 = arith.constant 1 : index
    %c0_12 = arith.constant 0 : index
    %12 = vector.load %arg1[%c0_11, %c1, %c0_12] : memref<1x32x128xf32, #tpu.memory_space<vmem>>, vector<1x8x128xf32>
    %13 = vector.shape_cast %12 : vector<1x8x128xf32> to vector<8x128xf32>
    %14 = tpu.concatenate %11, %13 in 0 : vector<8x128xf32>, vector<8x128xf32> -> vector<16x128xf32>
    %c0_13 = arith.constant 0 : index
    %c24_14 = arith.constant 24 : index
    %c0_15 = arith.constant 0 : index
    %15 = vector.load %arg1[%c0_13, %c24_14, %c0_15] : memref<1x32x128xf32, #tpu.memory_space<vmem>>, vector<1x8x128xf32>
    %16 = vector.shape_cast %15 : vector<1x8x128xf32> to vector<8x128xf32>
    %c0_16 = arith.constant 0 : index
    %c9 = arith.constant 9 : index
    %c0_17 = arith.constant 0 : index
    %17 = vector.load %arg1[%c0_16, %c9, %c0_17] : memref<1x32x128xf32, #tpu.memory_space<vmem>>, vector<1x8x128xf32>
    %18 = vector.shape_cast %17 : vector<1x8x128xf32> to vector<8x128xf32>
    %19 = tpu.concatenate %16, %18 in 0 : vector<8x128xf32>, vector<8x128xf32> -> vector<16x128xf32>
    %c0_18 = arith.constant 0 : index
    %c1_19 = arith.constant 1 : index
    %c0_20 = arith.constant 0 : index
    %20 = vector.load %arg1[%c0_18, %c1_19, %c0_20] : memref<1x32x128xf32, #tpu.memory_space<vmem>>, vector<1x8x128xf32>
    %21 = vector.shape_cast %20 : vector<1x8x128xf32> to vector<8x128xf32>
    %c0_21 = arith.constant 0 : index
    %c17 = arith.constant 17 : index
    %c0_22 = arith.constant 0 : index
    %22 = vector.load %arg1[%c0_21, %c17, %c0_22] : memref<1x32x128xf32, #tpu.memory_space<vmem>>, vector<1x8x128xf32>
    %23 = vector.shape_cast %22 : vector<1x8x128xf32> to vector<8x128xf32>
    %24 = tpu.concatenate %21, %23 in 0 : vector<8x128xf32>, vector<8x128xf32> -> vector<16x128xf32>
    %25 = tpu.concatenate %4, %9, %14, %19, %24 in 1 : vector<16x128xf32>, vector<16x128xf32>, vector<16x128xf32>, vector<16x128xf32>, vector<16x128xf32> -> vector<16x640xf32>
    %26 = arith.truncf %25 : vector<16x640xf32> to vector<16x640xbf16>
    %c0_23 = arith.constant 0 : index
    %c0_24 = arith.constant 0 : index
    %27 = vector.load %arg2[%c0_23, %c0_24] : memref<640x256xbf16, #tpu.memory_space<vmem>>, vector<640x256xbf16>
    %cst = arith.constant dense<0.000000e+00> : vector<16x256xf32>
    %28 = tpu.matmul %26, %27, %cst {dimension_numbers = #tpu.dot_dimension_numbers<[1], [0], [0], [1], [0, 0, 1, 1], [], []>} : vector<16x640xbf16>, vector<640x256xbf16>, vector<16x256xf32> -> vector<16x256xf32>
    %c0_25 = arith.constant 0 : index
    %c0_26 = arith.constant 0 : index
    %29 = vector.load %arg3[%c0_25, %c0_26] : memref<1x256xf32, #tpu.memory_space<vmem>>, vector<1x256xf32>
    %30 = vector.broadcast %29 : vector<1x256xf32> to vector<16x256xf32>
    %31 = arith.addf %28, %30 : vector<16x256xf32>
    %cst_27 = arith.constant 0.000000e+00 : f32
    %32 = vector.broadcast %cst_27 : f32 to vector<16x256xf32>
    %33 = arith.maximumf %31, %32 : vector<16x256xf32>
    %34 = vector.extract_strided_slice %33 {offsets = [0, 0], sizes = [5, 256], strides = [1, 1]} : vector<16x256xf32> to vector<5x256xf32>
    %35 = vector.extract_strided_slice %33 {offsets = [8, 0], sizes = [5, 256], strides = [1, 1]} : vector<16x256xf32> to vector<5x256xf32>
    %36 = vector.extract_strided_slice %33 {offsets = [1, 0], sizes = [5, 256], strides = [1, 1]} : vector<16x256xf32> to vector<5x256xf32>
    %37 = vector.extract_strided_slice %33 {offsets = [9, 0], sizes = [5, 256], strides = [1, 1]} : vector<16x256xf32> to vector<5x256xf32>
    %38 = vector.extract_strided_slice %33 {offsets = [2, 0], sizes = [5, 256], strides = [1, 1]} : vector<16x256xf32> to vector<5x256xf32>
    %39 = tpu.concatenate %34, %35, %36, %37, %38 in 1 : vector<5x256xf32>, vector<5x256xf32>, vector<5x256xf32>, vector<5x256xf32>, vector<5x256xf32> -> vector<5x1280xf32>
    %40 = arith.truncf %39 : vector<5x1280xf32> to vector<5x1280xbf16>
    %c0_28 = arith.constant 0 : index
    %c0_29 = arith.constant 0 : index
    %41 = vector.load %arg4[%c0_28, %c0_29] : memref<1280x256xbf16, #tpu.memory_space<vmem>>, vector<1280x256xbf16>
    %cst_30 = arith.constant dense<0.000000e+00> : vector<5x256xf32>
    %42 = tpu.matmul %40, %41, %cst_30 {dimension_numbers = #tpu.dot_dimension_numbers<[1], [0], [0], [1], [0, 0, 1, 1], [], []>} : vector<5x1280xbf16>, vector<1280x256xbf16>, vector<5x256xf32> -> vector<5x256xf32>
    %c0_31 = arith.constant 0 : index
    %c0_32 = arith.constant 0 : index
    %43 = vector.load %arg5[%c0_31, %c0_32] : memref<1x256xf32, #tpu.memory_space<vmem>>, vector<1x256xf32>
    %44 = vector.broadcast %43 : vector<1x256xf32> to vector<5x256xf32>
    %45 = arith.addf %42, %44 : vector<5x256xf32>
    %cst_33 = arith.constant 0.000000e+00 : f32
    %46 = vector.broadcast %cst_33 : f32 to vector<5x256xf32>
    %47 = arith.maximumf %45, %46 : vector<5x256xf32>
    %48 = vector.extract_strided_slice %47 {offsets = [0, 0], sizes = [1, 256], strides = [1, 1]} : vector<5x256xf32> to vector<1x256xf32>
    %49 = vector.extract_strided_slice %47 {offsets = [1, 0], sizes = [1, 256], strides = [1, 1]} : vector<5x256xf32> to vector<1x256xf32>
    %50 = vector.extract_strided_slice %47 {offsets = [2, 0], sizes = [1, 256], strides = [1, 1]} : vector<5x256xf32> to vector<1x256xf32>
    %51 = vector.extract_strided_slice %47 {offsets = [3, 0], sizes = [1, 256], strides = [1, 1]} : vector<5x256xf32> to vector<1x256xf32>
    %52 = vector.extract_strided_slice %47 {offsets = [4, 0], sizes = [1, 256], strides = [1, 1]} : vector<5x256xf32> to vector<1x256xf32>
    %53 = tpu.concatenate %48, %49, %50, %51, %52 in 1 : vector<1x256xf32>, vector<1x256xf32>, vector<1x256xf32>, vector<1x256xf32>, vector<1x256xf32> -> vector<1x1280xf32>
    %54 = arith.truncf %53 : vector<1x1280xf32> to vector<1x1280xbf16>
    %c0_34 = arith.constant 0 : index
    %c0_35 = arith.constant 0 : index
    %55 = vector.load %arg6[%c0_34, %c0_35] : memref<1280x32xbf16, #tpu.memory_space<vmem>>, vector<1280x32xbf16>
    %cst_36 = arith.constant dense<0.000000e+00> : vector<1x32xf32>
    %56 = tpu.matmul %54, %55, %cst_36 {dimension_numbers = #tpu.dot_dimension_numbers<[1], [0], [0], [1], [0, 0, 1, 1], [], []>} : vector<1x1280xbf16>, vector<1280x32xbf16>, vector<1x32xf32> -> vector<1x32xf32>
    %c0_37 = arith.constant 0 : index
    %c0_38 = arith.constant 0 : index
    %57 = vector.load %arg7[%c0_37, %c0_38] : memref<1x32xf32, #tpu.memory_space<vmem>>, vector<1x32xf32>
    %58 = arith.addf %56, %57 : vector<1x32xf32>
    %cst_39 = arith.constant 0.000000e+00 : f32
    %59 = vector.broadcast %cst_39 : f32 to vector<1x32xf32>
    %60 = arith.maximumf %58, %59 : vector<1x32xf32>
    %61 = arith.truncf %60 : vector<1x32xf32> to vector<1x32xbf16>
    %c0_40 = arith.constant 0 : index
    %c0_41 = arith.constant 0 : index
    %62 = vector.load %arg8[%c0_40, %c0_41] : memref<32x640xbf16, #tpu.memory_space<vmem>>, vector<32x640xbf16>
    %cst_42 = arith.constant dense<0.000000e+00> : vector<1x640xf32>
    %63 = tpu.matmul %61, %62, %cst_42 {dimension_numbers = #tpu.dot_dimension_numbers<[1], [0], [0], [1], [0, 0, 1, 1], [], []>} : vector<1x32xbf16>, vector<32x640xbf16>, vector<1x640xf32> -> vector<1x640xf32>
    %c0_43 = arith.constant 0 : index
    %c0_44 = arith.constant 0 : index
    %64 = vector.load %arg9[%c0_43, %c0_44] : memref<1x640xf32, #tpu.memory_space<vmem>>, vector<1x640xf32>
    %65 = arith.addf %63, %64 : vector<1x640xf32>
    %cst_45 = arith.constant 0.000000e+00 : f32
    %66 = vector.broadcast %cst_45 : f32 to vector<1x640xf32>
    %67 = arith.maximumf %65, %66 : vector<1x640xf32>
    %68 = vector.extract_strided_slice %67 {offsets = [0, 0], sizes = [1, 128], strides = [1, 1]} : vector<1x640xf32> to vector<1x128xf32>
    %69 = vector.extract_strided_slice %67 {offsets = [0, 128], sizes = [1, 128], strides = [1, 1]} : vector<1x640xf32> to vector<1x128xf32>
    %70 = vector.extract_strided_slice %67 {offsets = [0, 256], sizes = [1, 128], strides = [1, 1]} : vector<1x640xf32> to vector<1x128xf32>
    %71 = vector.extract_strided_slice %67 {offsets = [0, 384], sizes = [1, 128], strides = [1, 1]} : vector<1x640xf32> to vector<1x128xf32>
    %72 = vector.extract_strided_slice %67 {offsets = [0, 512], sizes = [1, 128], strides = [1, 1]} : vector<1x640xf32> to vector<1x128xf32>
    %73 = tpu.concatenate %68, %69, %70, %71, %72 in 0 : vector<1x128xf32>, vector<1x128xf32>, vector<1x128xf32>, vector<1x128xf32>, vector<1x128xf32> -> vector<5x128xf32>
    %74 = arith.truncf %73 : vector<5x128xf32> to vector<5x128xbf16>
    %c0_46 = arith.constant 0 : index
    %c0_47 = arith.constant 0 : index
    %75 = vector.load %arg10[%c0_46, %c0_47] : memref<128x640xbf16, #tpu.memory_space<vmem>>, vector<128x640xbf16>
    %cst_48 = arith.constant dense<0.000000e+00> : vector<5x640xf32>
    %76 = tpu.matmul %74, %75, %cst_48 {dimension_numbers = #tpu.dot_dimension_numbers<[1], [0], [0], [1], [0, 0, 1, 1], [], []>} : vector<5x128xbf16>, vector<128x640xbf16>, vector<5x640xf32> -> vector<5x640xf32>
    %77 = vector.extract_strided_slice %76 {offsets = [0, 0], sizes = [1, 128], strides = [1, 1]} : vector<5x640xf32> to vector<1x128xf32>
    %78 = vector.extract_strided_slice %76 {offsets = [0, 128], sizes = [1, 128], strides = [1, 1]} : vector<5x640xf32> to vector<1x128xf32>
    %79 = vector.extract_strided_slice %76 {offsets = [1, 0], sizes = [1, 128], strides = [1, 1]} : vector<5x640xf32> to vector<1x128xf32>
    %80 = vector.extract_strided_slice %76 {offsets = [0, 256], sizes = [1, 128], strides = [1, 1]} : vector<5x640xf32> to vector<1x128xf32>
    %81 = arith.addf %79, %80 : vector<1x128xf32>
    %82 = vector.extract_strided_slice %76 {offsets = [1, 128], sizes = [1, 128], strides = [1, 1]} : vector<5x640xf32> to vector<1x128xf32>
    %83 = vector.extract_strided_slice %76 {offsets = [0, 384], sizes = [1, 128], strides = [1, 1]} : vector<5x640xf32> to vector<1x128xf32>
    %84 = arith.addf %82, %83 : vector<1x128xf32>
    %85 = vector.extract_strided_slice %76 {offsets = [2, 0], sizes = [1, 128], strides = [1, 1]} : vector<5x640xf32> to vector<1x128xf32>
    %86 = vector.extract_strided_slice %76 {offsets = [1, 256], sizes = [1, 128], strides = [1, 1]} : vector<5x640xf32> to vector<1x128xf32>
    %87 = arith.addf %85, %86 : vector<1x128xf32>
    %88 = vector.extract_strided_slice %76 {offsets = [0, 512], sizes = [1, 128], strides = [1, 1]} : vector<5x640xf32> to vector<1x128xf32>
    %89 = arith.addf %87, %88 : vector<1x128xf32>
    %90 = vector.extract_strided_slice %76 {offsets = [2, 128], sizes = [1, 128], strides = [1, 1]} : vector<5x640xf32> to vector<1x128xf32>
    %91 = vector.extract_strided_slice %76 {offsets = [1, 384], sizes = [1, 128], strides = [1, 1]} : vector<5x640xf32> to vector<1x128xf32>
    %92 = arith.addf %90, %91 : vector<1x128xf32>
    %93 = vector.extract_strided_slice %76 {offsets = [3, 0], sizes = [1, 128], strides = [1, 1]} : vector<5x640xf32> to vector<1x128xf32>
    %94 = vector.extract_strided_slice %76 {offsets = [2, 256], sizes = [1, 128], strides = [1, 1]} : vector<5x640xf32> to vector<1x128xf32>
    %95 = arith.addf %93, %94 : vector<1x128xf32>
    %96 = vector.extract_strided_slice %76 {offsets = [1, 512], sizes = [1, 128], strides = [1, 1]} : vector<5x640xf32> to vector<1x128xf32>
    %97 = arith.addf %95, %96 : vector<1x128xf32>
    %98 = vector.extract_strided_slice %76 {offsets = [3, 128], sizes = [1, 128], strides = [1, 1]} : vector<5x640xf32> to vector<1x128xf32>
    %99 = vector.extract_strided_slice %76 {offsets = [2, 384], sizes = [1, 128], strides = [1, 1]} : vector<5x640xf32> to vector<1x128xf32>
    %100 = arith.addf %98, %99 : vector<1x128xf32>
    %101 = vector.extract_strided_slice %76 {offsets = [4, 0], sizes = [1, 128], strides = [1, 1]} : vector<5x640xf32> to vector<1x128xf32>
    %102 = vector.extract_strided_slice %76 {offsets = [3, 256], sizes = [1, 128], strides = [1, 1]} : vector<5x640xf32> to vector<1x128xf32>
    %103 = arith.addf %101, %102 : vector<1x128xf32>
    %104 = vector.extract_strided_slice %76 {offsets = [2, 512], sizes = [1, 128], strides = [1, 1]} : vector<5x640xf32> to vector<1x128xf32>
    %105 = arith.addf %103, %104 : vector<1x128xf32>
    %106 = vector.extract_strided_slice %76 {offsets = [4, 128], sizes = [1, 128], strides = [1, 1]} : vector<5x640xf32> to vector<1x128xf32>
    %107 = vector.extract_strided_slice %76 {offsets = [3, 384], sizes = [1, 128], strides = [1, 1]} : vector<5x640xf32> to vector<1x128xf32>
    %108 = arith.addf %106, %107 : vector<1x128xf32>
    %109 = vector.extract_strided_slice %76 {offsets = [4, 256], sizes = [1, 128], strides = [1, 1]} : vector<5x640xf32> to vector<1x128xf32>
    %110 = vector.extract_strided_slice %76 {offsets = [3, 512], sizes = [1, 128], strides = [1, 1]} : vector<5x640xf32> to vector<1x128xf32>
    %111 = arith.addf %109, %110 : vector<1x128xf32>
    %112 = vector.extract_strided_slice %76 {offsets = [4, 384], sizes = [1, 128], strides = [1, 1]} : vector<5x640xf32> to vector<1x128xf32>
    %113 = vector.extract_strided_slice %76 {offsets = [4, 512], sizes = [1, 128], strides = [1, 1]} : vector<5x640xf32> to vector<1x128xf32>
    %cst_49 = arith.constant 0.000000e+00 : f32
    %114 = vector.broadcast %cst_49 : f32 to vector<3x128xf32>
    %115 = tpu.concatenate %77, %78, %81, %84, %89, %92, %97, %100, %105, %108, %111, %112, %113, %114 in 0 : vector<1x128xf32>, vector<1x128xf32>, vector<1x128xf32>, vector<1x128xf32>, vector<1x128xf32>, vector<1x128xf32>, vector<1x128xf32>, vector<1x128xf32>, vector<1x128xf32>, vector<1x128xf32>, vector<1x128xf32>, vector<1x128xf32>, vector<1x128xf32>, vector<3x128xf32> -> vector<16x128xf32>
    %c0_50 = arith.constant 0 : index
    %c0_51 = arith.constant 0 : index
    %116 = vector.load %arg11[%c0_50, %c0_51] : memref<1x128xf32, #tpu.memory_space<vmem>>, vector<1x128xf32>
    %117 = vector.broadcast %116 : vector<1x128xf32> to vector<16x128xf32>
    %118 = arith.addf %115, %117 : vector<16x128xf32>
    %c0_52 = arith.constant 0 : index
    %c0_53 = arith.constant 0 : index
    %c0_54 = arith.constant 0 : index
    %119 = vector.load %arg12[%c0_52, %c0_53, %c0_54] : memref<1x16x128xf32, #tpu.memory_space<vmem>>, vector<1x16x128xf32>
    %120 = vector.shape_cast %119 : vector<1x16x128xf32> to vector<16x128xf32>
    %121 = vector.shape_cast %118 : vector<16x128xf32> to vector<1x16x128xf32>
    tpu.vector_store %arg12[%c0_52, %c0_53, %c0_54], %121 {strides = array<i32>} : memref<1x16x128xf32, #tpu.memory_space<vmem>>, vector<1x16x128xf32>,
    return
  }
  func.func @transform_0(%arg0: i32) -> (i32, i32, i32) {
    %c0_i32 = arith.constant 0 : i32
    %c0_i32_0 = arith.constant 0 : i32
    %c0_i32_1 = arith.constant 0 : i32
    return %arg0, %c0_i32, %c0_i32_0 : i32, i32, i32
  }
  func.func @transform_1(%arg0: i32) -> (i32, i32) {
    %c0_i32 = arith.constant 0 : i32
    %c0_i32_0 = arith.constant 0 : i32
    %c0_i32_1 = arith.constant 0 : i32
    return %c0_i32, %c0_i32_0 : i32, i32
  }
  func.func @transform_2(%arg0: i32) -> (i32, i32) {
    %c0_i32 = arith.constant 0 : i32
    %c0_i32_0 = arith.constant 0 : i32
    %c0_i32_1 = arith.constant 0 : i32
    return %c0_i32, %c0_i32_0 : i32, i32
  }
  func.func @transform_3(%arg0: i32) -> (i32, i32) {
    %c0_i32 = arith.constant 0 : i32
    %c0_i32_0 = arith.constant 0 : i32
    %c0_i32_1 = arith.constant 0 : i32
    return %c0_i32, %c0_i32_0 : i32, i32
  }
  func.func @transform_4(%arg0: i32) -> (i32, i32) {
    %c0_i32 = arith.constant 0 : i32
    %c0_i32_0 = arith.constant 0 : i32
    %c0_i32_1 = arith.constant 0 : i32
    return %c0_i32, %c0_i32_0 : i32, i32
  }
  func.func @transform_5(%arg0: i32) -> (i32, i32) {
    %c0_i32 = arith.constant 0 : i32
    %c0_i32_0 = arith.constant 0 : i32
    %c0_i32_1 = arith.constant 0 : i32
    return %c0_i32, %c0_i32_0 : i32, i32
  }
  func.func @transform_6(%arg0: i32) -> (i32, i32) {
    %c0_i32 = arith.constant 0 : i32
    %c0_i32_0 = arith.constant 0 : i32
    %c0_i32_1 = arith.constant 0 : i32
    return %c0_i32, %c0_i32_0 : i32, i32
  }
  func.func @transform_7(%arg0: i32) -> (i32, i32) {
    %c0_i32 = arith.constant 0 : i32
    %c0_i32_0 = arith.constant 0 : i32
    %c0_i32_1 = arith.constant 0 : i32
    return %c0_i32, %c0_i32_0 : i32, i32
  }
  func.func @transform_8(%arg0: i32) -> (i32, i32) {
    %c0_i32 = arith.constant 0 : i32
    %c0_i32_0 = arith.constant 0 : i32
    %c0_i32_1 = arith.constant 0 : i32
    return %c0_i32, %c0_i32_0 : i32, i32
  }
  func.func @transform_9(%arg0: i32) -> (i32, i32) {
    %c0_i32 = arith.constant 0 : i32
    %c0_i32_0 = arith.constant 0 : i32
    %c0_i32_1 = arith.constant 0 : i32
    return %c0_i32, %c0_i32_0 : i32, i32
  }
  func.func @transform_10(%arg0: i32) -> (i32, i32) {
    %c0_i32 = arith.constant 0 : i32
    %c0_i32_0 = arith.constant 0 : i32
    %c0_i32_1 = arith.constant 0 : i32
    return %c0_i32, %c0_i32_0 : i32, i32
  }
  func.func @transform_11(%arg0: i32) -> (i32, i32, i32) {
    %c0_i32 = arith.constant 0 : i32
    %c0_i32_0 = arith.constant 0 : i32
    %c0_i32_1 = arith.constant 0 : i32
    return %arg0, %c0_i32, %c0_i32_0 : i32, i32, i32
  }
}

</mosaic_0001>

<llo_original>
// kernel: autoencoder_forward.1
$region0: #{autoencoder_forward.1}
  #allocation0 [shape = 'u32[]', space=smem, size = 0x4, offset = 0x4, fixed_abs, tag = 'smem constant byte address 0x4 - core index']
  #allocation1 [shape = 'u32[72,128]{1,0:T(1,128)}', space=vmem, size = 0x9000, scoped, tag = 'internal scratch']
  %s0 = inlined_call_operand.vmem [shape: f32[2,32,128], index: 0, kind: input, shape index: {}]
  %s1 = inlined_call_operand.hbm [shape: bf16[640,256], index: 1, kind: input, shape index: {}]
  %s2 = inlined_call_operand.vmem [shape: f32[1,256], index: 2, kind: input, shape index: {}]
  %s3 = inlined_call_operand.vmem [shape: bf16[1280,256], index: 3, kind: input, shape index: {}]
  %s4 = inlined_call_operand.vmem [shape: f32[1,256], index: 4, kind: input, shape index: {}]
  %s5 = inlined_call_operand.vmem [shape: bf16[1280,32], index: 5, kind: input, shape index: {}]
  %s6 = inlined_call_operand.vmem [shape: f32[1,32], index: 6, kind: input, shape index: {}]
  %s7 = inlined_call_operand.vmem [shape: bf16[32,640], index: 7, kind: input, shape index: {}]
  %s8 = inlined_call_operand.vmem [shape: f32[1,640], index: 8, kind: input, shape index: {}]
  %s9 = inlined_call_operand.vmem [shape: bf16[128,640], index: 9, kind: input, shape index: {}]
  %s10 = inlined_call_operand.vmem [shape: f32[1,128], index: 10, kind: input, shape index: {}]
  %s11 = inlined_call_operand.vmem [shape: f32[2,16,128], index: 11, kind: output, shape index: {}]
  %s12 = sld [smem:[#allocation0]]
  $region81: #{autoencoder_forward.1} parent=0
    _
  %s14 = ssub.s32 1, %s12
  %s15 = scalar_select 0, %s14, %s12
  $region1: #{autoencoder_forward.1} parent=0
    #allocation2 [shape = 'u8[327680]{0}', space=vmem, size = 0x50000, scoped, tag = 'input window, operand 1, single buffered']
    #allocation3 [shape = 's32[2]{0}', space=sflag, size = 0x8, scoped, tag = 'scoped memory for autoencoder_forward.1']
    %16 = vsyncpa [#allocation3], 0
    loop: start=0, step=1, limit=4
    $region2: #{autoencoder_forward.1} parent=1 // loop_pre_header
      _
    $region3: #{autoencoder_forward.1} parent=1 // loop_header
      %s18 = sphi 0, %s22
      %p19 = scmp.ge.s32.totalorder %s18, 4
      %s28 = sphi 0, %s30
      %s31 = sphi 0, %s28
      %s32 = sphi 0, %s31
      %s48 = sphi 0, %s32
      %s52 = sphi 0, %s52
      %s54 = sphi 0, %s52
      %s55 = sphi 0, %s54
      %s69 = sphi 0, %s55
      %s73 = sphi 0, %s73
      %s75 = sphi 0, %s73
      %s76 = sphi 0, %s75
      %s90 = sphi 0, %s76
      %s94 = sphi 0, %s94
      %s96 = sphi 0, %s94
      %s97 = sphi 0, %s96
      %s111 = sphi 0, %s97
      %s115 = sphi 0, %s115
      %s117 = sphi 0, %s115
      %s118 = sphi 0, %s117
      %s132 = sphi 0, %s118
      %s136 = sphi 0, %s136
      %s138 = sphi 0, %s136
      %s139 = sphi 0, %s138
      %s153 = sphi 0, %s139
      %s157 = sphi 0, %s157
      %s159 = sphi 0, %s157
      %s160 = sphi 0, %s159
      %s174 = sphi 0, %s160
      %s178 = sphi 0, %s178
      %s180 = sphi 0, %s178
      %s181 = sphi 0, %s180
      %s195 = sphi 0, %s181
      %s199 = sphi 0, %s199
      %s201 = sphi 0, %s199
      %s202 = sphi 0, %s201
      %s216 = sphi 0, %s202
      %s220 = sphi 0, %s220
      %s222 = sphi 0, %s220
      %s223 = sphi 0, %s222
      %s237 = sphi 0, %s223
      %s241 = sphi 0, %s241
      %s243 = sphi 0, %s241
      %s244 = sphi 0, %s243
      %s258 = sphi 0, %s244
      %s264 = sphi 0, %s266
      %s267 = sphi 0, %s264
      %s268 = sphi 0, %s267
      %s284 = sphi 0, %s268
    $region4: #{autoencoder_forward.1} parent=1 // loop_header_branch
      %21 = sbr.rel (%p19) target = $region8
    $region5: #{autoencoder_forward.1} parent=1 // loop_body
      %s23 = ssub.s32 %s18, 1
      %s24 = ssub.s32 %s18, 2
      %s25 = sadd.s32 %s18, 1
      %s26 = ssub.s32 %s18, %s25
      %p27 = scmp.eq.s32.totalorder %s26, 0
      %s29 = sadd.s32 %s28, 1
      %s30 = scalar_select %p27, %s28, %s29
      %p33 = pneg %p27
      %p34 = scmp.eq.s32.totalorder %s18, 1
      %p35 = por %p33, %p34
      %p36 = scmp.ne.s32.totalorder %s28, %s31
      %p37 = scmp.eq.s32.totalorder %s18, 0
      %p38 = por %p36, %p37
      %p39 = scmp.ne.s32.totalorder %s28, %s31
      %p40 = scmp.eq.s32.totalorder %s23, 1
      %p41 = por %p39, %p40
      %p42 = scmp.ne.s32.totalorder %s31, %s32
      %p43 = scmp.eq.s32.totalorder %s23, 0
      %p44 = por %p42, %p43
      %p45 = scmp.ne.s32.totalorder %s31, %s32
      %p46 = scmp.eq.s32.totalorder %s24, 1
      %p47 = por %p45, %p46
      %p49 = scmp.ne.s32.totalorder %s32, %s48
      %p50 = scmp.eq.s32.totalorder %s24, 0
      %p51 = por %p49, %p50
      %s53 = sadd.s32 %s52, 1
      %p56 = scmp.eq.s32.totalorder %s18, 1
      %p57 = scmp.ne.s32.totalorder %s52, %s54
      %p58 = scmp.eq.s32.totalorder %s18, 0
      %p59 = por %p57, %p58
      %p60 = scmp.ne.s32.totalorder %s52, %s54
      %p61 = scmp.eq.s32.totalorder %s23, 1
      %p62 = por %p60, %p61
      %p63 = scmp.ne.s32.totalorder %s54, %s55
      %p64 = scmp.eq.s32.totalorder %s23, 0
      %p65 = por %p63, %p64
      %p66 = scmp.ne.s32.totalorder %s54, %s55
      %p67 = scmp.eq.s32.totalorder %s24, 1
      %p68 = por %p66, %p67
      %p70 = scmp.ne.s32.totalorder %s55, %s69
      %p71 = scmp.eq.s32.totalorder %s24, 0
      %p72 = por %p70, %p71
      %s74 = sadd.s32 %s73, 1
      %p77 = scmp.eq.s32.totalorder %s18, 1
      %p78 = scmp.ne.s32.totalorder %s73, %s75
      %p79 = scmp.eq.s32.totalorder %s18, 0
      %p80 = por %p78, %p79
      %p81 = scmp.ne.s32.totalorder %s73, %s75
      %p82 = scmp.eq.s32.totalorder %s23, 1
      %p83 = por %p81, %p82
      %p84 = scmp.ne.s32.totalorder %s75, %s76
      %p85 = scmp.eq.s32.totalorder %s23, 0
      %p86 = por %p84, %p85
      %p87 = scmp.ne.s32.totalorder %s75, %s76
      %p88 = scmp.eq.s32.totalorder %s24, 1
      %p89 = por %p87, %p88
      %p91 = scmp.ne.s32.totalorder %s76, %s90
      %p92 = scmp.eq.s32.totalorder %s24, 0
      %p93 = por %p91, %p92
      %s95 = sadd.s32 %s94, 1
      %p98 = scmp.eq.s32.totalorder %s18, 1
      %p99 = scmp.ne.s32.totalorder %s94, %s96
      %p100 = scmp.eq.s32.totalorder %s18, 0
      %p101 = por %p99, %p100
      %p102 = scmp.ne.s32.totalorder %s94, %s96
      %p103 = scmp.eq.s32.totalorder %s23, 1
      %p104 = por %p102, %p103
      %p105 = scmp.ne.s32.totalorder %s96, %s97
      %p106 = scmp.eq.s32.totalorder %s23, 0
      %p107 = por %p105, %p106
      %p108 = scmp.ne.s32.totalorder %s96, %s97
      %p109 = scmp.eq.s32.totalorder %s24, 1
      %p110 = por %p108, %p109
      %p112 = scmp.ne.s32.totalorder %s97, %s111
      %p113 = scmp.eq.s32.totalorder %s24, 0
      %p114 = por %p112, %p113
      %s116 = sadd.s32 %s115, 1
      %p119 = scmp.eq.s32.totalorder %s18, 1
      %p120 = scmp.ne.s32.totalorder %s115, %s117
      %p121 = scmp.eq.s32.totalorder %s18, 0
      %p122 = por %p120, %p121
      %p123 = scmp.ne.s32.totalorder %s115, %s117
      %p124 = scmp.eq.s32.totalorder %s23, 1
      %p125 = por %p123, %p124
      %p126 = scmp.ne.s32.totalorder %s117, %s118
      %p127 = scmp.eq.s32.totalorder %s23, 0
      %p128 = por %p126, %p127
      %p129 = scmp.ne.s32.totalorder %s117, %s118
      %p130 = scmp.eq.s32.totalorder %s24, 1
      %p131 = por %p129, %p130
      %p133 = scmp.ne.s32.totalorder %s118, %s132
      %p134 = scmp.eq.s32.totalorder %s24, 0
      %p135 = por %p133, %p134
      %s137 = sadd.s32 %s136, 1
      %p140 = scmp.eq.s32.totalorder %s18, 1
      %p141 = scmp.ne.s32.totalorder %s136, %s138
      %p142 = scmp.eq.s32.totalorder %s18, 0
      %p143 = por %p141, %p142
      %p144 = scmp.ne.s32.totalorder %s136, %s138
      %p145 = scmp.eq.s32.totalorder %s23, 1
      %p146 = por %p144, %p145
      %p147 = scmp.ne.s32.totalorder %s138, %s139
      %p148 = scmp.eq.s32.totalorder %s23, 0
      %p149 = por %p147, %p148
      %p150 = scmp.ne.s32.totalorder %s138, %s139
      %p151 = scmp.eq.s32.totalorder %s24, 1
      %p152 = por %p150, %p151
      %p154 = scmp.ne.s32.totalorder %s139, %s153
      %p155 = scmp.eq.s32.totalorder %s24, 0
      %p156 = por %p154, %p155
      %s158 = sadd.s32 %s157, 1
      %p161 = scmp.eq.s32.totalorder %s18, 1
      %p162 = scmp.ne.s32.totalorder %s157, %s159
      %p163 = scmp.eq.s32.totalorder %s18, 0
      %p164 = por %p162, %p163
      %p165 = scmp.ne.s32.totalorder %s157, %s159
      %p166 = scmp.eq.s32.totalorder %s23, 1
      %p167 = por %p165, %p166
      %p168 = scmp.ne.s32.totalorder %s159, %s160
      %p169 = scmp.eq.s32.totalorder %s23, 0
      %p170 = por %p168, %p169
      %p171 = scmp.ne.s32.totalorder %s159, %s160
      %p172 = scmp.eq.s32.totalorder %s24, 1
      %p173 = por %p171, %p172
      %p175 = scmp.ne.s32.totalorder %s160, %s174
      %p176 = scmp.eq.s32.totalorder %s24, 0
      %p177 = por %p175, %p176
      %s179 = sadd.s32 %s178, 1
      %p182 = scmp.eq.s32.totalorder %s18, 1
      %p183 = scmp.ne.s32.totalorder %s178, %s180
      %p184 = scmp.eq.s32.totalorder %s18, 0
      %p185 = por %p183, %p184
      %p186 = scmp.ne.s32.totalorder %s178, %s180
      %p187 = scmp.eq.s32.totalorder %s23, 1
      %p188 = por %p186, %p187
      %p189 = scmp.ne.s32.totalorder %s180, %s181
      %p190 = scmp.eq.s32.totalorder %s23, 0
      %p191 = por %p189, %p190
      %p192 = scmp.ne.s32.totalorder %s180, %s181
      %p193 = scmp.eq.s32.totalorder %s24, 1
      %p194 = por %p192, %p193
      %p196 = scmp.ne.s32.totalorder %s181, %s195
      %p197 = scmp.eq.s32.totalorder %s24, 0
      %p198 = por %p196, %p197
      %s200 = sadd.s32 %s199, 1
      %p203 = scmp.eq.s32.totalorder %s18, 1
      %p204 = scmp.ne.s32.totalorder %s199, %s201
      %p205 = scmp.eq.s32.totalorder %s18, 0
      %p206 = por %p204, %p205
      %p207 = scmp.ne.s32.totalorder %s199, %s201
      %p208 = scmp.eq.s32.totalorder %s23, 1
      %p209 = por %p207, %p208
      %p210 = scmp.ne.s32.totalorder %s201, %s202
      %p211 = scmp.eq.s32.totalorder %s23, 0
      %p212 = por %p210, %p211
      %p213 = scmp.ne.s32.totalorder %s201, %s202
      %p214 = scmp.eq.s32.totalorder %s24, 1
      %p215 = por %p213, %p214
      %p217 = scmp.ne.s32.totalorder %s202, %s216
      %p218 = scmp.eq.s32.totalorder %s24, 0
      %p219 = por %p217, %p218
      %s221 = sadd.s32 %s220, 1
      %p224 = scmp.eq.s32.totalorder %s18, 1
      %p225 = scmp.ne.s32.totalorder %s220, %s222
      %p226 = scmp.eq.s32.totalorder %s18, 0
      %p227 = por %p225, %p226
      %p228 = scmp.ne.s32.totalorder %s220, %s222
      %p229 = scmp.eq.s32.totalorder %s23, 1
      %p230 = por %p228, %p229
      %p231 = scmp.ne.s32.totalorder %s222, %s223
      %p232 = scmp.eq.s32.totalorder %s23, 0
      %p233 = por %p231, %p232
      %p234 = scmp.ne.s32.totalorder %s222, %s223
      %p235 = scmp.eq.s32.totalorder %s24, 1
      %p236 = por %p234, %p235
      %p238 = scmp.ne.s32.totalorder %s223, %s237
      %p239 = scmp.eq.s32.totalorder %s24, 0
      %p240 = por %p238, %p239
      %s242 = sadd.s32 %s241, 1
      %p245 = scmp.eq.s32.totalorder %s18, 1
      %p246 = scmp.ne.s32.totalorder %s241, %s243
      %p247 = scmp.eq.s32.totalorder %s18, 0
      %p248 = por %p246, %p247
      %p249 = scmp.ne.s32.totalorder %s241, %s243
      %p250 = scmp.eq.s32.totalorder %s23, 1
      %p251 = por %p249, %p250
      %p252 = scmp.ne.s32.totalorder %s243, %s244
      %p253 = scmp.eq.s32.totalorder %s23, 0
      %p254 = por %p252, %p253
      %p255 = scmp.ne.s32.totalorder %s243, %s244
      %p256 = scmp.eq.s32.totalorder %s24, 1
      %p257 = por %p255, %p256
      %p259 = scmp.ne.s32.totalorder %s244, %s258
      %p260 = scmp.eq.s32.totalorder %s24, 0
      %p261 = por %p259, %p260
      %s262 = ssub.s32 %s18, %s25
      %p263 = scmp.eq.s32.totalorder %s262, 0
      %s265 = sadd.s32 %s264, 1
      %s266 = scalar_select %p263, %s264, %s265
      %p269 = pneg %p263
      %p270 = scmp.eq.s32.totalorder %s18, 1
      %p271 = por %p269, %p270
      %p272 = scmp.ne.s32.totalorder %s264, %s267
      %p273 = scmp.eq.s32.totalorder %s18, 0
      %p274 = por %p272, %p273
      %p275 = scmp.ne.s32.totalorder %s264, %s267
      %p276 = scmp.eq.s32.totalorder %s23, 1
      %p277 = por %p275, %p276
      %p278 = scmp.ne.s32.totalorder %s267, %s268
      %p279 = scmp.eq.s32.totalorder %s23, 0
      %p280 = por %p278, %p279
      %p281 = scmp.ne.s32.totalorder %s267, %s268
      %p282 = scmp.eq.s32.totalorder %s24, 1
      %p283 = por %p281, %p282
      %p285 = scmp.ne.s32.totalorder %s268, %s284
      %p286 = scmp.eq.s32.totalorder %s24, 0
      %p287 = por %p285, %p286
      %p288 = scmp.le.s32.totalorder 1, %s18
      %p289 = scmp.lt.s32.totalorder %s18, 3
      %p290 = pnand %p288, %p289
      %p291 = pneg %p290
      // Predicated region
      $region9: #{autoencoder_forward.1} parent=5 // pred_check
        _
      $region10: #{autoencoder_forward.1} parent=5 // pred_check_branch
        %293 = sbr.rel (%p290) target = $region12
      $region11: #{autoencoder_forward.1} parent=5 // pred_region
        %s294 = ssub.s32 %s18, 1
        // Predicated region
        $region13: #{autoencoder_forward.1} parent=11 // pred_check
          %p295 = pneg %p65
        $region14: #{autoencoder_forward.1} parent=11 // pred_check_branch
          %297 = sbr.rel (%p295) target = $region16
        $region15: #{autoencoder_forward.1} parent=11 // pred_region
          %299 = vsyncadd [#allocation3], 0
          %s300 = sshll.u32 %s1, 4
          %s301 = int_to_ptr.hbm [resolvable:$true] %s300
          %s302 = sshll.u32 [#allocation2], 4
          %s303 = int_to_ptr.vmem [resolvable:$true] %s302
          %308 = dma.hbm_to_vmem [thread:$0]  %s301, 10240, %s303, [#allocation3], 128, 128, 8
        $region16: #{autoencoder_forward.1} parent=11 // pred_fallthru
          _
        // Predicated region
        $region17: #{autoencoder_forward.1} parent=11 // pred_check
          %p309 = pneg %p86
        $region18: #{autoencoder_forward.1} parent=11 // pred_check_branch
          %311 = sbr.rel (%p309) target = $region20
        $region19: #{autoencoder_forward.1} parent=11 // pred_region
          _
        $region20: #{autoencoder_forward.1} parent=11 // pred_fallthru
          _
        // Predicated region
        $region21: #{autoencoder_forward.1} parent=11 // pred_check
          %p312 = pneg %p107
        $region22: #{autoencoder_forward.1} parent=11 // pred_check_branch
          %314 = sbr.rel (%p312) target = $region24
        $region23: #{autoencoder_forward.1} parent=11 // pred_region
          _
        $region24: #{autoencoder_forward.1} parent=11 // pred_fallthru
          _
        // Predicated region
        $region25: #{autoencoder_forward.1} parent=11 // pred_check
          %p315 = pneg %p128
        $region26: #{autoencoder_forward.1} parent=11 // pred_check_branch
          %317 = sbr.rel (%p315) target = $region28
        $region27: #{autoencoder_forward.1} parent=11 // pred_region
          _
        $region28: #{autoencoder_forward.1} parent=11 // pred_fallthru
          _
        // Predicated region
        $region29: #{autoencoder_forward.1} parent=11 // pred_check
          %p318 = pneg %p149
        $region30: #{autoencoder_forward.1} parent=11 // pred_check_branch
          %320 = sbr.rel (%p318) target = $region32
        $region31: #{autoencoder_forward.1} parent=11 // pred_region
          _
        $region32: #{autoencoder_forward.1} parent=11 // pred_fallthru
          _
        // Predicated region
        $region33: #{autoencoder_forward.1} parent=11 // pred_check
          %p321 = pneg %p170
        $region34: #{autoencoder_forward.1} parent=11 // pred_check_branch
          %323 = sbr.rel (%p321) target = $region36
        $region35: #{autoencoder_forward.1} parent=11 // pred_region
          _
        $region36: #{autoencoder_forward.1} parent=11 // pred_fallthru
          _
        // Predicated region
        $region37: #{autoencoder_forward.1} parent=11 // pred_check
          %p324 = pneg %p191
        $region38: #{autoencoder_forward.1} parent=11 // pred_check_branch
          %326 = sbr.rel (%p324) target = $region40
        $region39: #{autoencoder_forward.1} parent=11 // pred_region
          _
        $region40: #{autoencoder_forward.1} parent=11 // pred_fallthru
          _
        // Predicated region
        $region41: #{autoencoder_forward.1} parent=11 // pred_check
          %p327 = pneg %p212
        $region42: #{autoencoder_forward.1} parent=11 // pred_check_branch
          %329 = sbr.rel (%p327) target = $region44
        $region43: #{autoencoder_forward.1} parent=11 // pred_region
          _
        $region44: #{autoencoder_forward.1} parent=11 // pred_fallthru
          _
        // Predicated region
        $region45: #{autoencoder_forward.1} parent=11 // pred_check
          %p330 = pneg %p233
        $region46: #{autoencoder_forward.1} parent=11 // pred_check_branch
          %332 = sbr.rel (%p330) target = $region48
        $region47: #{autoencoder_forward.1} parent=11 // pred_region
          _
        $region48: #{autoencoder_forward.1} parent=11 // pred_fallthru
          _
        // Predicated region
        $region49: #{autoencoder_forward.1} parent=11 // pred_check
          %p333 = pneg %p254
        $region50: #{autoencoder_forward.1} parent=11 // pred_check_branch
          %335 = sbr.rel (%p333) target = $region52
        $region51: #{autoencoder_forward.1} parent=11 // pred_region
          _
        $region52: #{autoencoder_forward.1} parent=11 // pred_fallthru
          _
      $region12: #{autoencoder_forward.1} parent=5 // pred_fallthru
        _
      %p336 = scmp.lt.s32.totalorder %s18, 2
      // Predicated region
      $region53: #{autoencoder_forward.1} parent=5 // pred_check
        %p337 = pneg %p336
      $region54: #{autoencoder_forward.1} parent=5 // pred_check_branch
        %339 = sbr.rel (%p337) target = $region56
      $region55: #{autoencoder_forward.1} parent=5 // pred_region
        // Predicated region
        $region57: #{autoencoder_forward.1} parent=55 // pred_check
          %p340 = pneg %p38
        $region58: #{autoencoder_forward.1} parent=55 // pred_check_branch
          %342 = sbr.rel (%p340) target = $region60
        $region59: #{autoencoder_forward.1} parent=55 // pred_region
          %p343 = scmp.lt.s32.totalorder %s18, 1
          %s344 = scalar_select %p343, %s18, 1
          %s345 = smul.addr %s344, 4
          %s346 = smul.addr %s345, 8
          %s347 = scalar_lea.vmem %s0, %s346
        $region60: #{autoencoder_forward.1} parent=55 // pred_fallthru
          _
      $region56: #{autoencoder_forward.1} parent=5 // pred_fallthru
        _
      %p348 = scmp.le.s32.totalorder 1, %s18
      %p349 = scmp.lt.s32.totalorder %s18, 3
      %p350 = pnand %p348, %p349
      %p351 = pneg %p350
      // Predicated region
      $region61: #{autoencoder_forward.1} parent=5 // pred_check
        _
      $region62: #{autoencoder_forward.1} parent=5 // pred_check_branch
        %353 = sbr.rel (%p350) target = $region64
      $region63: #{autoencoder_forward.1} parent=5 // pred_region
        %s354 = ssub.s32 %s18, 1
        // Predicated region
        $region65: #{autoencoder_forward.1} parent=63 // pred_check
          %p355 = pneg %p65
        $region66: #{autoencoder_forward.1} parent=63 // pred_check_branch
          %357 = sbr.rel (%p355) target = $region68
        $region67: #{autoencoder_forward.1} parent=63 // pred_region
          %359 = dma.done [#allocation3], 10240
        $region68: #{autoencoder_forward.1} parent=63 // pred_fallthru
          _
        %p360 = scmp.lt.s32.totalorder %s23, 1
        %s361 = scalar_select %p360, %s23, 1
        %s362 = smul.addr %s361, 4
        %s363 = smul.addr %s362, 8
        %s364 = scalar_lea.vmem %s0, %s363
        %p365 = pneg %p44
        %p366 = pneg %p41
        %p367 = pneg %p65
        %p368 = pneg %p62
        %p369 = pneg %p86
        %p370 = pneg %p83
        %p371 = pneg %p107
        %p372 = pneg %p104
        %p373 = pneg %p128
        %p374 = pneg %p125
        %p375 = pneg %p149
        %p376 = pneg %p146
        %p377 = pneg %p170
        %p378 = pneg %p167
        %p379 = pneg %p191
        %p380 = pneg %p188
        %p381 = pneg %p212
        %p382 = pneg %p209
        %p383 = pneg %p233
        %p384 = pneg %p230
        %p385 = pneg %p254
        %p386 = pneg %p251
        %p387 = pneg %p280
        %p388 = pneg %p277
        %p389 = scmp.lt.s32.totalorder %s23, 1
        %s390 = scalar_select %p389, %s23, 1
        %s391 = smul.addr %s390, 2
        %s392 = smul.addr %s391, 8
        %s393 = scalar_lea.vmem %s11, %s392
        %p394 = scmp.lt.s32.totalorder %s23, 1
        %s395 = scalar_select %p394, %s23, 1
        %s396 = smul.addr %s395, 4
        %s397 = smul.addr %s396, 8
        %s398 = scalar_lea.vmem %s0, %s397
        %p399 = scmp.lt.s32.totalorder %s23, 1
        %s400 = scalar_select %p399, %s23, 1
        %s401 = smul.addr %s400, 2
        %s402 = smul.addr %s401, 8
        %s403 = scalar_lea.vmem %s11, %s402
        %v405 = vld [vmem:[%s398] sm:$0xff]
        %v406 = vld [vmem:[%s398 + $0x10] sm:$0xff]
        %v407 = vld [vmem:[%s398 + $0x8] sm:$0xff]
        %v408 = vld [vmem:[%s398 + $0x18] sm:$0xff]
        %v409 = vld [vmem:[%s398 + $0x1] sm:$0xff]
        %v410 = vld [vmem:[%s398 + $0x9] sm:$0xff]
        %v411 = vld [vmem:[%s398 + $0x11] sm:$0xff]
        %v412 = vpack.c.bf16 %v406, %v405
        %v413 = vpack.c.bf16 %v408, %v407
        %v414 = vpack.c.bf16 %v409, %v406
        %v415 = vpack.c.bf16 %v410, %v408
        %v416 = vpack.c.bf16 %v411, %v409
        %v417 = vld [vmem:[#allocation2] sm:$0xff]
        %v418 = vld [vmem:[#allocation2 + $0x8] sm:$0xff]
        %v419 = vld [vmem:[#allocation2 + $0x10] sm:$0xff]
        %v420 = vld [vmem:[#allocation2 + $0x18] sm:$0xff]
        %v421 = vld [vmem:[#allocation2 + $0x20] sm:$0xff]
        %v422 = vld [vmem:[#allocation2 + $0x28] sm:$0xff]
        %v423 = vld [vmem:[#allocation2 + $0x30] sm:$0xff]
        %v424 = vld [vmem:[#allocation2 + $0x38] sm:$0xff]
        %v425 = vld [vmem:[#allocation2 + $0x40] sm:$0xff]
        %v426 = vld [vmem:[#allocation2 + $0x48] sm:$0xff]
        %v427 = vld [vmem:[#allocation2 + $0x50] sm:$0xff]
        %v428 = vld [vmem:[#allocation2 + $0x58] sm:$0xff]
        %v429 = vld [vmem:[#allocation2 + $0x60] sm:$0xff]
        %v430 = vld [vmem:[#allocation2 + $0x68] sm:$0xff]
        %v431 = vld [vmem:[#allocation2 + $0x70] sm:$0xff]
        %v432 = vld [vmem:[#allocation2 + $0x78] sm:$0xff]
        %v433 = vld [vmem:[#allocation2 + $0x80] sm:$0xff]
        %v434 = vld [vmem:[#allocation2 + $0x88] sm:$0xff]
        %v435 = vld [vmem:[#allocation2 + $0x90] sm:$0xff]
        %v436 = vld [vmem:[#allocation2 + $0x98] sm:$0xff]
        %v437 = vld [vmem:[#allocation2 + $0xa0] sm:$0xff]
        %v438 = vld [vmem:[#allocation2 + $0xa8] sm:$0xff]
        %v439 = vld [vmem:[#allocation2 + $0xb0] sm:$0xff]
        %v440 = vld [vmem:[#allocation2 + $0xb8] sm:$0xff]
        %v441 = vld [vmem:[#allocation2 + $0xc0] sm:$0xff]
        %v442 = vld [vmem:[#allocation2 + $0xc8] sm:$0xff]
        %v443 = vld [vmem:[#allocation2 + $0xd0] sm:$0xff]
        %v444 = vld [vmem:[#allocation2 + $0xd8] sm:$0xff]
        %v445 = vld [vmem:[#allocation2 + $0xe0] sm:$0xff]
        %v446 = vld [vmem:[#allocation2 + $0xe8] sm:$0xff]
        %v447 = vld [vmem:[#allocation2 + $0xf0] sm:$0xff]
        %v448 = vld [vmem:[#allocation2 + $0xf8] sm:$0xff]
        %v449 = vld [vmem:[#allocation2 + $0x100] sm:$0xff]
        %v450 = vld [vmem:[#allocation2 + $0x108] sm:$0xff]
        %v451 = vld [vmem:[#allocation2 + $0x110] sm:$0xff]
        %v452 = vld [vmem:[#allocation2 + $0x118] sm:$0xff]
        %v453 = vld [vmem:[#allocation2 + $0x120] sm:$0xff]
        %v454 = vld [vmem:[#allocation2 + $0x128] sm:$0xff]
        %v455 = vld [vmem:[#allocation2 + $0x130] sm:$0xff]
        %v456 = vld [vmem:[#allocation2 + $0x138] sm:$0xff]
        %v457 = vld [vmem:[#allocation2 + $0x140] sm:$0xff]
        %v458 = vld [vmem:[#allocation2 + $0x148] sm:$0xff]
        %v459 = vld [vmem:[#allocation2 + $0x150] sm:$0xff]
        %v460 = vld [vmem:[#allocation2 + $0x158] sm:$0xff]
        %v461 = vld [vmem:[#allocation2 + $0x160] sm:$0xff]
        %v462 = vld [vmem:[#allocation2 + $0x168] sm:$0xff]
        %v463 = vld [vmem:[#allocation2 + $0x170] sm:$0xff]
        %v464 = vld [vmem:[#allocation2 + $0x178] sm:$0xff]
        %v465 = vld [vmem:[#allocation2 + $0x180] sm:$0xff]
        %v466 = vld [vmem:[#allocation2 + $0x188] sm:$0xff]
        %v467 = vld [vmem:[#allocation2 + $0x190] sm:$0xff]
        %v468 = vld [vmem:[#allocation2 + $0x198] sm:$0xff]
        %v469 = vld [vmem:[#allocation2 + $0x1a0] sm:$0xff]
        %v470 = vld [vmem:[#allocation2 + $0x1a8] sm:$0xff]
        %v471 = vld [vmem:[#allocation2 + $0x1b0] sm:$0xff]
        %v472 = vld [vmem:[#allocation2 + $0x1b8] sm:$0xff]
        %v473 = vld [vmem:[#allocation2 + $0x1c0] sm:$0xff]
        %v474 = vld [vmem:[#allocation2 + $0x1c8] sm:$0xff]
        %v475 = vld [vmem:[#allocation2 + $0x1d0] sm:$0xff]
        %v476 = vld [vmem:[#allocation2 + $0x1d8] sm:$0xff]
        %v477 = vld [vmem:[#allocation2 + $0x1e0] sm:$0xff]
        %v478 = vld [vmem:[#allocation2 + $0x1e8] sm:$0xff]
        %v479 = vld [vmem:[#allocation2 + $0x1f0] sm:$0xff]
        %v480 = vld [vmem:[#allocation2 + $0x1f8] sm:$0xff]
        %v481 = vld [vmem:[#allocation2 + $0x200] sm:$0xff]
        %v482 = vld [vmem:[#allocation2 + $0x208] sm:$0xff]
        %v483 = vld [vmem:[#allocation2 + $0x210] sm:$0xff]
        %v484 = vld [vmem:[#allocation2 + $0x218] sm:$0xff]
        %v485 = vld [vmem:[#allocation2 + $0x220] sm:$0xff]
        %v486 = vld [vmem:[#allocation2 + $0x228] sm:$0xff]
        %v487 = vld [vmem:[#allocation2 + $0x230] sm:$0xff]
        %v488 = vld [vmem:[#allocation2 + $0x238] sm:$0xff]
        %v489 = vld [vmem:[#allocation2 + $0x240] sm:$0xff]
        %v490 = vld [vmem:[#allocation2 + $0x248] sm:$0xff]
        %v491 = vld [vmem:[#allocation2 + $0x250] sm:$0xff]
        %v492 = vld [vmem:[#allocation2 + $0x258] sm:$0xff]
        %v493 = vld [vmem:[#allocation2 + $0x260] sm:$0xff]
        %v494 = vld [vmem:[#allocation2 + $0x268] sm:$0xff]
        %v495 = vld [vmem:[#allocation2 + $0x270] sm:$0xff]
        %v496 = vld [vmem:[#allocation2 + $0x278] sm:$0xff]
        %v497 = vld [vmem:[%s2] sm:$0x3]
        %v499 = vperm.slane %v497, 0
        %v500 = vperm.slane %v497, 1
        %v583 = vunpack.c.l.b16 %v417
        %v584 = vunpack.c.h.b16 %v417
        %v585 = vunpack.c.l.b16 %v418
        %v586 = vunpack.c.h.b16 %v418
        %v587 = vunpack.c.l.b16 %v419
        %v588 = vunpack.c.h.b16 %v419
        %v589 = vunpack.c.l.b16 %v420
        %v590 = vunpack.c.h.b16 %v420
        %v591 = vunpack.c.l.b16 %v421
        %v592 = vunpack.c.h.b16 %v421
        %v593 = vunpack.c.l.b16 %v422
        %v594 = vunpack.c.h.b16 %v422
        %v595 = vunpack.c.l.b16 %v423
        %v596 = vunpack.c.h.b16 %v423
        %v597 = vunpack.c.l.b16 %v424
        %v598 = vunpack.c.h.b16 %v424
        %v599 = vunpack.c.l.b16 %v425
        %v600 = vunpack.c.h.b16 %v425
        %v601 = vunpack.c.l.b16 %v426
        %v602 = vunpack.c.h.b16 %v426
        %v603 = vunpack.c.l.b16 %v427
        %v604 = vunpack.c.h.b16 %v427
        %v605 = vunpack.c.l.b16 %v428
        %v606 = vunpack.c.h.b16 %v428
        %v607 = vunpack.c.l.b16 %v429
        %v608 = vunpack.c.h.b16 %v429
        %v609 = vunpack.c.l.b16 %v430
        %v610 = vunpack.c.h.b16 %v430
        %v611 = vunpack.c.l.b16 %v431
        %v612 = vunpack.c.h.b16 %v431
        %v613 = vunpack.c.l.b16 %v432
        %v614 = vunpack.c.h.b16 %v432
        %v615 = vunpack.c.l.b16 %v433
        %v616 = vunpack.c.h.b16 %v433
        %v617 = vunpack.c.l.b16 %v434
        %v618 = vunpack.c.h.b16 %v434
        %v619 = vunpack.c.l.b16 %v435
        %v620 = vunpack.c.h.b16 %v435
        %v621 = vunpack.c.l.b16 %v436
        %v622 = vunpack.c.h.b16 %v436
        %v623 = vunpack.c.l.b16 %v437
        %v624 = vunpack.c.h.b16 %v437
        %v625 = vunpack.c.l.b16 %v438
        %v626 = vunpack.c.h.b16 %v438
        %v627 = vunpack.c.l.b16 %v439
        %v628 = vunpack.c.h.b16 %v439
        %v629 = vunpack.c.l.b16 %v440
        %v630 = vunpack.c.h.b16 %v440
        %v631 = vunpack.c.l.b16 %v441
        %v632 = vunpack.c.h.b16 %v441
        %v633 = vunpack.c.l.b16 %v442
        %v634 = vunpack.c.h.b16 %v442
        %v635 = vunpack.c.l.b16 %v443
        %v636 = vunpack.c.h.b16 %v443
        %v637 = vunpack.c.l.b16 %v444
        %v638 = vunpack.c.h.b16 %v444
        %v639 = vunpack.c.l.b16 %v445
        %v640 = vunpack.c.h.b16 %v445
        %v641 = vunpack.c.l.b16 %v446
        %v642 = vunpack.c.h.b16 %v446
        %v643 = vunpack.c.l.b16 %v447
        %v644 = vunpack.c.h.b16 %v447
        %v645 = vunpack.c.l.b16 %v448
        %v646 = vunpack.c.h.b16 %v448
        %v647 = vunpack.c.l.b16 %v449
        %v648 = vunpack.c.h.b16 %v449
        %v649 = vunpack.c.l.b16 %v450
        %v650 = vunpack.c.h.b16 %v450
        %v651 = vunpack.c.l.b16 %v451
        %v652 = vunpack.c.h.b16 %v451
        %v653 = vunpack.c.l.b16 %v452
        %v654 = vunpack.c.h.b16 %v452
        %v655 = vunpack.c.l.b16 %v453
        %v656 = vunpack.c.h.b16 %v453
        %v657 = vunpack.c.l.b16 %v454
        %v658 = vunpack.c.h.b16 %v454
        %v659 = vunpack.c.l.b16 %v455
        %v660 = vunpack.c.h.b16 %v455
        %v661 = vunpack.c.l.b16 %v456
        %v662 = vunpack.c.h.b16 %v456
        %v663 = vunpack.c.l.b16 %v457
        %v664 = vunpack.c.h.b16 %v457
        %v665 = vunpack.c.l.b16 %v458
        %v666 = vunpack.c.h.b16 %v458
        %v667 = vunpack.c.l.b16 %v459
        %v668 = vunpack.c.h.b16 %v459
        %v669 = vunpack.c.l.b16 %v460
        %v670 = vunpack.c.h.b16 %v460
        %v671 = vunpack.c.l.b16 %v461
        %v672 = vunpack.c.h.b16 %v461
        %v673 = vunpack.c.l.b16 %v462
        %v674 = vunpack.c.h.b16 %v462
        %v675 = vunpack.c.l.b16 %v463
        %v676 = vunpack.c.h.b16 %v463
        %v677 = vunpack.c.l.b16 %v464
        %v678 = vunpack.c.h.b16 %v464
        %v679 = vunpack.c.l.b16 %v465
        %v680 = vunpack.c.h.b16 %v465
        %v681 = vunpack.c.l.b16 %v466
        %v682 = vunpack.c.h.b16 %v466
        %v683 = vunpack.c.l.b16 %v467
        %v684 = vunpack.c.h.b16 %v467
        %v685 = vunpack.c.l.b16 %v468
        %v686 = vunpack.c.h.b16 %v468
        %v687 = vunpack.c.l.b16 %v469
        %v688 = vunpack.c.h.b16 %v469
        %v689 = vunpack.c.l.b16 %v470
        %v690 = vunpack.c.h.b16 %v470
        %v691 = vunpack.c.l.b16 %v471
        %v692 = vunpack.c.h.b16 %v471
        %v693 = vunpack.c.l.b16 %v472
        %v694 = vunpack.c.h.b16 %v472
        %v695 = vunpack.c.l.b16 %v473
        %v696 = vunpack.c.h.b16 %v473
        %v697 = vunpack.c.l.b16 %v474
        %v698 = vunpack.c.h.b16 %v474
        %v699 = vunpack.c.l.b16 %v475
        %v700 = vunpack.c.h.b16 %v475
        %v701 = vunpack.c.l.b16 %v476
        %v702 = vunpack.c.h.b16 %v476
        %v703 = vunpack.c.l.b16 %v477
        %v704 = vunpack.c.h.b16 %v477
        %v705 = vunpack.c.l.b16 %v478
        %v706 = vunpack.c.h.b16 %v478
        %v707 = vunpack.c.l.b16 %v479
        %v708 = vunpack.c.h.b16 %v479
        %v709 = vunpack.c.l.b16 %v480
        %v710 = vunpack.c.h.b16 %v480
        %v711 = vunpack.c.l.b16 %v481
        %v712 = vunpack.c.h.b16 %v481
        %v713 = vunpack.c.l.b16 %v482
        %v714 = vunpack.c.h.b16 %v482
        %v715 = vunpack.c.l.b16 %v483
        %v716 = vunpack.c.h.b16 %v483
        %v717 = vunpack.c.l.b16 %v484
        %v718 = vunpack.c.h.b16 %v484
        %v719 = vunpack.c.l.b16 %v485
        %v720 = vunpack.c.h.b16 %v485
        %v721 = vunpack.c.l.b16 %v486
        %v722 = vunpack.c.h.b16 %v486
        %v723 = vunpack.c.l.b16 %v487
        %v724 = vunpack.c.h.b16 %v487
        %v725 = vunpack.c.l.b16 %v488
        %v726 = vunpack.c.h.b16 %v488
        %v727 = vunpack.c.l.b16 %v489
        %v728 = vunpack.c.h.b16 %v489
        %v729 = vunpack.c.l.b16 %v490
        %v730 = vunpack.c.h.b16 %v490
        %v731 = vunpack.c.l.b16 %v491
        %v732 = vunpack.c.h.b16 %v491
        %v733 = vunpack.c.l.b16 %v492
        %v734 = vunpack.c.h.b16 %v492
        %v735 = vunpack.c.l.b16 %v493
        %v736 = vunpack.c.h.b16 %v493
        %v737 = vunpack.c.l.b16 %v494
        %v738 = vunpack.c.h.b16 %v494
        %v739 = vunpack.c.l.b16 %v495
        %v740 = vunpack.c.h.b16 %v495
        %v741 = vunpack.c.l.b16 %v496
        %v742 = vunpack.c.h.b16 %v496
        %v743 = vpack.c.b16 %v585, %v583
        %v744 = vpack.c.b16 %v586, %v584
        %v745 = vpack.c.b16 %v589, %v587
        %v746 = vpack.c.b16 %v590, %v588
        %v747 = vpack.c.b16 %v593, %v591
        %v748 = vpack.c.b16 %v594, %v592
        %v749 = vpack.c.b16 %v597, %v595
        %v750 = vpack.c.b16 %v598, %v596
        %v751 = vpack.c.b16 %v601, %v599
        %v752 = vpack.c.b16 %v602, %v600
        %v753 = vpack.c.b16 %v605, %v603
        %v754 = vpack.c.b16 %v606, %v604
        %v755 = vpack.c.b16 %v609, %v607
        %v756 = vpack.c.b16 %v610, %v608
        %v757 = vpack.c.b16 %v613, %v611
        %v758 = vpack.c.b16 %v614, %v612
        %v759 = vpack.c.b16 %v617, %v615
        %v760 = vpack.c.b16 %v618, %v616
        %v761 = vpack.c.b16 %v621, %v619
        %v762 = vpack.c.b16 %v622, %v620
        %v763 = vpack.c.b16 %v625, %v623
        %v764 = vpack.c.b16 %v626, %v624
        %v765 = vpack.c.b16 %v629, %v627
        %v766 = vpack.c.b16 %v630, %v628
        %v767 = vpack.c.b16 %v633, %v631
        %v768 = vpack.c.b16 %v634, %v632
        %v769 = vpack.c.b16 %v637, %v635
        %v770 = vpack.c.b16 %v638, %v636
        %v771 = vpack.c.b16 %v641, %v639
        %v772 = vpack.c.b16 %v642, %v640
        %v773 = vpack.c.b16 %v645, %v643
        %v774 = vpack.c.b16 %v646, %v644
        %v775 = vpack.c.b16 %v649, %v647
        %v776 = vpack.c.b16 %v650, %v648
        %v777 = vpack.c.b16 %v653, %v651
        %v778 = vpack.c.b16 %v654, %v652
        %v779 = vpack.c.b16 %v657, %v655
        %v780 = vpack.c.b16 %v658, %v656
        %v781 = vpack.c.b16 %v661, %v659
        %v782 = vpack.c.b16 %v662, %v660
        %v783 = vpack.c.b16 %v665, %v663
        %v784 = vpack.c.b16 %v666, %v664
        %v785 = vpack.c.b16 %v669, %v667
        %v786 = vpack.c.b16 %v670, %v668
        %v787 = vpack.c.b16 %v673, %v671
        %v788 = vpack.c.b16 %v674, %v672
        %v789 = vpack.c.b16 %v677, %v675
        %v790 = vpack.c.b16 %v678, %v676
        %v791 = vpack.c.b16 %v681, %v679
        %v792 = vpack.c.b16 %v682, %v680
        %v793 = vpack.c.b16 %v685, %v683
        %v794 = vpack.c.b16 %v686, %v684
        %v795 = vpack.c.b16 %v689, %v687
        %v796 = vpack.c.b16 %v690, %v688
        %v797 = vpack.c.b16 %v693, %v691
        %v798 = vpack.c.b16 %v694, %v692
        %v799 = vpack.c.b16 %v697, %v695
        %v800 = vpack.c.b16 %v698, %v696
        %v801 = vpack.c.b16 %v701, %v699
        %v802 = vpack.c.b16 %v702, %v700
        %v803 = vpack.c.b16 %v705, %v703
        %v804 = vpack.c.b16 %v706, %v704
        %v805 = vpack.c.b16 %v709, %v707
        %v806 = vpack.c.b16 %v710, %v708
        %v807 = vpack.c.b16 %v713, %v711
        %v808 = vpack.c.b16 %v714, %v712
        %v809 = vpack.c.b16 %v717, %v715
        %v810 = vpack.c.b16 %v718, %v716
        %v811 = vpack.c.b16 %v721, %v719
        %v812 = vpack.c.b16 %v722, %v720
        %v813 = vpack.c.b16 %v725, %v723
        %v814 = vpack.c.b16 %v726, %v724
        %v815 = vpack.c.b16 %v729, %v727
        %v816 = vpack.c.b16 %v730, %v728
        %v817 = vpack.c.b16 %v733, %v731
        %v818 = vpack.c.b16 %v734, %v732
        %v819 = vpack.c.b16 %v737, %v735
        %v820 = vpack.c.b16 %v738, %v736
        %v821 = vpack.c.b16 %v741, %v739
        %v822 = vpack.c.b16 %v742, %v740
        %903 = vmatpush.bf16.msra.mxu0 %v757
        %904 = vmatpush.bf16.msra.mxu0 %v755
        %905 = vmatpush.bf16.msra.mxu0 %v753
        %906 = vmatpush.bf16.msra.mxu0 %v751
        %907 = vmatpush.bf16.msra.mxu0 %v749
        %908 = vmatpush.bf16.msra.mxu0 %v747
        %909 = vmatpush.bf16.msra.mxu0 %v745
        %910 = vmatpush.bf16.msra.mxu0 %v743
        %911 = vmatmul.bf16.gmra.mxu0 %v412
        %v912 = vpop.f32.mrf.mxu0
        %v913 = vadd.f32 %v499, %v912
        %v914 = vpop.f32.mrf.mxu0
        %v915 = vadd.f32 %v499, %v914
        %916 = vdwg.mxu0
        %917 = vmatpush.bf16.msra.mxu0 %v773
        %918 = vmatpush.bf16.msra.mxu0 %v771
        %919 = vmatpush.bf16.msra.mxu0 %v769
        %920 = vmatpush.bf16.msra.mxu0 %v767
        %921 = vmatpush.bf16.msra.mxu0 %v765
        %922 = vmatpush.bf16.msra.mxu0 %v763
        %923 = vmatpush.bf16.msra.mxu0 %v761
        %924 = vmatpush.bf16.msra.mxu0 %v759
        %925 = vmatmul.bf16.gmra.mxu0 %v413
        %v926 = vpop.f32.mrf.mxu0
        %v927 = vadd.f32 %v913, %v926
        %v928 = vpop.f32.mrf.mxu0
        %v929 = vadd.f32 %v915, %v928
        %930 = vdwg.mxu0
        %931 = vmatpush.bf16.msra.mxu0 %v789
        %932 = vmatpush.bf16.msra.mxu0 %v787
        %933 = vmatpush.bf16.msra.mxu0 %v785
        %934 = vmatpush.bf16.msra.mxu0 %v783
        %935 = vmatpush.bf16.msra.mxu0 %v781
        %936 = vmatpush.bf16.msra.mxu0 %v779
        %937 = vmatpush.bf16.msra.mxu0 %v777
        %938 = vmatpush.bf16.msra.mxu0 %v775
        %939 = vmatmul.bf16.gmra.mxu0 %v414
        %v940 = vpop.f32.mrf.mxu0
        %v941 = vadd.f32 %v927, %v940
        %v942 = vpop.f32.mrf.mxu0
        %v943 = vadd.f32 %v929, %v942
        %944 = vdwg.mxu0
        %945 = vmatpush.bf16.msra.mxu0 %v805
        %946 = vmatpush.bf16.msra.mxu0 %v803
        %947 = vmatpush.bf16.msra.mxu0 %v801
        %948 = vmatpush.bf16.msra.mxu0 %v799
        %949 = vmatpush.bf16.msra.mxu0 %v797
        %950 = vmatpush.bf16.msra.mxu0 %v795
        %951 = vmatpush.bf16.msra.mxu0 %v793
        %952 = vmatpush.bf16.msra.mxu0 %v791
        %953 = vmatmul.bf16.gmra.mxu0 %v415
        %v954 = vpop.f32.mrf.mxu0
        %v955 = vadd.f32 %v941, %v954
        %v956 = vpop.f32.mrf.mxu0
        %v957 = vadd.f32 %v943, %v956
        %958 = vdwg.mxu0
        %959 = vmatpush.bf16.msra.mxu0 %v821
        %960 = vmatpush.bf16.msra.mxu0 %v819
        %961 = vmatpush.bf16.msra.mxu0 %v817
        %962 = vmatpush.bf16.msra.mxu0 %v815
        %963 = vmatpush.bf16.msra.mxu0 %v813
        %964 = vmatpush.bf16.msra.mxu0 %v811
        %965 = vmatpush.bf16.msra.mxu0 %v809
        %966 = vmatpush.bf16.msra.mxu0 %v807
        %967 = vmatmul.bf16.gmra.mxu0 %v416
        %v968 = vpop.f32.mrf.mxu0
        %v969 = vadd.f32 %v955, %v968
        %v970 = vpop.f32.mrf.mxu0
        %v971 = vadd.f32 %v957, %v970
        %972 = vdwg.mxu0
        %973 = vmatpush.bf16.msra.mxu0 %v758
        %974 = vmatpush.bf16.msra.mxu0 %v756
        %975 = vmatpush.bf16.msra.mxu0 %v754
        %976 = vmatpush.bf16.msra.mxu0 %v752
        %977 = vmatpush.bf16.msra.mxu0 %v750
        %978 = vmatpush.bf16.msra.mxu0 %v748
        %979 = vmatpush.bf16.msra.mxu0 %v746
        %980 = vmatpush.bf16.msra.mxu0 %v744
        %981 = vmatmul.bf16.gmra.mxu0 %v412
        %v982 = vpop.f32.mrf.mxu0
        %v983 = vadd.f32 %v500, %v982
        %v984 = vpop.f32.mrf.mxu0
        %v985 = vadd.f32 %v500, %v984
        %986 = vdwg.mxu0
        %987 = vmatpush.bf16.msra.mxu0 %v774
        %988 = vmatpush.bf16.msra.mxu0 %v772
        %989 = vmatpush.bf16.msra.mxu0 %v770
        %990 = vmatpush.bf16.msra.mxu0 %v768
        %991 = vmatpush.bf16.msra.mxu0 %v766
        %992 = vmatpush.bf16.msra.mxu0 %v764
        %993 = vmatpush.bf16.msra.mxu0 %v762
        %994 = vmatpush.bf16.msra.mxu0 %v760
        %995 = vmatmul.bf16.gmra.mxu0 %v413
        %v996 = vpop.f32.mrf.mxu0
        %v997 = vadd.f32 %v983, %v996
        %v998 = vpop.f32.mrf.mxu0
        %v999 = vadd.f32 %v985, %v998
        %1000 = vdwg.mxu0
        %1001 = vmatpush.bf16.msra.mxu0 %v790
        %1002 = vmatpush.bf16.msra.mxu0 %v788
        %1003 = vmatpush.bf16.msra.mxu0 %v786
        %1004 = vmatpush.bf16.msra.mxu0 %v784
        %1005 = vmatpush.bf16.msra.mxu0 %v782
        %1006 = vmatpush.bf16.msra.mxu0 %v780
        %1007 = vmatpush.bf16.msra.mxu0 %v778
        %1008 = vmatpush.bf16.msra.mxu0 %v776
        %1009 = vmatmul.bf16.gmra.mxu0 %v414
        %v1010 = vpop.f32.mrf.mxu0
        %v1011 = vadd.f32 %v997, %v1010
        %v1012 = vpop.f32.mrf.mxu0
        %v1013 = vadd.f32 %v999, %v1012
        %1014 = vdwg.mxu0
        %1015 = vmatpush.bf16.msra.mxu0 %v806
        %1016 = vmatpush.bf16.msra.mxu0 %v804
        %1017 = vmatpush.bf16.msra.mxu0 %v802
        %1018 = vmatpush.bf16.msra.mxu0 %v800
        %1019 = vmatpush.bf16.msra.mxu0 %v798
        %1020 = vmatpush.bf16.msra.mxu0 %v796
        %1021 = vmatpush.bf16.msra.mxu0 %v794
        %1022 = vmatpush.bf16.msra.mxu0 %v792
        %1023 = vmatmul.bf16.gmra.mxu0 %v415
        %v1024 = vpop.f32.mrf.mxu0
        %v1025 = vadd.f32 %v1011, %v1024
        %v1026 = vpop.f32.mrf.mxu0
        %v1027 = vadd.f32 %v1013, %v1026
        %1028 = vdwg.mxu0
        %1029 = vmatpush.bf16.msra.mxu0 %v822
        %1030 = vmatpush.bf16.msra.mxu0 %v820
        %1031 = vmatpush.bf16.msra.mxu0 %v818
        %1032 = vmatpush.bf16.msra.mxu0 %v816
        %1033 = vmatpush.bf16.msra.mxu0 %v814
        %1034 = vmatpush.bf16.msra.mxu0 %v812
        %1035 = vmatpush.bf16.msra.mxu0 %v810
        %1036 = vmatpush.bf16.msra.mxu0 %v808
        %1037 = vmatmul.bf16.gmra.mxu0 %v416
        %v1038 = vpop.f32.mrf.mxu0
        %v1039 = vadd.f32 %v1025, %v1038
        %v1040 = vpop.f32.mrf.mxu0
        %v1041 = vadd.f32 %v1027, %v1040
        %1042 = vdwg.mxu0
        %v1043 = vmax.f32 %v969, 0.0
        %v1044 = vmax.f32 %v1039, 0.0
        %v1045 = vmax.f32 %v971, 0.0
        %v1046 = vmax.f32 %v1041, 0.0
        %v1049 = vrot.slane %v1043, 1
        %v1050 = vrot.slane %v1044, 1
        %v1055 = vrot.slane %v1045, 1
        %v1056 = vrot.slane %v1046, 1
        %v1059 = vrot.slane %v1043, 2
        %v1060 = vrot.slane %v1044, 2
        %v1063 = vpack.c.bf16 %v1043, %v1043
        %v1064 = vpack.c.bf16 %v1044, %v1044
        %v1065 = vpack.c.bf16 %v1045, %v1045
        %v1066 = vpack.c.bf16 %v1046, %v1046
        %v1067 = vpack.c.bf16 %v1049, %v1049
        %v1068 = vpack.c.bf16 %v1050, %v1050
        %v1069 = vpack.c.bf16 %v1055, %v1055
        %v1070 = vpack.c.bf16 %v1056, %v1056
        %v1071 = vpack.c.bf16 %v1059, %v1059
        %v1072 = vpack.c.bf16 %v1060, %v1060
        %v1073 = vld [vmem:[%s3] sm:$0xff]
        %v1074 = vld [vmem:[%s3 + $0x8] sm:$0xff]
        %v1075 = vld [vmem:[%s3 + $0x10] sm:$0xff]
        %v1076 = vld [vmem:[%s3 + $0x18] sm:$0xff]
        %v1077 = vld [vmem:[%s3 + $0x20] sm:$0xff]
        %v1078 = vld [vmem:[%s3 + $0x28] sm:$0xff]
        %v1079 = vld [vmem:[%s3 + $0x30] sm:$0xff]
        %v1080 = vld [vmem:[%s3 + $0x38] sm:$0xff]
        %v1081 = vld [vmem:[%s3 + $0x40] sm:$0xff]
        %v1082 = vld [vmem:[%s3 + $0x48] sm:$0xff]
        %v1083 = vld [vmem:[%s3 + $0x50] sm:$0xff]
        %v1084 = vld [vmem:[%s3 + $0x58] sm:$0xff]
        %v1085 = vld [vmem:[%s3 + $0x60] sm:$0xff]
        %v1086 = vld [vmem:[%s3 + $0x68] sm:$0xff]
        %v1087 = vld [vmem:[%s3 + $0x70] sm:$0xff]
        %v1088 = vld [vmem:[%s3 + $0x78] sm:$0xff]
        %v1089 = vld [vmem:[%s3 + $0x80] sm:$0xff]
        %v1090 = vld [vmem:[%s3 + $0x88] sm:$0xff]
        %v1091 = vld [vmem:[%s3 + $0x90] sm:$0xff]
        %v1092 = vld [vmem:[%s3 + $0x98] sm:$0xff]
        %v1093 = vld [vmem:[%s3 + $0xa0] sm:$0xff]
        %v1094 = vld [vmem:[%s3 + $0xa8] sm:$0xff]
        %v1095 = vld [vmem:[%s3 + $0xb0] sm:$0xff]
        %v1096 = vld [vmem:[%s3 + $0xb8] sm:$0xff]
        %v1097 = vld [vmem:[%s3 + $0xc0] sm:$0xff]
        %v1098 = vld [vmem:[%s3 + $0xc8] sm:$0xff]
        %v1099 = vld [vmem:[%s3 + $0xd0] sm:$0xff]
        %v1100 = vld [vmem:[%s3 + $0xd8] sm:$0xff]
        %v1101 = vld [vmem:[%s3 + $0xe0] sm:$0xff]
        %v1102 = vld [vmem:[%s3 + $0xe8] sm:$0xff]
        %v1103 = vld [vmem:[%s3 + $0xf0] sm:$0xff]
        %v1104 = vld [vmem:[%s3 + $0xf8] sm:$0xff]
        %v1105 = vld [vmem:[%s3 + $0x100] sm:$0xff]
        %v1106 = vld [vmem:[%s3 + $0x108] sm:$0xff]
        %v1107 = vld [vmem:[%s3 + $0x110] sm:$0xff]
        %v1108 = vld [vmem:[%s3 + $0x118] sm:$0xff]
        %v1109 = vld [vmem:[%s3 + $0x120] sm:$0xff]
        %v1110 = vld [vmem:[%s3 + $0x128] sm:$0xff]
        %v1111 = vld [vmem:[%s3 + $0x130] sm:$0xff]
        %v1112 = vld [vmem:[%s3 + $0x138] sm:$0xff]
        %v1113 = vld [vmem:[%s3 + $0x140] sm:$0xff]
        %v1114 = vld [vmem:[%s3 + $0x148] sm:$0xff]
        %v1115 = vld [vmem:[%s3 + $0x150] sm:$0xff]
        %v1116 = vld [vmem:[%s3 + $0x158] sm:$0xff]
        %v1117 = vld [vmem:[%s3 + $0x160] sm:$0xff]
        %v1118 = vld [vmem:[%s3 + $0x168] sm:$0xff]
        %v1119 = vld [vmem:[%s3 + $0x170] sm:$0xff]
        %v1120 = vld [vmem:[%s3 + $0x178] sm:$0xff]
        %v1121 = vld [vmem:[%s3 + $0x180] sm:$0xff]
        %v1122 = vld [vmem:[%s3 + $0x188] sm:$0xff]
        %v1123 = vld [vmem:[%s3 + $0x190] sm:$0xff]
        %v1124 = vld [vmem:[%s3 + $0x198] sm:$0xff]
        %v1125 = vld [vmem:[%s3 + $0x1a0] sm:$0xff]
        %v1126 = vld [vmem:[%s3 + $0x1a8] sm:$0xff]
        %v1127 = vld [vmem:[%s3 + $0x1b0] sm:$0xff]
        %v1128 = vld [vmem:[%s3 + $0x1b8] sm:$0xff]
        %v1129 = vld [vmem:[%s3 + $0x1c0] sm:$0xff]
        %v1130 = vld [vmem:[%s3 + $0x1c8] sm:$0xff]
        %v1131 = vld [vmem:[%s3 + $0x1d0] sm:$0xff]
        %v1132 = vld [vmem:[%s3 + $0x1d8] sm:$0xff]
        %v1133 = vld [vmem:[%s3 + $0x1e0] sm:$0xff]
        %v1134 = vld [vmem:[%s3 + $0x1e8] sm:$0xff]
        %v1135 = vld [vmem:[%s3 + $0x1f0] sm:$0xff]
        %v1136 = vld [vmem:[%s3 + $0x1f8] sm:$0xff]
        %v1137 = vld [vmem:[%s3 + $0x200] sm:$0xff]
        %v1138 = vld [vmem:[%s3 + $0x208] sm:$0xff]
        %v1139 = vld [vmem:[%s3 + $0x210] sm:$0xff]
        %v1140 = vld [vmem:[%s3 + $0x218] sm:$0xff]
        %v1141 = vld [vmem:[%s3 + $0x220] sm:$0xff]
        %v1142 = vld [vmem:[%s3 + $0x228] sm:$0xff]
        %v1143 = vld [vmem:[%s3 + $0x230] sm:$0xff]
        %v1144 = vld [vmem:[%s3 + $0x238] sm:$0xff]
        %v1145 = vld [vmem:[%s3 + $0x240] sm:$0xff]
        %v1146 = vld [vmem:[%s3 + $0x248] sm:$0xff]
        %v1147 = vld [vmem:[%s3 + $0x250] sm:$0xff]
        %v1148 = vld [vmem:[%s3 + $0x258] sm:$0xff]
        %v1149 = vld [vmem:[%s3 + $0x260] sm:$0xff]
        %v1150 = vld [vmem:[%s3 + $0x268] sm:$0xff]
        %v1151 = vld [vmem:[%s3 + $0x270] sm:$0xff]
        %v1152 = vld [vmem:[%s3 + $0x278] sm:$0xff]
        %v1153 = vld [vmem:[%s3 + $0x280] sm:$0xff]
        %v1154 = vld [vmem:[%s3 + $0x288] sm:$0xff]
        %v1155 = vld [vmem:[%s3 + $0x290] sm:$0xff]
        %v1156 = vld [vmem:[%s3 + $0x298] sm:$0xff]
        %v1157 = vld [vmem:[%s3 + $0x2a0] sm:$0xff]
        %v1158 = vld [vmem:[%s3 + $0x2a8] sm:$0xff]
        %v1159 = vld [vmem:[%s3 + $0x2b0] sm:$0xff]
        %v1160 = vld [vmem:[%s3 + $0x2b8] sm:$0xff]
        %v1161 = vld [vmem:[%s3 + $0x2c0] sm:$0xff]
        %v1162 = vld [vmem:[%s3 + $0x2c8] sm:$0xff]
        %v1163 = vld [vmem:[%s3 + $0x2d0] sm:$0xff]
        %v1164 = vld [vmem:[%s3 + $0x2d8] sm:$0xff]
        %v1165 = vld [vmem:[%s3 + $0x2e0] sm:$0xff]
        %v1166 = vld [vmem:[%s3 + $0x2e8] sm:$0xff]
        %v1167 = vld [vmem:[%s3 + $0x2f0] sm:$0xff]
        %v1168 = vld [vmem:[%s3 + $0x2f8] sm:$0xff]
        %v1169 = vld [vmem:[%s3 + $0x300] sm:$0xff]
        %v1170 = vld [vmem:[%s3 + $0x308] sm:$0xff]
        %v1171 = vld [vmem:[%s3 + $0x310] sm:$0xff]
        %v1172 = vld [vmem:[%s3 + $0x318] sm:$0xff]
        %v1173 = vld [vmem:[%s3 + $0x320] sm:$0xff]
        %v1174 = vld [vmem:[%s3 + $0x328] sm:$0xff]
        %v1175 = vld [vmem:[%s3 + $0x330] sm:$0xff]
        %v1176 = vld [vmem:[%s3 + $0x338] sm:$0xff]
        %v1177 = vld [vmem:[%s3 + $0x340] sm:$0xff]
        %v1178 = vld [vmem:[%s3 + $0x348] sm:$0xff]
        %v1179 = vld [vmem:[%s3 + $0x350] sm:$0xff]
        %v1180 = vld [vmem:[%s3 + $0x358] sm:$0xff]
        %v1181 = vld [vmem:[%s3 + $0x360] sm:$0xff]
        %v1182 = vld [vmem:[%s3 + $0x368] sm:$0xff]
        %v1183 = vld [vmem:[%s3 + $0x370] sm:$0xff]
        %v1184 = vld [vmem:[%s3 + $0x378] sm:$0xff]
        %v1185 = vld [vmem:[%s3 + $0x380] sm:$0xff]
        %v1186 = vld [vmem:[%s3 + $0x388] sm:$0xff]
        %v1187 = vld [vmem:[%s3 + $0x390] sm:$0xff]
        %v1188 = vld [vmem:[%s3 + $0x398] sm:$0xff]
        %v1189 = vld [vmem:[%s3 + $0x3a0] sm:$0xff]
        %v1190 = vld [vmem:[%s3 + $0x3a8] sm:$0xff]
        %v1191 = vld [vmem:[%s3 + $0x3b0] sm:$0xff]
        %v1192 = vld [vmem:[%s3 + $0x3b8] sm:$0xff]
        %v1193 = vld [vmem:[%s3 + $0x3c0] sm:$0xff]
        %v1194 = vld [vmem:[%s3 + $0x3c8] sm:$0xff]
        %v1195 = vld [vmem:[%s3 + $0x3d0] sm:$0xff]
        %v1196 = vld [vmem:[%s3 + $0x3d8] sm:$0xff]
        %v1197 = vld [vmem:[%s3 + $0x3e0] sm:$0xff]
        %v1198 = vld [vmem:[%s3 + $0x3e8] sm:$0xff]
        %v1199 = vld [vmem:[%s3 + $0x3f0] sm:$0xff]
        %v1200 = vld [vmem:[%s3 + $0x3f8] sm:$0xff]
        %v1201 = vld [vmem:[%s3 + $0x400] sm:$0xff]
        %v1202 = vld [vmem:[%s3 + $0x408] sm:$0xff]
        %v1203 = vld [vmem:[%s3 + $0x410] sm:$0xff]
        %v1204 = vld [vmem:[%s3 + $0x418] sm:$0xff]
        %v1205 = vld [vmem:[%s3 + $0x420] sm:$0xff]
        %v1206 = vld [vmem:[%s3 + $0x428] sm:$0xff]
        %v1207 = vld [vmem:[%s3 + $0x430] sm:$0xff]
        %v1208 = vld [vmem:[%s3 + $0x438] sm:$0xff]
        %v1209 = vld [vmem:[%s3 + $0x440] sm:$0xff]
        %v1210 = vld [vmem:[%s3 + $0x448] sm:$0xff]
        %v1211 = vld [vmem:[%s3 + $0x450] sm:$0xff]
        %v1212 = vld [vmem:[%s3 + $0x458] sm:$0xff]
        %v1213 = vld [vmem:[%s3 + $0x460] sm:$0xff]
        %v1214 = vld [vmem:[%s3 + $0x468] sm:$0xff]
        %v1215 = vld [vmem:[%s3 + $0x470] sm:$0xff]
        %v1216 = vld [vmem:[%s3 + $0x478] sm:$0xff]
        %v1217 = vld [vmem:[%s3 + $0x480] sm:$0xff]
        %v1218 = vld [vmem:[%s3 + $0x488] sm:$0xff]
        %v1219 = vld [vmem:[%s3 + $0x490] sm:$0xff]
        %v1220 = vld [vmem:[%s3 + $0x498] sm:$0xff]
        %v1221 = vld [vmem:[%s3 + $0x4a0] sm:$0xff]
        %v1222 = vld [vmem:[%s3 + $0x4a8] sm:$0xff]
        %v1223 = vld [vmem:[%s3 + $0x4b0] sm:$0xff]
        %v1224 = vld [vmem:[%s3 + $0x4b8] sm:$0xff]
        %v1225 = vld [vmem:[%s3 + $0x4c0] sm:$0xff]
        %v1226 = vld [vmem:[%s3 + $0x4c8] sm:$0xff]
        %v1227 = vld [vmem:[%s3 + $0x4d0] sm:$0xff]
        %v1228 = vld [vmem:[%s3 + $0x4d8] sm:$0xff]
        %v1229 = vld [vmem:[%s3 + $0x4e0] sm:$0xff]
        %v1230 = vld [vmem:[%s3 + $0x4e8] sm:$0xff]
        %v1231 = vld [vmem:[%s3 + $0x4f0] sm:$0xff]
        %v1232 = vld [vmem:[%s3 + $0x4f8] sm:$0xff]
        %v1233 = vld [vmem:[%s4] sm:$0x3]
        %v1235 = vperm.slane %v1233, 0
        %v1236 = vperm.slane %v1233, 1
        %v1399 = vunpack.c.l.b16 %v1073
        %v1400 = vunpack.c.h.b16 %v1073
        %v1401 = vunpack.c.l.b16 %v1074
        %v1402 = vunpack.c.h.b16 %v1074
        %v1403 = vunpack.c.l.b16 %v1075
        %v1404 = vunpack.c.h.b16 %v1075
        %v1405 = vunpack.c.l.b16 %v1076
        %v1406 = vunpack.c.h.b16 %v1076
        %v1407 = vunpack.c.l.b16 %v1077
        %v1408 = vunpack.c.h.b16 %v1077
        %v1409 = vunpack.c.l.b16 %v1078
        %v1410 = vunpack.c.h.b16 %v1078
        %v1411 = vunpack.c.l.b16 %v1079
        %v1412 = vunpack.c.h.b16 %v1079
        %v1413 = vunpack.c.l.b16 %v1080
        %v1414 = vunpack.c.h.b16 %v1080
        %v1415 = vunpack.c.l.b16 %v1081
        %v1416 = vunpack.c.h.b16 %v1081
        %v1417 = vunpack.c.l.b16 %v1082
        %v1418 = vunpack.c.h.b16 %v1082
        %v1419 = vunpack.c.l.b16 %v1083
        %v1420 = vunpack.c.h.b16 %v1083
        %v1421 = vunpack.c.l.b16 %v1084
        %v1422 = vunpack.c.h.b16 %v1084
        %v1423 = vunpack.c.l.b16 %v1085
        %v1424 = vunpack.c.h.b16 %v1085
        %v1425 = vunpack.c.l.b16 %v1086
        %v1426 = vunpack.c.h.b16 %v1086
        %v1427 = vunpack.c.l.b16 %v1087
        %v1428 = vunpack.c.h.b16 %v1087
        %v1429 = vunpack.c.l.b16 %v1088
        %v1430 = vunpack.c.h.b16 %v1088
        %v1431 = vunpack.c.l.b16 %v1089
        %v1432 = vunpack.c.h.b16 %v1089
        %v1433 = vunpack.c.l.b16 %v1090
        %v1434 = vunpack.c.h.b16 %v1090
        %v1435 = vunpack.c.l.b16 %v1091
        %v1436 = vunpack.c.h.b16 %v1091
        %v1437 = vunpack.c.l.b16 %v1092
        %v1438 = vunpack.c.h.b16 %v1092
        %v1439 = vunpack.c.l.b16 %v1093
        %v1440 = vunpack.c.h.b16 %v1093
        %v1441 = vunpack.c.l.b16 %v1094
        %v1442 = vunpack.c.h.b16 %v1094
        %v1443 = vunpack.c.l.b16 %v1095
        %v1444 = vunpack.c.h.b16 %v1095
        %v1445 = vunpack.c.l.b16 %v1096
        %v1446 = vunpack.c.h.b16 %v1096
        %v1447 = vunpack.c.l.b16 %v1097
        %v1448 = vunpack.c.h.b16 %v1097
        %v1449 = vunpack.c.l.b16 %v1098
        %v1450 = vunpack.c.h.b16 %v1098
        %v1451 = vunpack.c.l.b16 %v1099
        %v1452 = vunpack.c.h.b16 %v1099
        %v1453 = vunpack.c.l.b16 %v1100
        %v1454 = vunpack.c.h.b16 %v1100
        %v1455 = vunpack.c.l.b16 %v1101
        %v1456 = vunpack.c.h.b16 %v1101
        %v1457 = vunpack.c.l.b16 %v1102
        %v1458 = vunpack.c.h.b16 %v1102
        %v1459 = vunpack.c.l.b16 %v1103
        %v1460 = vunpack.c.h.b16 %v1103
        %v1461 = vunpack.c.l.b16 %v1104
        %v1462 = vunpack.c.h.b16 %v1104
        %v1463 = vunpack.c.l.b16 %v1105
        %v1464 = vunpack.c.h.b16 %v1105
        %v1465 = vunpack.c.l.b16 %v1106
        %v1466 = vunpack.c.h.b16 %v1106
        %v1467 = vunpack.c.l.b16 %v1107
        %v1468 = vunpack.c.h.b16 %v1107
        %v1469 = vunpack.c.l.b16 %v1108
        %v1470 = vunpack.c.h.b16 %v1108
        %v1471 = vunpack.c.l.b16 %v1109
        %v1472 = vunpack.c.h.b16 %v1109
        %v1473 = vunpack.c.l.b16 %v1110
        %v1474 = vunpack.c.h.b16 %v1110
        %v1475 = vunpack.c.l.b16 %v1111
        %v1476 = vunpack.c.h.b16 %v1111
        %v1477 = vunpack.c.l.b16 %v1112
        %v1478 = vunpack.c.h.b16 %v1112
        %v1479 = vunpack.c.l.b16 %v1113
        %v1480 = vunpack.c.h.b16 %v1113
        %v1481 = vunpack.c.l.b16 %v1114
        %v1482 = vunpack.c.h.b16 %v1114
        %v1483 = vunpack.c.l.b16 %v1115
        %v1484 = vunpack.c.h.b16 %v1115
        %v1485 = vunpack.c.l.b16 %v1116
        %v1486 = vunpack.c.h.b16 %v1116
        %v1487 = vunpack.c.l.b16 %v1117
        %v1488 = vunpack.c.h.b16 %v1117
        %v1489 = vunpack.c.l.b16 %v1118
        %v1490 = vunpack.c.h.b16 %v1118
        %v1491 = vunpack.c.l.b16 %v1119
        %v1492 = vunpack.c.h.b16 %v1119
        %v1493 = vunpack.c.l.b16 %v1120
        %v1494 = vunpack.c.h.b16 %v1120
        %v1495 = vunpack.c.l.b16 %v1121
        %v1496 = vunpack.c.h.b16 %v1121
        %v1497 = vunpack.c.l.b16 %v1122
        %v1498 = vunpack.c.h.b16 %v1122
        %v1499 = vunpack.c.l.b16 %v1123
        %v1500 = vunpack.c.h.b16 %v1123
        %v1501 = vunpack.c.l.b16 %v1124
        %v1502 = vunpack.c.h.b16 %v1124
        %v1503 = vunpack.c.l.b16 %v1125
        %v1504 = vunpack.c.h.b16 %v1125
        %v1505 = vunpack.c.l.b16 %v1126
        %v1506 = vunpack.c.h.b16 %v1126
        %v1507 = vunpack.c.l.b16 %v1127
        %v1508 = vunpack.c.h.b16 %v1127
        %v1509 = vunpack.c.l.b16 %v1128
        %v1510 = vunpack.c.h.b16 %v1128
        %v1511 = vunpack.c.l.b16 %v1129
        %v1512 = vunpack.c.h.b16 %v1129
        %v1513 = vunpack.c.l.b16 %v1130
        %v1514 = vunpack.c.h.b16 %v1130
        %v1515 = vunpack.c.l.b16 %v1131
        %v1516 = vunpack.c.h.b16 %v1131
        %v1517 = vunpack.c.l.b16 %v1132
        %v1518 = vunpack.c.h.b16 %v1132
        %v1519 = vunpack.c.l.b16 %v1133
        %v1520 = vunpack.c.h.b16 %v1133
        %v1521 = vunpack.c.l.b16 %v1134
        %v1522 = vunpack.c.h.b16 %v1134
        %v1523 = vunpack.c.l.b16 %v1135
        %v1524 = vunpack.c.h.b16 %v1135
        %v1525 = vunpack.c.l.b16 %v1136
        %v1526 = vunpack.c.h.b16 %v1136
        %v1527 = vunpack.c.l.b16 %v1137
        %v1528 = vunpack.c.h.b16 %v1137
        %v1529 = vunpack.c.l.b16 %v1138
        %v1530 = vunpack.c.h.b16 %v1138
        %v1531 = vunpack.c.l.b16 %v1139
        %v1532 = vunpack.c.h.b16 %v1139
        %v1533 = vunpack.c.l.b16 %v1140
        %v1534 = vunpack.c.h.b16 %v1140
        %v1535 = vunpack.c.l.b16 %v1141
        %v1536 = vunpack.c.h.b16 %v1141
        %v1537 = vunpack.c.l.b16 %v1142
        %v1538 = vunpack.c.h.b16 %v1142
        %v1539 = vunpack.c.l.b16 %v1143
        %v1540 = vunpack.c.h.b16 %v1143
        %v1541 = vunpack.c.l.b16 %v1144
        %v1542 = vunpack.c.h.b16 %v1144
        %v1543 = vunpack.c.l.b16 %v1145
        %v1544 = vunpack.c.h.b16 %v1145
        %v1545 = vunpack.c.l.b16 %v1146
        %v1546 = vunpack.c.h.b16 %v1146
        %v1547 = vunpack.c.l.b16 %v1147
        %v1548 = vunpack.c.h.b16 %v1147
        %v1549 = vunpack.c.l.b16 %v1148
        %v1550 = vunpack.c.h.b16 %v1148
        %v1551 = vunpack.c.l.b16 %v1149
        %v1552 = vunpack.c.h.b16 %v1149
        %v1553 = vunpack.c.l.b16 %v1150
        %v1554 = vunpack.c.h.b16 %v1150
        %v1555 = vunpack.c.l.b16 %v1151
        %v1556 = vunpack.c.h.b16 %v1151
        %v1557 = vunpack.c.l.b16 %v1152
        %v1558 = vunpack.c.h.b16 %v1152
        %v1559 = vunpack.c.l.b16 %v1153
        %v1560 = vunpack.c.h.b16 %v1153
        %v1561 = vunpack.c.l.b16 %v1154
        %v1562 = vunpack.c.h.b16 %v1154
        %v1563 = vunpack.c.l.b16 %v1155
        %v1564 = vunpack.c.h.b16 %v1155
        %v1565 = vunpack.c.l.b16 %v1156
        %v1566 = vunpack.c.h.b16 %v1156
        %v1567 = vunpack.c.l.b16 %v1157
        %v1568 = vunpack.c.h.b16 %v1157
        %v1569 = vunpack.c.l.b16 %v1158
        %v1570 = vunpack.c.h.b16 %v1158
        %v1571 = vunpack.c.l.b16 %v1159
        %v1572 = vunpack.c.h.b16 %v1159
        %v1573 = vunpack.c.l.b16 %v1160
        %v1574 = vunpack.c.h.b16 %v1160
        %v1575 = vunpack.c.l.b16 %v1161
        %v1576 = vunpack.c.h.b16 %v1161
        %v1577 = vunpack.c.l.b16 %v1162
        %v1578 = vunpack.c.h.b16 %v1162
        %v1579 = vunpack.c.l.b16 %v1163
        %v1580 = vunpack.c.h.b16 %v1163
        %v1581 = vunpack.c.l.b16 %v1164
        %v1582 = vunpack.c.h.b16 %v1164
        %v1583 = vunpack.c.l.b16 %v1165
        %v1584 = vunpack.c.h.b16 %v1165
        %v1585 = vunpack.c.l.b16 %v1166
        %v1586 = vunpack.c.h.b16 %v1166
        %v1587 = vunpack.c.l.b16 %v1167
        %v1588 = vunpack.c.h.b16 %v1167
        %v1589 = vunpack.c.l.b16 %v1168
        %v1590 = vunpack.c.h.b16 %v1168
        %v1591 = vunpack.c.l.b16 %v1169
        %v1592 = vunpack.c.h.b16 %v1169
        %v1593 = vunpack.c.l.b16 %v1170
        %v1594 = vunpack.c.h.b16 %v1170
        %v1595 = vunpack.c.l.b16 %v1171
        %v1596 = vunpack.c.h.b16 %v1171
        %v1597 = vunpack.c.l.b16 %v1172
        %v1598 = vunpack.c.h.b16 %v1172
        %v1599 = vunpack.c.l.b16 %v1173
        %v1600 = vunpack.c.h.b16 %v1173
        %v1601 = vunpack.c.l.b16 %v1174
        %v1602 = vunpack.c.h.b16 %v1174
        %v1603 = vunpack.c.l.b16 %v1175
        %v1604 = vunpack.c.h.b16 %v1175
        %v1605 = vunpack.c.l.b16 %v1176
        %v1606 = vunpack.c.h.b16 %v1176
        %v1607 = vunpack.c.l.b16 %v1177
        %v1608 = vunpack.c.h.b16 %v1177
        %v1609 = vunpack.c.l.b16 %v1178
        %v1610 = vunpack.c.h.b16 %v1178
        %v1611 = vunpack.c.l.b16 %v1179
        %v1612 = vunpack.c.h.b16 %v1179
        %v1613 = vunpack.c.l.b16 %v1180
        %v1614 = vunpack.c.h.b16 %v1180
        %v1615 = vunpack.c.l.b16 %v1181
        %v1616 = vunpack.c.h.b16 %v1181
        %v1617 = vunpack.c.l.b16 %v1182
        %v1618 = vunpack.c.h.b16 %v1182
        %v1619 = vunpack.c.l.b16 %v1183
        %v1620 = vunpack.c.h.b16 %v1183
        %v1621 = vunpack.c.l.b16 %v1184
        %v1622 = vunpack.c.h.b16 %v1184
        %v1623 = vunpack.c.l.b16 %v1185
        %v1624 = vunpack.c.h.b16 %v1185
        %v1625 = vunpack.c.l.b16 %v1186
        %v1626 = vunpack.c.h.b16 %v1186
        %v1627 = vunpack.c.l.b16 %v1187
        %v1628 = vunpack.c.h.b16 %v1187
        %v1629 = vunpack.c.l.b16 %v1188
        %v1630 = vunpack.c.h.b16 %v1188
        %v1631 = vunpack.c.l.b16 %v1189
        %v1632 = vunpack.c.h.b16 %v1189
        %v1633 = vunpack.c.l.b16 %v1190
        %v1634 = vunpack.c.h.b16 %v1190
        %v1635 = vunpack.c.l.b16 %v1191
        %v1636 = vunpack.c.h.b16 %v1191
        %v1637 = vunpack.c.l.b16 %v1192
        %v1638 = vunpack.c.h.b16 %v1192
        %v1639 = vunpack.c.l.b16 %v1193
        %v1640 = vunpack.c.h.b16 %v1193
        %v1641 = vunpack.c.l.b16 %v1194
        %v1642 = vunpack.c.h.b16 %v1194
        %v1643 = vunpack.c.l.b16 %v1195
        %v1644 = vunpack.c.h.b16 %v1195
        %v1645 = vunpack.c.l.b16 %v1196
        %v1646 = vunpack.c.h.b16 %v1196
        %v1647 = vunpack.c.l.b16 %v1197
        %v1648 = vunpack.c.h.b16 %v1197
        %v1649 = vunpack.c.l.b16 %v1198
        %v1650 = vunpack.c.h.b16 %v1198
        %v1651 = vunpack.c.l.b16 %v1199
        %v1652 = vunpack.c.h.b16 %v1199
        %v1653 = vunpack.c.l.b16 %v1200
        %v1654 = vunpack.c.h.b16 %v1200
        %v1655 = vunpack.c.l.b16 %v1201
        %v1656 = vunpack.c.h.b16 %v1201
        %v1657 = vunpack.c.l.b16 %v1202
        %v1658 = vunpack.c.h.b16 %v1202
        %v1659 = vunpack.c.l.b16 %v1203
        %v1660 = vunpack.c.h.b16 %v1203
        %v1661 = vunpack.c.l.b16 %v1204
        %v1662 = vunpack.c.h.b16 %v1204
        %v1663 = vunpack.c.l.b16 %v1205
        %v1664 = vunpack.c.h.b16 %v1205
        %v1665 = vunpack.c.l.b16 %v1206
        %v1666 = vunpack.c.h.b16 %v1206
        %v1667 = vunpack.c.l.b16 %v1207
        %v1668 = vunpack.c.h.b16 %v1207
        %v1669 = vunpack.c.l.b16 %v1208
        %v1670 = vunpack.c.h.b16 %v1208
        %v1671 = vunpack.c.l.b16 %v1209
        %v1672 = vunpack.c.h.b16 %v1209
        %v1673 = vunpack.c.l.b16 %v1210
        %v1674 = vunpack.c.h.b16 %v1210
        %v1675 = vunpack.c.l.b16 %v1211
        %v1676 = vunpack.c.h.b16 %v1211
        %v1677 = vunpack.c.l.b16 %v1212
        %v1678 = vunpack.c.h.b16 %v1212
        %v1679 = vunpack.c.l.b16 %v1213
        %v1680 = vunpack.c.h.b16 %v1213
        %v1681 = vunpack.c.l.b16 %v1214
        %v1682 = vunpack.c.h.b16 %v1214
        %v1683 = vunpack.c.l.b16 %v1215
        %v1684 = vunpack.c.h.b16 %v1215
        %v1685 = vunpack.c.l.b16 %v1216
        %v1686 = vunpack.c.h.b16 %v1216
        %v1687 = vunpack.c.l.b16 %v1217
        %v1688 = vunpack.c.h.b16 %v1217
        %v1689 = vunpack.c.l.b16 %v1218
        %v1690 = vunpack.c.h.b16 %v1218
        %v1691 = vunpack.c.l.b16 %v1219
        %v1692 = vunpack.c.h.b16 %v1219
        %v1693 = vunpack.c.l.b16 %v1220
        %v1694 = vunpack.c.h.b16 %v1220
        %v1695 = vunpack.c.l.b16 %v1221
        %v1696 = vunpack.c.h.b16 %v1221
        %v1697 = vunpack.c.l.b16 %v1222
        %v1698 = vunpack.c.h.b16 %v1222
        %v1699 = vunpack.c.l.b16 %v1223
        %v1700 = vunpack.c.h.b16 %v1223
        %v1701 = vunpack.c.l.b16 %v1224
        %v1702 = vunpack.c.h.b16 %v1224
        %v1703 = vunpack.c.l.b16 %v1225
        %v1704 = vunpack.c.h.b16 %v1225
        %v1705 = vunpack.c.l.b16 %v1226
        %v1706 = vunpack.c.h.b16 %v1226
        %v1707 = vunpack.c.l.b16 %v1227
        %v1708 = vunpack.c.h.b16 %v1227
        %v1709 = vunpack.c.l.b16 %v1228
        %v1710 = vunpack.c.h.b16 %v1228
        %v1711 = vunpack.c.l.b16 %v1229
        %v1712 = vunpack.c.h.b16 %v1229
        %v1713 = vunpack.c.l.b16 %v1230
        %v1714 = vunpack.c.h.b16 %v1230
        %v1715 = vunpack.c.l.b16 %v1231
        %v1716 = vunpack.c.h.b16 %v1231
        %v1717 = vunpack.c.l.b16 %v1232
        %v1718 = vunpack.c.h.b16 %v1232
        %v1719 = vpack.c.b16 %v1401, %v1399
        %v1720 = vpack.c.b16 %v1402, %v1400
        %v1721 = vpack.c.b16 %v1405, %v1403
        %v1722 = vpack.c.b16 %v1406, %v1404
        %v1723 = vpack.c.b16 %v1409, %v1407
        %v1724 = vpack.c.b16 %v1410, %v1408
        %v1725 = vpack.c.b16 %v1413, %v1411
        %v1726 = vpack.c.b16 %v1414, %v1412
        %v1727 = vpack.c.b16 %v1417, %v1415
        %v1728 = vpack.c.b16 %v1418, %v1416
        %v1729 = vpack.c.b16 %v1421, %v1419
        %v1730 = vpack.c.b16 %v1422, %v1420
        %v1731 = vpack.c.b16 %v1425, %v1423
        %v1732 = vpack.c.b16 %v1426, %v1424
        %v1733 = vpack.c.b16 %v1429, %v1427
        %v1734 = vpack.c.b16 %v1430, %v1428
        %v1735 = vpack.c.b16 %v1433, %v1431
        %v1736 = vpack.c.b16 %v1434, %v1432
        %v1737 = vpack.c.b16 %v1437, %v1435
        %v1738 = vpack.c.b16 %v1438, %v1436
        %v1739 = vpack.c.b16 %v1441, %v1439
        %v1740 = vpack.c.b16 %v1442, %v1440
        %v1741 = vpack.c.b16 %v1445, %v1443
        %v1742 = vpack.c.b16 %v1446, %v1444
        %v1743 = vpack.c.b16 %v1449, %v1447
        %v1744 = vpack.c.b16 %v1450, %v1448
        %v1745 = vpack.c.b16 %v1453, %v1451
        %v1746 = vpack.c.b16 %v1454, %v1452
        %v1747 = vpack.c.b16 %v1457, %v1455
        %v1748 = vpack.c.b16 %v1458, %v1456
        %v1749 = vpack.c.b16 %v1461, %v1459
        %v1750 = vpack.c.b16 %v1462, %v1460
        %v1751 = vpack.c.b16 %v1465, %v1463
        %v1752 = vpack.c.b16 %v1466, %v1464
        %v1753 = vpack.c.b16 %v1469, %v1467
        %v1754 = vpack.c.b16 %v1470, %v1468
        %v1755 = vpack.c.b16 %v1473, %v1471
        %v1756 = vpack.c.b16 %v1474, %v1472
        %v1757 = vpack.c.b16 %v1477, %v1475
        %v1758 = vpack.c.b16 %v1478, %v1476
        %v1759 = vpack.c.b16 %v1481, %v1479
        %v1760 = vpack.c.b16 %v1482, %v1480
        %v1761 = vpack.c.b16 %v1485, %v1483
        %v1762 = vpack.c.b16 %v1486, %v1484
        %v1763 = vpack.c.b16 %v1489, %v1487
        %v1764 = vpack.c.b16 %v1490, %v1488
        %v1765 = vpack.c.b16 %v1493, %v1491
        %v1766 = vpack.c.b16 %v1494, %v1492
        %v1767 = vpack.c.b16 %v1497, %v1495
        %v1768 = vpack.c.b16 %v1498, %v1496
        %v1769 = vpack.c.b16 %v1501, %v1499
        %v1770 = vpack.c.b16 %v1502, %v1500
        %v1771 = vpack.c.b16 %v1505, %v1503
        %v1772 = vpack.c.b16 %v1506, %v1504
        %v1773 = vpack.c.b16 %v1509, %v1507
        %v1774 = vpack.c.b16 %v1510, %v1508
        %v1775 = vpack.c.b16 %v1513, %v1511
        %v1776 = vpack.c.b16 %v1514, %v1512
        %v1777 = vpack.c.b16 %v1517, %v1515
        %v1778 = vpack.c.b16 %v1518, %v1516
        %v1779 = vpack.c.b16 %v1521, %v1519
        %v1780 = vpack.c.b16 %v1522, %v1520
        %v1781 = vpack.c.b16 %v1525, %v1523
        %v1782 = vpack.c.b16 %v1526, %v1524
        %v1783 = vpack.c.b16 %v1529, %v1527
        %v1784 = vpack.c.b16 %v1530, %v1528
        %v1785 = vpack.c.b16 %v1533, %v1531
        %v1786 = vpack.c.b16 %v1534, %v1532
        %v1787 = vpack.c.b16 %v1537, %v1535
        %v1788 = vpack.c.b16 %v1538, %v1536
        %v1789 = vpack.c.b16 %v1541, %v1539
        %v1790 = vpack.c.b16 %v1542, %v1540
        %v1791 = vpack.c.b16 %v1545, %v1543
        %v1792 = vpack.c.b16 %v1546, %v1544
        %v1793 = vpack.c.b16 %v1549, %v1547
        %v1794 = vpack.c.b16 %v1550, %v1548
        %v1795 = vpack.c.b16 %v1553, %v1551
        %v1796 = vpack.c.b16 %v1554, %v1552
        %v1797 = vpack.c.b16 %v1557, %v1555
        %v1798 = vpack.c.b16 %v1558, %v1556
        %v1799 = vpack.c.b16 %v1561, %v1559
        %v1800 = vpack.c.b16 %v1562, %v1560
        %v1801 = vpack.c.b16 %v1565, %v1563
        %v1802 = vpack.c.b16 %v1566, %v1564
        %v1803 = vpack.c.b16 %v1569, %v1567
        %v1804 = vpack.c.b16 %v1570, %v1568
        %v1805 = vpack.c.b16 %v1573, %v1571
        %v1806 = vpack.c.b16 %v1574, %v1572
        %v1807 = vpack.c.b16 %v1577, %v1575
        %v1808 = vpack.c.b16 %v1578, %v1576
        %v1809 = vpack.c.b16 %v1581, %v1579
        %v1810 = vpack.c.b16 %v1582, %v1580
        %v1811 = vpack.c.b16 %v1585, %v1583
        %v1812 = vpack.c.b16 %v1586, %v1584
        %v1813 = vpack.c.b16 %v1589, %v1587
        %v1814 = vpack.c.b16 %v1590, %v1588
        %v1815 = vpack.c.b16 %v1593, %v1591
        %v1816 = vpack.c.b16 %v1594, %v1592
        %v1817 = vpack.c.b16 %v1597, %v1595
        %v1818 = vpack.c.b16 %v1598, %v1596
        %v1819 = vpack.c.b16 %v1601, %v1599
        %v1820 = vpack.c.b16 %v1602, %v1600
        %v1821 = vpack.c.b16 %v1605, %v1603
        %v1822 = vpack.c.b16 %v1606, %v1604
        %v1823 = vpack.c.b16 %v1609, %v1607
        %v1824 = vpack.c.b16 %v1610, %v1608
        %v1825 = vpack.c.b16 %v1613, %v1611
        %v1826 = vpack.c.b16 %v1614, %v1612
        %v1827 = vpack.c.b16 %v1617, %v1615
        %v1828 = vpack.c.b16 %v1618, %v1616
        %v1829 = vpack.c.b16 %v1621, %v1619
        %v1830 = vpack.c.b16 %v1622, %v1620
        %v1831 = vpack.c.b16 %v1625, %v1623
        %v1832 = vpack.c.b16 %v1626, %v1624
        %v1833 = vpack.c.b16 %v1629, %v1627
        %v1834 = vpack.c.b16 %v1630, %v1628
        %v1835 = vpack.c.b16 %v1633, %v1631
        %v1836 = vpack.c.b16 %v1634, %v1632
        %v1837 = vpack.c.b16 %v1637, %v1635
        %v1838 = vpack.c.b16 %v1638, %v1636
        %v1839 = vpack.c.b16 %v1641, %v1639
        %v1840 = vpack.c.b16 %v1642, %v1640
        %v1841 = vpack.c.b16 %v1645, %v1643
        %v1842 = vpack.c.b16 %v1646, %v1644
        %v1843 = vpack.c.b16 %v1649, %v1647
        %v1844 = vpack.c.b16 %v1650, %v1648
        %v1845 = vpack.c.b16 %v1653, %v1651
        %v1846 = vpack.c.b16 %v1654, %v1652
        %v1847 = vpack.c.b16 %v1657, %v1655
        %v1848 = vpack.c.b16 %v1658, %v1656
        %v1849 = vpack.c.b16 %v1661, %v1659
        %v1850 = vpack.c.b16 %v1662, %v1660
        %v1851 = vpack.c.b16 %v1665, %v1663
        %v1852 = vpack.c.b16 %v1666, %v1664
        %v1853 = vpack.c.b16 %v1669, %v1667
        %v1854 = vpack.c.b16 %v1670, %v1668
        %v1855 = vpack.c.b16 %v1673, %v1671
        %v1856 = vpack.c.b16 %v1674, %v1672
        %v1857 = vpack.c.b16 %v1677, %v1675
        %v1858 = vpack.c.b16 %v1678, %v1676
        %v1859 = vpack.c.b16 %v1681, %v1679
        %v1860 = vpack.c.b16 %v1682, %v1680
        %v1861 = vpack.c.b16 %v1685, %v1683
        %v1862 = vpack.c.b16 %v1686, %v1684
        %v1863 = vpack.c.b16 %v1689, %v1687
        %v1864 = vpack.c.b16 %v1690, %v1688
        %v1865 = vpack.c.b16 %v1693, %v1691
        %v1866 = vpack.c.b16 %v1694, %v1692
        %v1867 = vpack.c.b16 %v1697, %v1695
        %v1868 = vpack.c.b16 %v1698, %v1696
        %v1869 = vpack.c.b16 %v1701, %v1699
        %v1870 = vpack.c.b16 %v1702, %v1700
        %v1871 = vpack.c.b16 %v1705, %v1703
        %v1872 = vpack.c.b16 %v1706, %v1704
        %v1873 = vpack.c.b16 %v1709, %v1707
        %v1874 = vpack.c.b16 %v1710, %v1708
        %v1875 = vpack.c.b16 %v1713, %v1711
        %v1876 = vpack.c.b16 %v1714, %v1712
        %v1877 = vpack.c.b16 %v1717, %v1715
        %v1878 = vpack.c.b16 %v1718, %v1716
        %2039 = vmatpush.bf16.msra.mxu0 %v1733
        %2040 = vmatpush.bf16.msra.mxu0 %v1731
        %2041 = vmatpush.bf16.msra.mxu0 %v1729
        %2042 = vmatpush.bf16.msra.mxu0 %v1727
        %2043 = vmatpush.bf16.msra.mxu0 %v1725
        %2044 = vmatpush.bf16.msra.mxu0 %v1723
        %2045 = vmatpush.bf16.msra.mxu0 %v1721
        %2046 = vmatpush.bf16.msra.mxu0 %v1719
        %2047 = vmatmul.bf16.gmra.mxu0 %v1063
        %v2048 = vpop.f32.mrf.mxu0
        %v2049 = vadd.f32 %v1235, %v2048
        %v2050 = vpop.f32.mrf.mxu0
        %2051 = vdwg.mxu0
        %2052 = vmatpush.bf16.msra.mxu0 %v1749
        %2053 = vmatpush.bf16.msra.mxu0 %v1747
        %2054 = vmatpush.bf16.msra.mxu0 %v1745
        %2055 = vmatpush.bf16.msra.mxu0 %v1743
        %2056 = vmatpush.bf16.msra.mxu0 %v1741
        %2057 = vmatpush.bf16.msra.mxu0 %v1739
        %2058 = vmatpush.bf16.msra.mxu0 %v1737
        %2059 = vmatpush.bf16.msra.mxu0 %v1735
        %2060 = vmatmul.bf16.gmra.mxu0 %v1064
        %v2061 = vpop.f32.mrf.mxu0
        %v2062 = vadd.f32 %v2049, %v2061
        %v2063 = vpop.f32.mrf.mxu0
        %2064 = vdwg.mxu0
        %2065 = vmatpush.bf16.msra.mxu0 %v1765
        %2066 = vmatpush.bf16.msra.mxu0 %v1763
        %2067 = vmatpush.bf16.msra.mxu0 %v1761
        %2068 = vmatpush.bf16.msra.mxu0 %v1759
        %2069 = vmatpush.bf16.msra.mxu0 %v1757
        %2070 = vmatpush.bf16.msra.mxu0 %v1755
        %2071 = vmatpush.bf16.msra.mxu0 %v1753
        %2072 = vmatpush.bf16.msra.mxu0 %v1751
        %2073 = vmatmul.bf16.gmra.mxu0 %v1065
        %v2074 = vpop.f32.mrf.mxu0
        %v2075 = vadd.f32 %v2062, %v2074
        %v2076 = vpop.f32.mrf.mxu0
        %2077 = vdwg.mxu0
        %2078 = vmatpush.bf16.msra.mxu0 %v1781
        %2079 = vmatpush.bf16.msra.mxu0 %v1779
        %2080 = vmatpush.bf16.msra.mxu0 %v1777
        %2081 = vmatpush.bf16.msra.mxu0 %v1775
        %2082 = vmatpush.bf16.msra.mxu0 %v1773
        %2083 = vmatpush.bf16.msra.mxu0 %v1771
        %2084 = vmatpush.bf16.msra.mxu0 %v1769
        %2085 = vmatpush.bf16.msra.mxu0 %v1767
        %2086 = vmatmul.bf16.gmra.mxu0 %v1066
        %v2087 = vpop.f32.mrf.mxu0
        %v2088 = vadd.f32 %v2075, %v2087
        %v2089 = vpop.f32.mrf.mxu0
        %2090 = vdwg.mxu0
        %2091 = vmatpush.bf16.msra.mxu0 %v1797
        %2092 = vmatpush.bf16.msra.mxu0 %v1795
        %2093 = vmatpush.bf16.msra.mxu0 %v1793
        %2094 = vmatpush.bf16.msra.mxu0 %v1791
        %2095 = vmatpush.bf16.msra.mxu0 %v1789
        %2096 = vmatpush.bf16.msra.mxu0 %v1787
        %2097 = vmatpush.bf16.msra.mxu0 %v1785
        %2098 = vmatpush.bf16.msra.mxu0 %v1783
        %2099 = vmatmul.bf16.gmra.mxu0 %v1067
        %v2100 = vpop.f32.mrf.mxu0
        %v2101 = vadd.f32 %v2088, %v2100
        %v2102 = vpop.f32.mrf.mxu0
        %2103 = vdwg.mxu0
        %2104 = vmatpush.bf16.msra.mxu0 %v1813
        %2105 = vmatpush.bf16.msra.mxu0 %v1811
        %2106 = vmatpush.bf16.msra.mxu0 %v1809
        %2107 = vmatpush.bf16.msra.mxu0 %v1807
        %2108 = vmatpush.bf16.msra.mxu0 %v1805
        %2109 = vmatpush.bf16.msra.mxu0 %v1803
        %2110 = vmatpush.bf16.msra.mxu0 %v1801
        %2111 = vmatpush.bf16.msra.mxu0 %v1799
        %2112 = vmatmul.bf16.gmra.mxu0 %v1068
        %v2113 = vpop.f32.mrf.mxu0
        %v2114 = vadd.f32 %v2101, %v2113
        %v2115 = vpop.f32.mrf.mxu0
        %2116 = vdwg.mxu0
        %2117 = vmatpush.bf16.msra.mxu0 %v1829
        %2118 = vmatpush.bf16.msra.mxu0 %v1827
        %2119 = vmatpush.bf16.msra.mxu0 %v1825
        %2120 = vmatpush.bf16.msra.mxu0 %v1823
        %2121 = vmatpush.bf16.msra.mxu0 %v1821
        %2122 = vmatpush.bf16.msra.mxu0 %v1819
        %2123 = vmatpush.bf16.msra.mxu0 %v1817
        %2124 = vmatpush.bf16.msra.mxu0 %v1815
        %2125 = vmatmul.bf16.gmra.mxu0 %v1069
        %v2126 = vpop.f32.mrf.mxu0
        %v2127 = vadd.f32 %v2114, %v2126
        %v2128 = vpop.f32.mrf.mxu0
        %2129 = vdwg.mxu0
        %2130 = vmatpush.bf16.msra.mxu0 %v1845
        %2131 = vmatpush.bf16.msra.mxu0 %v1843
        %2132 = vmatpush.bf16.msra.mxu0 %v1841
        %2133 = vmatpush.bf16.msra.mxu0 %v1839
        %2134 = vmatpush.bf16.msra.mxu0 %v1837
        %2135 = vmatpush.bf16.msra.mxu0 %v1835
        %2136 = vmatpush.bf16.msra.mxu0 %v1833
        %2137 = vmatpush.bf16.msra.mxu0 %v1831
        %2138 = vmatmul.bf16.gmra.mxu0 %v1070
        %v2139 = vpop.f32.mrf.mxu0
        %v2140 = vadd.f32 %v2127, %v2139
        %v2141 = vpop.f32.mrf.mxu0
        %2142 = vdwg.mxu0
        %2143 = vmatpush.bf16.msra.mxu0 %v1861
        %2144 = vmatpush.bf16.msra.mxu0 %v1859
        %2145 = vmatpush.bf16.msra.mxu0 %v1857
        %2146 = vmatpush.bf16.msra.mxu0 %v1855
        %2147 = vmatpush.bf16.msra.mxu0 %v1853
        %2148 = vmatpush.bf16.msra.mxu0 %v1851
        %2149 = vmatpush.bf16.msra.mxu0 %v1849
        %2150 = vmatpush.bf16.msra.mxu0 %v1847
        %2151 = vmatmul.bf16.gmra.mxu0 %v1071
        %v2152 = vpop.f32.mrf.mxu0
        %v2153 = vadd.f32 %v2140, %v2152
        %v2154 = vpop.f32.mrf.mxu0
        %2155 = vdwg.mxu0
        %2156 = vmatpush.bf16.msra.mxu0 %v1877
        %2157 = vmatpush.bf16.msra.mxu0 %v1875
        %2158 = vmatpush.bf16.msra.mxu0 %v1873
        %2159 = vmatpush.bf16.msra.mxu0 %v1871
        %2160 = vmatpush.bf16.msra.mxu0 %v1869
        %2161 = vmatpush.bf16.msra.mxu0 %v1867
        %2162 = vmatpush.bf16.msra.mxu0 %v1865
        %2163 = vmatpush.bf16.msra.mxu0 %v1863
        %2164 = vmatmul.bf16.gmra.mxu0 %v1072
        %v2165 = vpop.f32.mrf.mxu0
        %v2166 = vadd.f32 %v2153, %v2165
        %v2167 = vpop.f32.mrf.mxu0
        %2168 = vdwg.mxu0
        %2169 = vmatpush.bf16.msra.mxu0 %v1734
        %2170 = vmatpush.bf16.msra.mxu0 %v1732
        %2171 = vmatpush.bf16.msra.mxu0 %v1730
        %2172 = vmatpush.bf16.msra.mxu0 %v1728
        %2173 = vmatpush.bf16.msra.mxu0 %v1726
        %2174 = vmatpush.bf16.msra.mxu0 %v1724
        %2175 = vmatpush.bf16.msra.mxu0 %v1722
        %2176 = vmatpush.bf16.msra.mxu0 %v1720
        %2177 = vmatmul.bf16.gmra.mxu0 %v1063
        %v2178 = vpop.f32.mrf.mxu0
        %v2179 = vadd.f32 %v1236, %v2178
        %v2180 = vpop.f32.mrf.mxu0
        %2181 = vdwg.mxu0
        %2182 = vmatpush.bf16.msra.mxu0 %v1750
        %2183 = vmatpush.bf16.msra.mxu0 %v1748
        %2184 = vmatpush.bf16.msra.mxu0 %v1746
        %2185 = vmatpush.bf16.msra.mxu0 %v1744
        %2186 = vmatpush.bf16.msra.mxu0 %v1742
        %2187 = vmatpush.bf16.msra.mxu0 %v1740
        %2188 = vmatpush.bf16.msra.mxu0 %v1738
        %2189 = vmatpush.bf16.msra.mxu0 %v1736
        %2190 = vmatmul.bf16.gmra.mxu0 %v1064
        %v2191 = vpop.f32.mrf.mxu0
        %v2192 = vadd.f32 %v2179, %v2191
        %v2193 = vpop.f32.mrf.mxu0
        %2194 = vdwg.mxu0
        %2195 = vmatpush.bf16.msra.mxu0 %v1766
        %2196 = vmatpush.bf16.msra.mxu0 %v1764
        %2197 = vmatpush.bf16.msra.mxu0 %v1762
        %2198 = vmatpush.bf16.msra.mxu0 %v1760
        %2199 = vmatpush.bf16.msra.mxu0 %v1758
        %2200 = vmatpush.bf16.msra.mxu0 %v1756
        %2201 = vmatpush.bf16.msra.mxu0 %v1754
        %2202 = vmatpush.bf16.msra.mxu0 %v1752
        %2203 = vmatmul.bf16.gmra.mxu0 %v1065
        %v2204 = vpop.f32.mrf.mxu0
        %v2205 = vadd.f32 %v2192, %v2204
        %v2206 = vpop.f32.mrf.mxu0
        %2207 = vdwg.mxu0
        %2208 = vmatpush.bf16.msra.mxu0 %v1782
        %2209 = vmatpush.bf16.msra.mxu0 %v1780
        %2210 = vmatpush.bf16.msra.mxu0 %v1778
        %2211 = vmatpush.bf16.msra.mxu0 %v1776
        %2212 = vmatpush.bf16.msra.mxu0 %v1774
        %2213 = vmatpush.bf16.msra.mxu0 %v1772
        %2214 = vmatpush.bf16.msra.mxu0 %v1770
        %2215 = vmatpush.bf16.msra.mxu0 %v1768
        %2216 = vmatmul.bf16.gmra.mxu0 %v1066
        %v2217 = vpop.f32.mrf.mxu0
        %v2218 = vadd.f32 %v2205, %v2217
        %v2219 = vpop.f32.mrf.mxu0
        %2220 = vdwg.mxu0
        %2221 = vmatpush.bf16.msra.mxu0 %v1798
        %2222 = vmatpush.bf16.msra.mxu0 %v1796
        %2223 = vmatpush.bf16.msra.mxu0 %v1794
        %2224 = vmatpush.bf16.msra.mxu0 %v1792
        %2225 = vmatpush.bf16.msra.mxu0 %v1790
        %2226 = vmatpush.bf16.msra.mxu0 %v1788
        %2227 = vmatpush.bf16.msra.mxu0 %v1786
        %2228 = vmatpush.bf16.msra.mxu0 %v1784
        %2229 = vmatmul.bf16.gmra.mxu0 %v1067
        %v2230 = vpop.f32.mrf.mxu0
        %v2231 = vadd.f32 %v2218, %v2230
        %v2232 = vpop.f32.mrf.mxu0
        %2233 = vdwg.mxu0
        %2234 = vmatpush.bf16.msra.mxu0 %v1814
        %2235 = vmatpush.bf16.msra.mxu0 %v1812
        %2236 = vmatpush.bf16.msra.mxu0 %v1810
        %2237 = vmatpush.bf16.msra.mxu0 %v1808
        %2238 = vmatpush.bf16.msra.mxu0 %v1806
        %2239 = vmatpush.bf16.msra.mxu0 %v1804
        %2240 = vmatpush.bf16.msra.mxu0 %v1802
        %2241 = vmatpush.bf16.msra.mxu0 %v1800
        %2242 = vmatmul.bf16.gmra.mxu0 %v1068
        %v2243 = vpop.f32.mrf.mxu0
        %v2244 = vadd.f32 %v2231, %v2243
        %v2245 = vpop.f32.mrf.mxu0
        %2246 = vdwg.mxu0
        %2247 = vmatpush.bf16.msra.mxu0 %v1830
        %2248 = vmatpush.bf16.msra.mxu0 %v1828
        %2249 = vmatpush.bf16.msra.mxu0 %v1826
        %2250 = vmatpush.bf16.msra.mxu0 %v1824
        %2251 = vmatpush.bf16.msra.mxu0 %v1822
        %2252 = vmatpush.bf16.msra.mxu0 %v1820
        %2253 = vmatpush.bf16.msra.mxu0 %v1818
        %2254 = vmatpush.bf16.msra.mxu0 %v1816
        %2255 = vmatmul.bf16.gmra.mxu0 %v1069
        %v2256 = vpop.f32.mrf.mxu0
        %v2257 = vadd.f32 %v2244, %v2256
        %v2258 = vpop.f32.mrf.mxu0
        %2259 = vdwg.mxu0
        %2260 = vmatpush.bf16.msra.mxu0 %v1846
        %2261 = vmatpush.bf16.msra.mxu0 %v1844
        %2262 = vmatpush.bf16.msra.mxu0 %v1842
        %2263 = vmatpush.bf16.msra.mxu0 %v1840
        %2264 = vmatpush.bf16.msra.mxu0 %v1838
        %2265 = vmatpush.bf16.msra.mxu0 %v1836
        %2266 = vmatpush.bf16.msra.mxu0 %v1834
        %2267 = vmatpush.bf16.msra.mxu0 %v1832
        %2268 = vmatmul.bf16.gmra.mxu0 %v1070
        %v2269 = vpop.f32.mrf.mxu0
        %v2270 = vadd.f32 %v2257, %v2269
        %v2271 = vpop.f32.mrf.mxu0
        %2272 = vdwg.mxu0
        %2273 = vmatpush.bf16.msra.mxu0 %v1862
        %2274 = vmatpush.bf16.msra.mxu0 %v1860
        %2275 = vmatpush.bf16.msra.mxu0 %v1858
        %2276 = vmatpush.bf16.msra.mxu0 %v1856
        %2277 = vmatpush.bf16.msra.mxu0 %v1854
        %2278 = vmatpush.bf16.msra.mxu0 %v1852
        %2279 = vmatpush.bf16.msra.mxu0 %v1850
        %2280 = vmatpush.bf16.msra.mxu0 %v1848
        %2281 = vmatmul.bf16.gmra.mxu0 %v1071
        %v2282 = vpop.f32.mrf.mxu0
        %v2283 = vadd.f32 %v2270, %v2282
        %v2284 = vpop.f32.mrf.mxu0
        %2285 = vdwg.mxu0
        %2286 = vmatpush.bf16.msra.mxu0 %v1878
        %2287 = vmatpush.bf16.msra.mxu0 %v1876
        %2288 = vmatpush.bf16.msra.mxu0 %v1874
        %2289 = vmatpush.bf16.msra.mxu0 %v1872
        %2290 = vmatpush.bf16.msra.mxu0 %v1870
        %2291 = vmatpush.bf16.msra.mxu0 %v1868
        %2292 = vmatpush.bf16.msra.mxu0 %v1866
        %2293 = vmatpush.bf16.msra.mxu0 %v1864
        %2294 = vmatmul.bf16.gmra.mxu0 %v1072
        %v2295 = vpop.f32.mrf.mxu0
        %v2296 = vadd.f32 %v2283, %v2295
        %v2297 = vpop.f32.mrf.mxu0
        %2298 = vdwg.mxu0
        %v2299 = vmax.f32 %v2166, 0.0
        %v2300 = vmax.f32 %v2296, 0.0
        %v2303 = vrot.slane %v2299, 1
        %v2304 = vrot.slane %v2300, 1
        %v2307 = vrot.slane %v2299, 2
        %v2308 = vrot.slane %v2300, 2
        %v2311 = vrot.slane %v2299, 3
        %v2312 = vrot.slane %v2300, 3
        %v2315 = vrot.slane %v2299, 4
        %v2316 = vrot.slane %v2300, 4
        %v2319 = vpack.c.bf16 %v2299, %v2299
        %v2320 = vpack.c.bf16 %v2300, %v2300
        %v2321 = vpack.c.bf16 %v2303, %v2303
        %v2322 = vpack.c.bf16 %v2304, %v2304
        %v2323 = vpack.c.bf16 %v2307, %v2307
        %v2324 = vpack.c.bf16 %v2308, %v2308
        %v2325 = vpack.c.bf16 %v2311, %v2311
        %v2326 = vpack.c.bf16 %v2312, %v2312
        %v2327 = vpack.c.bf16 %v2315, %v2315
        %v2328 = vpack.c.bf16 %v2316, %v2316
        %v2329 = vld [vmem:[%s5] sm:$0xf]
        %v2330 = vld [vmem:[%s5 + $0x4] sm:$0xf]
        %v2331 = vld [vmem:[%s5 + $0x8] sm:$0xf]
        %v2332 = vld [vmem:[%s5 + $0xc] sm:$0xf]
        %v2333 = vld [vmem:[%s5 + $0x10] sm:$0xf]
        %v2334 = vld [vmem:[%s5 + $0x14] sm:$0xf]
        %v2335 = vld [vmem:[%s5 + $0x18] sm:$0xf]
        %v2336 = vld [vmem:[%s5 + $0x1c] sm:$0xf]
        %v2337 = vld [vmem:[%s5 + $0x20] sm:$0xf]
        %v2338 = vld [vmem:[%s5 + $0x24] sm:$0xf]
        %v2339 = vld [vmem:[%s5 + $0x28] sm:$0xf]
        %v2340 = vld [vmem:[%s5 + $0x2c] sm:$0xf]
        %v2341 = vld [vmem:[%s5 + $0x30] sm:$0xf]
        %v2342 = vld [vmem:[%s5 + $0x34] sm:$0xf]
        %v2343 = vld [vmem:[%s5 + $0x38] sm:$0xf]
        %v2344 = vld [vmem:[%s5 + $0x3c] sm:$0xf]
        %v2345 = vld [vmem:[%s5 + $0x40] sm:$0xf]
        %v2346 = vld [vmem:[%s5 + $0x44] sm:$0xf]
        %v2347 = vld [vmem:[%s5 + $0x48] sm:$0xf]
        %v2348 = vld [vmem:[%s5 + $0x4c] sm:$0xf]
        %v2349 = vld [vmem:[%s5 + $0x50] sm:$0xf]
        %v2350 = vld [vmem:[%s5 + $0x54] sm:$0xf]
        %v2351 = vld [vmem:[%s5 + $0x58] sm:$0xf]
        %v2352 = vld [vmem:[%s5 + $0x5c] sm:$0xf]
        %v2353 = vld [vmem:[%s5 + $0x60] sm:$0xf]
        %v2354 = vld [vmem:[%s5 + $0x64] sm:$0xf]
        %v2355 = vld [vmem:[%s5 + $0x68] sm:$0xf]
        %v2356 = vld [vmem:[%s5 + $0x6c] sm:$0xf]
        %v2357 = vld [vmem:[%s5 + $0x70] sm:$0xf]
        %v2358 = vld [vmem:[%s5 + $0x74] sm:$0xf]
        %v2359 = vld [vmem:[%s5 + $0x78] sm:$0xf]
        %v2360 = vld [vmem:[%s5 + $0x7c] sm:$0xf]
        %v2361 = vld [vmem:[%s5 + $0x80] sm:$0xf]
        %v2362 = vld [vmem:[%s5 + $0x84] sm:$0xf]
        %v2363 = vld [vmem:[%s5 + $0x88] sm:$0xf]
        %v2364 = vld [vmem:[%s5 + $0x8c] sm:$0xf]
        %v2365 = vld [vmem:[%s5 + $0x90] sm:$0xf]
        %v2366 = vld [vmem:[%s5 + $0x94] sm:$0xf]
        %v2367 = vld [vmem:[%s5 + $0x98] sm:$0xf]
        %v2368 = vld [vmem:[%s5 + $0x9c] sm:$0xf]
        %v2369 = vld [vmem:[%s5 + $0xa0] sm:$0xf]
        %v2370 = vld [vmem:[%s5 + $0xa4] sm:$0xf]
        %v2371 = vld [vmem:[%s5 + $0xa8] sm:$0xf]
        %v2372 = vld [vmem:[%s5 + $0xac] sm:$0xf]
        %v2373 = vld [vmem:[%s5 + $0xb0] sm:$0xf]
        %v2374 = vld [vmem:[%s5 + $0xb4] sm:$0xf]
        %v2375 = vld [vmem:[%s5 + $0xb8] sm:$0xf]
        %v2376 = vld [vmem:[%s5 + $0xbc] sm:$0xf]
        %v2377 = vld [vmem:[%s5 + $0xc0] sm:$0xf]
        %v2378 = vld [vmem:[%s5 + $0xc4] sm:$0xf]
        %v2379 = vld [vmem:[%s5 + $0xc8] sm:$0xf]
        %v2380 = vld [vmem:[%s5 + $0xcc] sm:$0xf]
        %v2381 = vld [vmem:[%s5 + $0xd0] sm:$0xf]
        %v2382 = vld [vmem:[%s5 + $0xd4] sm:$0xf]
        %v2383 = vld [vmem:[%s5 + $0xd8] sm:$0xf]
        %v2384 = vld [vmem:[%s5 + $0xdc] sm:$0xf]
        %v2385 = vld [vmem:[%s5 + $0xe0] sm:$0xf]
        %v2386 = vld [vmem:[%s5 + $0xe4] sm:$0xf]
        %v2387 = vld [vmem:[%s5 + $0xe8] sm:$0xf]
        %v2388 = vld [vmem:[%s5 + $0xec] sm:$0xf]
        %v2389 = vld [vmem:[%s5 + $0xf0] sm:$0xf]
        %v2390 = vld [vmem:[%s5 + $0xf4] sm:$0xf]
        %v2391 = vld [vmem:[%s5 + $0xf8] sm:$0xf]
        %v2392 = vld [vmem:[%s5 + $0xfc] sm:$0xf]
        %v2393 = vld [vmem:[%s5 + $0x100] sm:$0xf]
        %v2394 = vld [vmem:[%s5 + $0x104] sm:$0xf]
        %v2395 = vld [vmem:[%s5 + $0x108] sm:$0xf]
        %v2396 = vld [vmem:[%s5 + $0x10c] sm:$0xf]
        %v2397 = vld [vmem:[%s5 + $0x110] sm:$0xf]
        %v2398 = vld [vmem:[%s5 + $0x114] sm:$0xf]
        %v2399 = vld [vmem:[%s5 + $0x118] sm:$0xf]
        %v2400 = vld [vmem:[%s5 + $0x11c] sm:$0xf]
        %v2401 = vld [vmem:[%s5 + $0x120] sm:$0xf]
        %v2402 = vld [vmem:[%s5 + $0x124] sm:$0xf]
        %v2403 = vld [vmem:[%s5 + $0x128] sm:$0xf]
        %v2404 = vld [vmem:[%s5 + $0x12c] sm:$0xf]
        %v2405 = vld [vmem:[%s5 + $0x130] sm:$0xf]
        %v2406 = vld [vmem:[%s5 + $0x134] sm:$0xf]
        %v2407 = vld [vmem:[%s5 + $0x138] sm:$0xf]
        %v2408 = vld [vmem:[%s5 + $0x13c] sm:$0xf]
        %v2409 = vld [vmem:[%s5 + $0x140] sm:$0xf]
        %v2410 = vld [vmem:[%s5 + $0x144] sm:$0xf]
        %v2411 = vld [vmem:[%s5 + $0x148] sm:$0xf]
        %v2412 = vld [vmem:[%s5 + $0x14c] sm:$0xf]
        %v2413 = vld [vmem:[%s5 + $0x150] sm:$0xf]
        %v2414 = vld [vmem:[%s5 + $0x154] sm:$0xf]
        %v2415 = vld [vmem:[%s5 + $0x158] sm:$0xf]
        %v2416 = vld [vmem:[%s5 + $0x15c] sm:$0xf]
        %v2417 = vld [vmem:[%s5 + $0x160] sm:$0xf]
        %v2418 = vld [vmem:[%s5 + $0x164] sm:$0xf]
        %v2419 = vld [vmem:[%s5 + $0x168] sm:$0xf]
        %v2420 = vld [vmem:[%s5 + $0x16c] sm:$0xf]
        %v2421 = vld [vmem:[%s5 + $0x170] sm:$0xf]
        %v2422 = vld [vmem:[%s5 + $0x174] sm:$0xf]
        %v2423 = vld [vmem:[%s5 + $0x178] sm:$0xf]
        %v2424 = vld [vmem:[%s5 + $0x17c] sm:$0xf]
        %v2425 = vld [vmem:[%s5 + $0x180] sm:$0xf]
        %v2426 = vld [vmem:[%s5 + $0x184] sm:$0xf]
        %v2427 = vld [vmem:[%s5 + $0x188] sm:$0xf]
        %v2428 = vld [vmem:[%s5 + $0x18c] sm:$0xf]
        %v2429 = vld [vmem:[%s5 + $0x190] sm:$0xf]
        %v2430 = vld [vmem:[%s5 + $0x194] sm:$0xf]
        %v2431 = vld [vmem:[%s5 + $0x198] sm:$0xf]
        %v2432 = vld [vmem:[%s5 + $0x19c] sm:$0xf]
        %v2433 = vld [vmem:[%s5 + $0x1a0] sm:$0xf]
        %v2434 = vld [vmem:[%s5 + $0x1a4] sm:$0xf]
        %v2435 = vld [vmem:[%s5 + $0x1a8] sm:$0xf]
        %v2436 = vld [vmem:[%s5 + $0x1ac] sm:$0xf]
        %v2437 = vld [vmem:[%s5 + $0x1b0] sm:$0xf]
        %v2438 = vld [vmem:[%s5 + $0x1b4] sm:$0xf]
        %v2439 = vld [vmem:[%s5 + $0x1b8] sm:$0xf]
        %v2440 = vld [vmem:[%s5 + $0x1bc] sm:$0xf]
        %v2441 = vld [vmem:[%s5 + $0x1c0] sm:$0xf]
        %v2442 = vld [vmem:[%s5 + $0x1c4] sm:$0xf]
        %v2443 = vld [vmem:[%s5 + $0x1c8] sm:$0xf]
        %v2444 = vld [vmem:[%s5 + $0x1cc] sm:$0xf]
        %v2445 = vld [vmem:[%s5 + $0x1d0] sm:$0xf]
        %v2446 = vld [vmem:[%s5 + $0x1d4] sm:$0xf]
        %v2447 = vld [vmem:[%s5 + $0x1d8] sm:$0xf]
        %v2448 = vld [vmem:[%s5 + $0x1dc] sm:$0xf]
        %v2449 = vld [vmem:[%s5 + $0x1e0] sm:$0xf]
        %v2450 = vld [vmem:[%s5 + $0x1e4] sm:$0xf]
        %v2451 = vld [vmem:[%s5 + $0x1e8] sm:$0xf]
        %v2452 = vld [vmem:[%s5 + $0x1ec] sm:$0xf]
        %v2453 = vld [vmem:[%s5 + $0x1f0] sm:$0xf]
        %v2454 = vld [vmem:[%s5 + $0x1f4] sm:$0xf]
        %v2455 = vld [vmem:[%s5 + $0x1f8] sm:$0xf]
        %v2456 = vld [vmem:[%s5 + $0x1fc] sm:$0xf]
        %v2457 = vld [vmem:[%s5 + $0x200] sm:$0xf]
        %v2458 = vld [vmem:[%s5 + $0x204] sm:$0xf]
        %v2459 = vld [vmem:[%s5 + $0x208] sm:$0xf]
        %v2460 = vld [vmem:[%s5 + $0x20c] sm:$0xf]
        %v2461 = vld [vmem:[%s5 + $0x210] sm:$0xf]
        %v2462 = vld [vmem:[%s5 + $0x214] sm:$0xf]
        %v2463 = vld [vmem:[%s5 + $0x218] sm:$0xf]
        %v2464 = vld [vmem:[%s5 + $0x21c] sm:$0xf]
        %v2465 = vld [vmem:[%s5 + $0x220] sm:$0xf]
        %v2466 = vld [vmem:[%s5 + $0x224] sm:$0xf]
        %v2467 = vld [vmem:[%s5 + $0x228] sm:$0xf]
        %v2468 = vld [vmem:[%s5 + $0x22c] sm:$0xf]
        %v2469 = vld [vmem:[%s5 + $0x230] sm:$0xf]
        %v2470 = vld [vmem:[%s5 + $0x234] sm:$0xf]
        %v2471 = vld [vmem:[%s5 + $0x238] sm:$0xf]
        %v2472 = vld [vmem:[%s5 + $0x23c] sm:$0xf]
        %v2473 = vld [vmem:[%s5 + $0x240] sm:$0xf]
        %v2474 = vld [vmem:[%s5 + $0x244] sm:$0xf]
        %v2475 = vld [vmem:[%s5 + $0x248] sm:$0xf]
        %v2476 = vld [vmem:[%s5 + $0x24c] sm:$0xf]
        %v2477 = vld [vmem:[%s5 + $0x250] sm:$0xf]
        %v2478 = vld [vmem:[%s5 + $0x254] sm:$0xf]
        %v2479 = vld [vmem:[%s5 + $0x258] sm:$0xf]
        %v2480 = vld [vmem:[%s5 + $0x25c] sm:$0xf]
        %v2481 = vld [vmem:[%s5 + $0x260] sm:$0xf]
        %v2482 = vld [vmem:[%s5 + $0x264] sm:$0xf]
        %v2483 = vld [vmem:[%s5 + $0x268] sm:$0xf]
        %v2484 = vld [vmem:[%s5 + $0x26c] sm:$0xf]
        %v2485 = vld [vmem:[%s5 + $0x270] sm:$0xf]
        %v2486 = vld [vmem:[%s5 + $0x274] sm:$0xf]
        %v2487 = vld [vmem:[%s5 + $0x278] sm:$0xf]
        %v2488 = vld [vmem:[%s5 + $0x27c] sm:$0xf]
        %v2489 = vld [vmem:[%s6] sm:$0x1]
        %v2650 = vunpack.c.l.b16 %v2329
        %v2651 = vunpack.c.l.b16 %v2330
        %v2652 = vunpack.c.l.b16 %v2331
        %v2653 = vunpack.c.l.b16 %v2332
        %v2654 = vunpack.c.l.b16 %v2333
        %v2655 = vunpack.c.l.b16 %v2334
        %v2656 = vunpack.c.l.b16 %v2335
        %v2657 = vunpack.c.l.b16 %v2336
        %v2658 = vunpack.c.l.b16 %v2337
        %v2659 = vunpack.c.l.b16 %v2338
        %v2660 = vunpack.c.l.b16 %v2339
        %v2661 = vunpack.c.l.b16 %v2340
        %v2662 = vunpack.c.l.b16 %v2341
        %v2663 = vunpack.c.l.b16 %v2342
        %v2664 = vunpack.c.l.b16 %v2343
        %v2665 = vunpack.c.l.b16 %v2344
        %v2666 = vunpack.c.l.b16 %v2345
        %v2667 = vunpack.c.l.b16 %v2346
        %v2668 = vunpack.c.l.b16 %v2347
        %v2669 = vunpack.c.l.b16 %v2348
        %v2670 = vunpack.c.l.b16 %v2349
        %v2671 = vunpack.c.l.b16 %v2350
        %v2672 = vunpack.c.l.b16 %v2351
        %v2673 = vunpack.c.l.b16 %v2352
        %v2674 = vunpack.c.l.b16 %v2353
        %v2675 = vunpack.c.l.b16 %v2354
        %v2676 = vunpack.c.l.b16 %v2355
        %v2677 = vunpack.c.l.b16 %v2356
        %v2678 = vunpack.c.l.b16 %v2357
        %v2679 = vunpack.c.l.b16 %v2358
        %v2680 = vunpack.c.l.b16 %v2359
        %v2681 = vunpack.c.l.b16 %v2360
        %v2682 = vunpack.c.l.b16 %v2361
        %v2683 = vunpack.c.l.b16 %v2362
        %v2684 = vunpack.c.l.b16 %v2363
        %v2685 = vunpack.c.l.b16 %v2364
        %v2686 = vunpack.c.l.b16 %v2365
        %v2687 = vunpack.c.l.b16 %v2366
        %v2688 = vunpack.c.l.b16 %v2367
        %v2689 = vunpack.c.l.b16 %v2368
        %v2690 = vunpack.c.l.b16 %v2369
        %v2691 = vunpack.c.l.b16 %v2370
        %v2692 = vunpack.c.l.b16 %v2371
        %v2693 = vunpack.c.l.b16 %v2372
        %v2694 = vunpack.c.l.b16 %v2373
        %v2695 = vunpack.c.l.b16 %v2374
        %v2696 = vunpack.c.l.b16 %v2375
        %v2697 = vunpack.c.l.b16 %v2376
        %v2698 = vunpack.c.l.b16 %v2377
        %v2699 = vunpack.c.l.b16 %v2378
        %v2700 = vunpack.c.l.b16 %v2379
        %v2701 = vunpack.c.l.b16 %v2380
        %v2702 = vunpack.c.l.b16 %v2381
        %v2703 = vunpack.c.l.b16 %v2382
        %v2704 = vunpack.c.l.b16 %v2383
        %v2705 = vunpack.c.l.b16 %v2384
        %v2706 = vunpack.c.l.b16 %v2385
        %v2707 = vunpack.c.l.b16 %v2386
        %v2708 = vunpack.c.l.b16 %v2387
        %v2709 = vunpack.c.l.b16 %v2388
        %v2710 = vunpack.c.l.b16 %v2389
        %v2711 = vunpack.c.l.b16 %v2390
        %v2712 = vunpack.c.l.b16 %v2391
        %v2713 = vunpack.c.l.b16 %v2392
        %v2714 = vunpack.c.l.b16 %v2393
        %v2715 = vunpack.c.l.b16 %v2394
        %v2716 = vunpack.c.l.b16 %v2395
        %v2717 = vunpack.c.l.b16 %v2396
        %v2718 = vunpack.c.l.b16 %v2397
        %v2719 = vunpack.c.l.b16 %v2398
        %v2720 = vunpack.c.l.b16 %v2399
        %v2721 = vunpack.c.l.b16 %v2400
        %v2722 = vunpack.c.l.b16 %v2401
        %v2723 = vunpack.c.l.b16 %v2402
        %v2724 = vunpack.c.l.b16 %v2403
        %v2725 = vunpack.c.l.b16 %v2404
        %v2726 = vunpack.c.l.b16 %v2405
        %v2727 = vunpack.c.l.b16 %v2406
        %v2728 = vunpack.c.l.b16 %v2407
        %v2729 = vunpack.c.l.b16 %v2408
        %v2730 = vunpack.c.l.b16 %v2409
        %v2731 = vunpack.c.l.b16 %v2410
        %v2732 = vunpack.c.l.b16 %v2411
        %v2733 = vunpack.c.l.b16 %v2412
        %v2734 = vunpack.c.l.b16 %v2413
        %v2735 = vunpack.c.l.b16 %v2414
        %v2736 = vunpack.c.l.b16 %v2415
        %v2737 = vunpack.c.l.b16 %v2416
        %v2738 = vunpack.c.l.b16 %v2417
        %v2739 = vunpack.c.l.b16 %v2418
        %v2740 = vunpack.c.l.b16 %v2419
        %v2741 = vunpack.c.l.b16 %v2420
        %v2742 = vunpack.c.l.b16 %v2421
        %v2743 = vunpack.c.l.b16 %v2422
        %v2744 = vunpack.c.l.b16 %v2423
        %v2745 = vunpack.c.l.b16 %v2424
        %v2746 = vunpack.c.l.b16 %v2425
        %v2747 = vunpack.c.l.b16 %v2426
        %v2748 = vunpack.c.l.b16 %v2427
        %v2749 = vunpack.c.l.b16 %v2428
        %v2750 = vunpack.c.l.b16 %v2429
        %v2751 = vunpack.c.l.b16 %v2430
        %v2752 = vunpack.c.l.b16 %v2431
        %v2753 = vunpack.c.l.b16 %v2432
        %v2754 = vunpack.c.l.b16 %v2433
        %v2755 = vunpack.c.l.b16 %v2434
        %v2756 = vunpack.c.l.b16 %v2435
        %v2757 = vunpack.c.l.b16 %v2436
        %v2758 = vunpack.c.l.b16 %v2437
        %v2759 = vunpack.c.l.b16 %v2438
        %v2760 = vunpack.c.l.b16 %v2439
        %v2761 = vunpack.c.l.b16 %v2440
        %v2762 = vunpack.c.l.b16 %v2441
        %v2763 = vunpack.c.l.b16 %v2442
        %v2764 = vunpack.c.l.b16 %v2443
        %v2765 = vunpack.c.l.b16 %v2444
        %v2766 = vunpack.c.l.b16 %v2445
        %v2767 = vunpack.c.l.b16 %v2446
        %v2768 = vunpack.c.l.b16 %v2447
        %v2769 = vunpack.c.l.b16 %v2448
        %v2770 = vunpack.c.l.b16 %v2449
        %v2771 = vunpack.c.l.b16 %v2450
        %v2772 = vunpack.c.l.b16 %v2451
        %v2773 = vunpack.c.l.b16 %v2452
        %v2774 = vunpack.c.l.b16 %v2453
        %v2775 = vunpack.c.l.b16 %v2454
        %v2776 = vunpack.c.l.b16 %v2455
        %v2777 = vunpack.c.l.b16 %v2456
        %v2778 = vunpack.c.l.b16 %v2457
        %v2779 = vunpack.c.l.b16 %v2458
        %v2780 = vunpack.c.l.b16 %v2459
        %v2781 = vunpack.c.l.b16 %v2460
        %v2782 = vunpack.c.l.b16 %v2461
        %v2783 = vunpack.c.l.b16 %v2462
        %v2784 = vunpack.c.l.b16 %v2463
        %v2785 = vunpack.c.l.b16 %v2464
        %v2786 = vunpack.c.l.b16 %v2465
        %v2787 = vunpack.c.l.b16 %v2466
        %v2788 = vunpack.c.l.b16 %v2467
        %v2789 = vunpack.c.l.b16 %v2468
        %v2790 = vunpack.c.l.b16 %v2469
        %v2791 = vunpack.c.l.b16 %v2470
        %v2792 = vunpack.c.l.b16 %v2471
        %v2793 = vunpack.c.l.b16 %v2472
        %v2794 = vunpack.c.l.b16 %v2473
        %v2795 = vunpack.c.l.b16 %v2474
        %v2796 = vunpack.c.l.b16 %v2475
        %v2797 = vunpack.c.l.b16 %v2476
        %v2798 = vunpack.c.l.b16 %v2477
        %v2799 = vunpack.c.l.b16 %v2478
        %v2800 = vunpack.c.l.b16 %v2479
        %v2801 = vunpack.c.l.b16 %v2480
        %v2802 = vunpack.c.l.b16 %v2481
        %v2803 = vunpack.c.l.b16 %v2482
        %v2804 = vunpack.c.l.b16 %v2483
        %v2805 = vunpack.c.l.b16 %v2484
        %v2806 = vunpack.c.l.b16 %v2485
        %v2807 = vunpack.c.l.b16 %v2486
        %v2808 = vunpack.c.l.b16 %v2487
        %v2809 = vunpack.c.l.b16 %v2488
        %v2810 = vpack.c.b16 %v2651, %v2650
        %v2811 = vpack.c.b16 %v2653, %v2652
        %v2812 = vpack.c.b16 %v2655, %v2654
        %v2813 = vpack.c.b16 %v2657, %v2656
        %v2814 = vpack.c.b16 %v2659, %v2658
        %v2815 = vpack.c.b16 %v2661, %v2660
        %v2816 = vpack.c.b16 %v2663, %v2662
        %v2817 = vpack.c.b16 %v2665, %v2664
        %v2818 = vpack.c.b16 %v2667, %v2666
        %v2819 = vpack.c.b16 %v2669, %v2668
        %v2820 = vpack.c.b16 %v2671, %v2670
        %v2821 = vpack.c.b16 %v2673, %v2672
        %v2822 = vpack.c.b16 %v2675, %v2674
        %v2823 = vpack.c.b16 %v2677, %v2676
        %v2824 = vpack.c.b16 %v2679, %v2678
        %v2825 = vpack.c.b16 %v2681, %v2680
        %v2826 = vpack.c.b16 %v2683, %v2682
        %v2827 = vpack.c.b16 %v2685, %v2684
        %v2828 = vpack.c.b16 %v2687, %v2686
        %v2829 = vpack.c.b16 %v2689, %v2688
        %v2830 = vpack.c.b16 %v2691, %v2690
        %v2831 = vpack.c.b16 %v2693, %v2692
        %v2832 = vpack.c.b16 %v2695, %v2694
        %v2833 = vpack.c.b16 %v2697, %v2696
        %v2834 = vpack.c.b16 %v2699, %v2698
        %v2835 = vpack.c.b16 %v2701, %v2700
        %v2836 = vpack.c.b16 %v2703, %v2702
        %v2837 = vpack.c.b16 %v2705, %v2704
        %v2838 = vpack.c.b16 %v2707, %v2706
        %v2839 = vpack.c.b16 %v2709, %v2708
        %v2840 = vpack.c.b16 %v2711, %v2710
        %v2841 = vpack.c.b16 %v2713, %v2712
        %v2842 = vpack.c.b16 %v2715, %v2714
        %v2843 = vpack.c.b16 %v2717, %v2716
        %v2844 = vpack.c.b16 %v2719, %v2718
        %v2845 = vpack.c.b16 %v2721, %v2720
        %v2846 = vpack.c.b16 %v2723, %v2722
        %v2847 = vpack.c.b16 %v2725, %v2724
        %v2848 = vpack.c.b16 %v2727, %v2726
        %v2849 = vpack.c.b16 %v2729, %v2728
        %v2850 = vpack.c.b16 %v2731, %v2730
        %v2851 = vpack.c.b16 %v2733, %v2732
        %v2852 = vpack.c.b16 %v2735, %v2734
        %v2853 = vpack.c.b16 %v2737, %v2736
        %v2854 = vpack.c.b16 %v2739, %v2738
        %v2855 = vpack.c.b16 %v2741, %v2740
        %v2856 = vpack.c.b16 %v2743, %v2742
        %v2857 = vpack.c.b16 %v2745, %v2744
        %v2858 = vpack.c.b16 %v2747, %v2746
        %v2859 = vpack.c.b16 %v2749, %v2748
        %v2860 = vpack.c.b16 %v2751, %v2750
        %v2861 = vpack.c.b16 %v2753, %v2752
        %v2862 = vpack.c.b16 %v2755, %v2754
        %v2863 = vpack.c.b16 %v2757, %v2756
        %v2864 = vpack.c.b16 %v2759, %v2758
        %v2865 = vpack.c.b16 %v2761, %v2760
        %v2866 = vpack.c.b16 %v2763, %v2762
        %v2867 = vpack.c.b16 %v2765, %v2764
        %v2868 = vpack.c.b16 %v2767, %v2766
        %v2869 = vpack.c.b16 %v2769, %v2768
        %v2870 = vpack.c.b16 %v2771, %v2770
        %v2871 = vpack.c.b16 %v2773, %v2772
        %v2872 = vpack.c.b16 %v2775, %v2774
        %v2873 = vpack.c.b16 %v2777, %v2776
        %v2874 = vpack.c.b16 %v2779, %v2778
        %v2875 = vpack.c.b16 %v2781, %v2780
        %v2876 = vpack.c.b16 %v2783, %v2782
        %v2877 = vpack.c.b16 %v2785, %v2784
        %v2878 = vpack.c.b16 %v2787, %v2786
        %v2879 = vpack.c.b16 %v2789, %v2788
        %v2880 = vpack.c.b16 %v2791, %v2790
        %v2881 = vpack.c.b16 %v2793, %v2792
        %v2882 = vpack.c.b16 %v2795, %v2794
        %v2883 = vpack.c.b16 %v2797, %v2796
        %v2884 = vpack.c.b16 %v2799, %v2798
        %v2885 = vpack.c.b16 %v2801, %v2800
        %v2886 = vpack.c.b16 %v2803, %v2802
        %v2887 = vpack.c.b16 %v2805, %v2804
        %v2888 = vpack.c.b16 %v2807, %v2806
        %v2889 = vpack.c.b16 %v2809, %v2808
        %2970 = vmatpush.bf16.msra.mxu0 %v2817
        %2971 = vmatpush.bf16.msra.mxu0 %v2816
        %2972 = vmatpush.bf16.msra.mxu0 %v2815
        %2973 = vmatpush.bf16.msra.mxu0 %v2814
        %2974 = vmatpush.bf16.msra.mxu0 %v2813
        %2975 = vmatpush.bf16.msra.mxu0 %v2812
        %2976 = vmatpush.bf16.msra.mxu0 %v2811
        %2977 = vmatpush.bf16.msra.mxu0 %v2810
        %2978 = vmatmul.bf16.gmra.mxu0 %v2319
        %v2979 = vpop.f32.mrf.mxu0
        %v2980 = vadd.f32 %v2489, %v2979
        %v2981 = vpop.f32.mrf.mxu0
        %2982 = vdwg.mxu0
        %2983 = vmatpush.bf16.msra.mxu0 %v2825
        %2984 = vmatpush.bf16.msra.mxu0 %v2824
        %2985 = vmatpush.bf16.msra.mxu0 %v2823
        %2986 = vmatpush.bf16.msra.mxu0 %v2822
        %2987 = vmatpush.bf16.msra.mxu0 %v2821
        %2988 = vmatpush.bf16.msra.mxu0 %v2820
        %2989 = vmatpush.bf16.msra.mxu0 %v2819
        %2990 = vmatpush.bf16.msra.mxu0 %v2818
        %2991 = vmatmul.bf16.gmra.mxu0 %v2320
        %v2992 = vpop.f32.mrf.mxu0
        %v2993 = vadd.f32 %v2980, %v2992
        %v2994 = vpop.f32.mrf.mxu0
        %2995 = vdwg.mxu0
        %2996 = vmatpush.bf16.msra.mxu0 %v2833
        %2997 = vmatpush.bf16.msra.mxu0 %v2832
        %2998 = vmatpush.bf16.msra.mxu0 %v2831
        %2999 = vmatpush.bf16.msra.mxu0 %v2830
        %3000 = vmatpush.bf16.msra.mxu0 %v2829
        %3001 = vmatpush.bf16.msra.mxu0 %v2828
        %3002 = vmatpush.bf16.msra.mxu0 %v2827
        %3003 = vmatpush.bf16.msra.mxu0 %v2826
        %3004 = vmatmul.bf16.gmra.mxu0 %v2321
        %v3005 = vpop.f32.mrf.mxu0
        %v3006 = vadd.f32 %v2993, %v3005
        %v3007 = vpop.f32.mrf.mxu0
        %3008 = vdwg.mxu0
        %3009 = vmatpush.bf16.msra.mxu0 %v2841
        %3010 = vmatpush.bf16.msra.mxu0 %v2840
        %3011 = vmatpush.bf16.msra.mxu0 %v2839
        %3012 = vmatpush.bf16.msra.mxu0 %v2838
        %3013 = vmatpush.bf16.msra.mxu0 %v2837
        %3014 = vmatpush.bf16.msra.mxu0 %v2836
        %3015 = vmatpush.bf16.msra.mxu0 %v2835
        %3016 = vmatpush.bf16.msra.mxu0 %v2834
        %3017 = vmatmul.bf16.gmra.mxu0 %v2322
        %v3018 = vpop.f32.mrf.mxu0
        %v3019 = vadd.f32 %v3006, %v3018
        %v3020 = vpop.f32.mrf.mxu0
        %3021 = vdwg.mxu0
        %3022 = vmatpush.bf16.msra.mxu0 %v2849
        %3023 = vmatpush.bf16.msra.mxu0 %v2848
        %3024 = vmatpush.bf16.msra.mxu0 %v2847
        %3025 = vmatpush.bf16.msra.mxu0 %v2846
        %3026 = vmatpush.bf16.msra.mxu0 %v2845
        %3027 = vmatpush.bf16.msra.mxu0 %v2844
        %3028 = vmatpush.bf16.msra.mxu0 %v2843
        %3029 = vmatpush.bf16.msra.mxu0 %v2842
        %3030 = vmatmul.bf16.gmra.mxu0 %v2323
        %v3031 = vpop.f32.mrf.mxu0
        %v3032 = vadd.f32 %v3019, %v3031
        %v3033 = vpop.f32.mrf.mxu0
        %3034 = vdwg.mxu0
        %3035 = vmatpush.bf16.msra.mxu0 %v2857
        %3036 = vmatpush.bf16.msra.mxu0 %v2856
        %3037 = vmatpush.bf16.msra.mxu0 %v2855
        %3038 = vmatpush.bf16.msra.mxu0 %v2854
        %3039 = vmatpush.bf16.msra.mxu0 %v2853
        %3040 = vmatpush.bf16.msra.mxu0 %v2852
        %3041 = vmatpush.bf16.msra.mxu0 %v2851
        %3042 = vmatpush.bf16.msra.mxu0 %v2850
        %3043 = vmatmul.bf16.gmra.mxu0 %v2324
        %v3044 = vpop.f32.mrf.mxu0
        %v3045 = vadd.f32 %v3032, %v3044
        %v3046 = vpop.f32.mrf.mxu0
        %3047 = vdwg.mxu0
        %3048 = vmatpush.bf16.msra.mxu0 %v2865
        %3049 = vmatpush.bf16.msra.mxu0 %v2864
        %3050 = vmatpush.bf16.msra.mxu0 %v2863
        %3051 = vmatpush.bf16.msra.mxu0 %v2862
        %3052 = vmatpush.bf16.msra.mxu0 %v2861
        %3053 = vmatpush.bf16.msra.mxu0 %v2860
        %3054 = vmatpush.bf16.msra.mxu0 %v2859
        %3055 = vmatpush.bf16.msra.mxu0 %v2858
        %3056 = vmatmul.bf16.gmra.mxu0 %v2325
        %v3057 = vpop.f32.mrf.mxu0
        %v3058 = vadd.f32 %v3045, %v3057
        %v3059 = vpop.f32.mrf.mxu0
        %3060 = vdwg.mxu0
        %3061 = vmatpush.bf16.msra.mxu0 %v2873
        %3062 = vmatpush.bf16.msra.mxu0 %v2872
        %3063 = vmatpush.bf16.msra.mxu0 %v2871
        %3064 = vmatpush.bf16.msra.mxu0 %v2870
        %3065 = vmatpush.bf16.msra.mxu0 %v2869
        %3066 = vmatpush.bf16.msra.mxu0 %v2868
        %3067 = vmatpush.bf16.msra.mxu0 %v2867
        %3068 = vmatpush.bf16.msra.mxu0 %v2866
        %3069 = vmatmul.bf16.gmra.mxu0 %v2326
        %v3070 = vpop.f32.mrf.mxu0
        %v3071 = vadd.f32 %v3058, %v3070
        %v3072 = vpop.f32.mrf.mxu0
        %3073 = vdwg.mxu0
        %3074 = vmatpush.bf16.msra.mxu0 %v2881
        %3075 = vmatpush.bf16.msra.mxu0 %v2880
        %3076 = vmatpush.bf16.msra.mxu0 %v2879
        %3077 = vmatpush.bf16.msra.mxu0 %v2878
        %3078 = vmatpush.bf16.msra.mxu0 %v2877
        %3079 = vmatpush.bf16.msra.mxu0 %v2876
        %3080 = vmatpush.bf16.msra.mxu0 %v2875
        %3081 = vmatpush.bf16.msra.mxu0 %v2874
        %3082 = vmatmul.bf16.gmra.mxu0 %v2327
        %v3083 = vpop.f32.mrf.mxu0
        %v3084 = vadd.f32 %v3071, %v3083
        %v3085 = vpop.f32.mrf.mxu0
        %3086 = vdwg.mxu0
        %3087 = vmatpush.bf16.msra.mxu0 %v2889
        %3088 = vmatpush.bf16.msra.mxu0 %v2888
        %3089 = vmatpush.bf16.msra.mxu0 %v2887
        %3090 = vmatpush.bf16.msra.mxu0 %v2886
        %3091 = vmatpush.bf16.msra.mxu0 %v2885
        %3092 = vmatpush.bf16.msra.mxu0 %v2884
        %3093 = vmatpush.bf16.msra.mxu0 %v2883
        %3094 = vmatpush.bf16.msra.mxu0 %v2882
        %3095 = vmatmul.bf16.gmra.mxu0 %v2328
        %v3096 = vpop.f32.mrf.mxu0
        %v3097 = vadd.f32 %v3084, %v3096
        %v3098 = vpop.f32.mrf.mxu0
        %3099 = vdwg.mxu0
        %v3100 = vmax.f32 %v3097, 0.0
        %v3101 = vpack.c.bf16 %v3100, %v3100
        %v3102 = vld [vmem:[%s7] sm:$0xff]
        %v3103 = vld [vmem:[%s7 + $0x8] sm:$0xff]
        %v3104 = vld [vmem:[%s7 + $0x10] sm:$0xf]
        %v3105 = vld [vmem:[%s7 + $0x14] sm:$0xff]
        %v3106 = vld [vmem:[%s7 + $0x1c] sm:$0xff]
        %v3107 = vld [vmem:[%s7 + $0x24] sm:$0xf]
        %v3108 = vld [vmem:[%s7 + $0x28] sm:$0xff]
        %v3109 = vld [vmem:[%s7 + $0x30] sm:$0xff]
        %v3110 = vld [vmem:[%s7 + $0x38] sm:$0xf]
        %v3111 = vld [vmem:[%s7 + $0x3c] sm:$0xff]
        %v3112 = vld [vmem:[%s7 + $0x44] sm:$0xff]
        %v3113 = vld [vmem:[%s7 + $0x4c] sm:$0xf]
        %v3114 = vld [vmem:[%s8] sm:$0x1f]
        %v3127 = vunpack.c.l.b16 %v3102
        %v3128 = vunpack.c.h.b16 %v3102
        %v3129 = vunpack.c.l.b16 %v3103
        %v3130 = vunpack.c.h.b16 %v3103
        %v3131 = vunpack.c.l.b16 %v3104
        %v3132 = vunpack.c.l.b16 %v3105
        %v3133 = vunpack.c.h.b16 %v3105
        %v3134 = vunpack.c.l.b16 %v3106
        %v3135 = vunpack.c.h.b16 %v3106
        %v3136 = vunpack.c.l.b16 %v3107
        %v3137 = vunpack.c.l.b16 %v3108
        %v3138 = vunpack.c.h.b16 %v3108
        %v3139 = vunpack.c.l.b16 %v3109
        %v3140 = vunpack.c.h.b16 %v3109
        %v3141 = vunpack.c.l.b16 %v3110
        %v3142 = vunpack.c.l.b16 %v3111
        %v3143 = vunpack.c.h.b16 %v3111
        %v3144 = vunpack.c.l.b16 %v3112
        %v3145 = vunpack.c.h.b16 %v3112
        %v3146 = vunpack.c.l.b16 %v3113
        %v3147 = vpack.c.b16 %v3132, %v3127
        %v3148 = vpack.c.b16 %v3133, %v3128
        %v3149 = vpack.c.b16 %v3134, %v3129
        %v3150 = vpack.c.b16 %v3135, %v3130
        %v3151 = vpack.c.b16 %v3136, %v3131
        %v3152 = vpack.c.b16 %v3142, %v3137
        %v3153 = vpack.c.b16 %v3143, %v3138
        %v3154 = vpack.c.b16 %v3144, %v3139
        %v3155 = vpack.c.b16 %v3145, %v3140
        %v3156 = vpack.c.b16 %v3146, %v3141
        %v3168 = vperm.slane %v3114, 0
        %v3169 = vperm.slane %v3114, 1
        %v3170 = vperm.slane %v3114, 2
        %v3171 = vperm.slane %v3114, 3
        %v3172 = vperm.slane %v3114, 4
        %vm3178 = vcmask 261120
        %v3180 = vsel %vm3178, %v3101, 0
        %3182 = vmatpush.bf16.msra.mxu0 0
        %3183 = vmatpush.bf16.msra.mxu0 0
        %3184 = vmatpush.bf16.msra.mxu0 0
        %3185 = vmatpush.bf16.msra.mxu0 0
        %3186 = vmatpush.bf16.msra.mxu0 0
        %3187 = vmatpush.bf16.msra.mxu0 0
        %3188 = vmatpush.bf16.msra.mxu0 %v3152
        %3189 = vmatpush.bf16.msra.mxu0 %v3147
        %3190 = vmatmul.bf16.gmra.mxu0 %v3180
        %v3191 = vpop.f32.mrf.mxu0
        %v3192 = vadd.f32 %v3168, %v3191
        %v3193 = vpop.f32.mrf.mxu0
        %3194 = vdwg.mxu0
        %3195 = vmatpush.bf16.msra.mxu0 0
        %3196 = vmatpush.bf16.msra.mxu0 0
        %3197 = vmatpush.bf16.msra.mxu0 0
        %3198 = vmatpush.bf16.msra.mxu0 0
        %3199 = vmatpush.bf16.msra.mxu0 0
        %3200 = vmatpush.bf16.msra.mxu0 0
        %3201 = vmatpush.bf16.msra.mxu0 %v3153
        %3202 = vmatpush.bf16.msra.mxu0 %v3148
        %3203 = vmatmul.bf16.gmra.mxu0 %v3180
        %v3204 = vpop.f32.mrf.mxu0
        %v3205 = vadd.f32 %v3169, %v3204
        %v3206 = vpop.f32.mrf.mxu0
        %3207 = vdwg.mxu0
        %3208 = vmatpush.bf16.msra.mxu0 0
        %3209 = vmatpush.bf16.msra.mxu0 0
        %3210 = vmatpush.bf16.msra.mxu0 0
        %3211 = vmatpush.bf16.msra.mxu0 0
        %3212 = vmatpush.bf16.msra.mxu0 0
        %3213 = vmatpush.bf16.msra.mxu0 0
        %3214 = vmatpush.bf16.msra.mxu0 %v3154
        %3215 = vmatpush.bf16.msra.mxu0 %v3149
        %3216 = vmatmul.bf16.gmra.mxu0 %v3180
        %v3217 = vpop.f32.mrf.mxu0
        %v3218 = vadd.f32 %v3170, %v3217
        %v3219 = vpop.f32.mrf.mxu0
        %3220 = vdwg.mxu0
        %3221 = vmatpush.bf16.msra.mxu0 0
        %3222 = vmatpush.bf16.msra.mxu0 0
        %3223 = vmatpush.bf16.msra.mxu0 0
        %3224 = vmatpush.bf16.msra.mxu0 0
        %3225 = vmatpush.bf16.msra.mxu0 0
        %3226 = vmatpush.bf16.msra.mxu0 0
        %3227 = vmatpush.bf16.msra.mxu0 %v3155
        %3228 = vmatpush.bf16.msra.mxu0 %v3150
        %3229 = vmatmul.bf16.gmra.mxu0 %v3180
        %v3230 = vpop.f32.mrf.mxu0
        %v3231 = vadd.f32 %v3171, %v3230
        %v3232 = vpop.f32.mrf.mxu0
        %3233 = vdwg.mxu0
        %3234 = vmatpush.bf16.msra.mxu0 0
        %3235 = vmatpush.bf16.msra.mxu0 0
        %3236 = vmatpush.bf16.msra.mxu0 0
        %3237 = vmatpush.bf16.msra.mxu0 0
        %3238 = vmatpush.bf16.msra.mxu0 0
        %3239 = vmatpush.bf16.msra.mxu0 0
        %3240 = vmatpush.bf16.msra.mxu0 %v3156
        %3241 = vmatpush.bf16.msra.mxu0 %v3151
        %3242 = vmatmul.bf16.gmra.mxu0 %v3180
        %v3243 = vpop.f32.mrf.mxu0
        %v3244 = vadd.f32 %v3172, %v3243
        %v3245 = vpop.f32.mrf.mxu0
        %3246 = vdwg.mxu0
        %v3247 = vmax.f32 %v3192, 0.0
        %v3248 = vmax.f32 %v3205, 0.0
        %v3249 = vmax.f32 %v3218, 0.0
        %v3250 = vmax.f32 %v3231, 0.0
        %v3251 = vmax.f32 %v3244, 0.0
        %v3253 = vrot.slane %v3248, 7
        %v3256 = vrot.slane %v3249, 6
        %v3259 = vrot.slane %v3250, 5
        %v3262 = vrot.slane %v3251, 4
        %vm3264 = vcmask 1040384
        %v3265 = vsel %vm3264, %v3247, %v3253
        %vm3266 = vcmask 1041408
        %v3267 = vsel %vm3266, %v3265, %v3256
        %vm3268 = vcmask 1042432
        %v3269 = vsel %vm3268, %v3267, %v3259
        %vm3270 = vcmask 1043456
        %v3271 = vsel %vm3270, %v3269, %v3262
        %v3272 = vpack.c.bf16 %v3271, %v3271
        %v3273 = vld [vmem:[%s9] sm:$0xff]
        %v3274 = vld [vmem:[%s9 + $0x8] sm:$0xff]
        %v3275 = vld [vmem:[%s9 + $0x10] sm:$0xf]
        %v3276 = vld [vmem:[%s9 + $0x14] sm:$0xff]
        %v3277 = vld [vmem:[%s9 + $0x1c] sm:$0xff]
        %v3278 = vld [vmem:[%s9 + $0x24] sm:$0xf]
        %v3279 = vld [vmem:[%s9 + $0x28] sm:$0xff]
        %v3280 = vld [vmem:[%s9 + $0x30] sm:$0xff]
        %v3281 = vld [vmem:[%s9 + $0x38] sm:$0xf]
        %v3282 = vld [vmem:[%s9 + $0x3c] sm:$0xff]
        %v3283 = vld [vmem:[%s9 + $0x44] sm:$0xff]
        %v3284 = vld [vmem:[%s9 + $0x4c] sm:$0xf]
        %v3285 = vld [vmem:[%s9 + $0x50] sm:$0xff]
        %v3286 = vld [vmem:[%s9 + $0x58] sm:$0xff]
        %v3287 = vld [vmem:[%s9 + $0x60] sm:$0xf]
        %v3288 = vld [vmem:[%s9 + $0x64] sm:$0xff]
        %v3289 = vld [vmem:[%s9 + $0x6c] sm:$0xff]
        %v3290 = vld [vmem:[%s9 + $0x74] sm:$0xf]
        %v3291 = vld [vmem:[%s9 + $0x78] sm:$0xff]
        %v3292 = vld [vmem:[%s9 + $0x80] sm:$0xff]
        %v3293 = vld [vmem:[%s9 + $0x88] sm:$0xf]
        %v3294 = vld [vmem:[%s9 + $0x8c] sm:$0xff]
        %v3295 = vld [vmem:[%s9 + $0x94] sm:$0xff]
        %v3296 = vld [vmem:[%s9 + $0x9c] sm:$0xf]
        %v3297 = vld [vmem:[%s9 + $0xa0] sm:$0xff]
        %v3298 = vld [vmem:[%s9 + $0xa8] sm:$0xff]
        %v3299 = vld [vmem:[%s9 + $0xb0] sm:$0xf]
        %v3300 = vld [vmem:[%s9 + $0xb4] sm:$0xff]
        %v3301 = vld [vmem:[%s9 + $0xbc] sm:$0xff]
        %v3302 = vld [vmem:[%s9 + $0xc4] sm:$0xf]
        %v3303 = vld [vmem:[%s9 + $0xc8] sm:$0xff]
        %v3304 = vld [vmem:[%s9 + $0xd0] sm:$0xff]
        %v3305 = vld [vmem:[%s9 + $0xd8] sm:$0xf]
        %v3306 = vld [vmem:[%s9 + $0xdc] sm:$0xff]
        %v3307 = vld [vmem:[%s9 + $0xe4] sm:$0xff]
        %v3308 = vld [vmem:[%s9 + $0xec] sm:$0xf]
        %v3309 = vld [vmem:[%s9 + $0xf0] sm:$0xff]
        %v3310 = vld [vmem:[%s9 + $0xf8] sm:$0xff]
        %v3311 = vld [vmem:[%s9 + $0x100] sm:$0xf]
        %v3312 = vld [vmem:[%s9 + $0x104] sm:$0xff]
        %v3313 = vld [vmem:[%s9 + $0x10c] sm:$0xff]
        %v3314 = vld [vmem:[%s9 + $0x114] sm:$0xf]
        %v3315 = vld [vmem:[%s9 + $0x118] sm:$0xff]
        %v3316 = vld [vmem:[%s9 + $0x120] sm:$0xff]
        %v3317 = vld [vmem:[%s9 + $0x128] sm:$0xf]
        %v3318 = vld [vmem:[%s9 + $0x12c] sm:$0xff]
        %v3319 = vld [vmem:[%s9 + $0x134] sm:$0xff]
        %v3320 = vld [vmem:[%s9 + $0x13c] sm:$0xf]
        %v3369 = vunpack.c.l.b16 %v3273
        %v3370 = vunpack.c.h.b16 %v3273
        %v3371 = vunpack.c.l.b16 %v3274
        %v3372 = vunpack.c.h.b16 %v3274
        %v3373 = vunpack.c.l.b16 %v3275
        %v3374 = vunpack.c.l.b16 %v3276
        %v3375 = vunpack.c.h.b16 %v3276
        %v3376 = vunpack.c.l.b16 %v3277
        %v3377 = vunpack.c.h.b16 %v3277
        %v3378 = vunpack.c.l.b16 %v3278
        %v3379 = vunpack.c.l.b16 %v3279
        %v3380 = vunpack.c.h.b16 %v3279
        %v3381 = vunpack.c.l.b16 %v3280
        %v3382 = vunpack.c.h.b16 %v3280
        %v3383 = vunpack.c.l.b16 %v3281
        %v3384 = vunpack.c.l.b16 %v3282
        %v3385 = vunpack.c.h.b16 %v3282
        %v3386 = vunpack.c.l.b16 %v3283
        %v3387 = vunpack.c.h.b16 %v3283
        %v3388 = vunpack.c.l.b16 %v3284
        %v3389 = vunpack.c.l.b16 %v3285
        %v3390 = vunpack.c.h.b16 %v3285
        %v3391 = vunpack.c.l.b16 %v3286
        %v3392 = vunpack.c.h.b16 %v3286
        %v3393 = vunpack.c.l.b16 %v3287
        %v3394 = vunpack.c.l.b16 %v3288
        %v3395 = vunpack.c.h.b16 %v3288
        %v3396 = vunpack.c.l.b16 %v3289
        %v3397 = vunpack.c.h.b16 %v3289
        %v3398 = vunpack.c.l.b16 %v3290
        %v3399 = vunpack.c.l.b16 %v3291
        %v3400 = vunpack.c.h.b16 %v3291
        %v3401 = vunpack.c.l.b16 %v3292
        %v3402 = vunpack.c.h.b16 %v3292
        %v3403 = vunpack.c.l.b16 %v3293
        %v3404 = vunpack.c.l.b16 %v3294
        %v3405 = vunpack.c.h.b16 %v3294
        %v3406 = vunpack.c.l.b16 %v3295
        %v3407 = vunpack.c.h.b16 %v3295
        %v3408 = vunpack.c.l.b16 %v3296
        %v3409 = vunpack.c.l.b16 %v3297
        %v3410 = vunpack.c.h.b16 %v3297
        %v3411 = vunpack.c.l.b16 %v3298
        %v3412 = vunpack.c.h.b16 %v3298
        %v3413 = vunpack.c.l.b16 %v3299
        %v3414 = vunpack.c.l.b16 %v3300
        %v3415 = vunpack.c.h.b16 %v3300
        %v3416 = vunpack.c.l.b16 %v3301
        %v3417 = vunpack.c.h.b16 %v3301
        %v3418 = vunpack.c.l.b16 %v3302
        %v3419 = vunpack.c.l.b16 %v3303
        %v3420 = vunpack.c.h.b16 %v3303
        %v3421 = vunpack.c.l.b16 %v3304
        %v3422 = vunpack.c.h.b16 %v3304
        %v3423 = vunpack.c.l.b16 %v3305
        %v3424 = vunpack.c.l.b16 %v3306
        %v3425 = vunpack.c.h.b16 %v3306
        %v3426 = vunpack.c.l.b16 %v3307
        %v3427 = vunpack.c.h.b16 %v3307
        %v3428 = vunpack.c.l.b16 %v3308
        %v3429 = vunpack.c.l.b16 %v3309
        %v3430 = vunpack.c.h.b16 %v3309
        %v3431 = vunpack.c.l.b16 %v3310
        %v3432 = vunpack.c.h.b16 %v3310
        %v3433 = vunpack.c.l.b16 %v3311
        %v3434 = vunpack.c.l.b16 %v3312
        %v3435 = vunpack.c.h.b16 %v3312
        %v3436 = vunpack.c.l.b16 %v3313
        %v3437 = vunpack.c.h.b16 %v3313
        %v3438 = vunpack.c.l.b16 %v3314
        %v3439 = vunpack.c.l.b16 %v3315
        %v3440 = vunpack.c.h.b16 %v3315
        %v3441 = vunpack.c.l.b16 %v3316
        %v3442 = vunpack.c.h.b16 %v3316
        %v3443 = vunpack.c.l.b16 %v3317
        %v3444 = vunpack.c.l.b16 %v3318
        %v3445 = vunpack.c.h.b16 %v3318
        %v3446 = vunpack.c.l.b16 %v3319
        %v3447 = vunpack.c.h.b16 %v3319
        %v3448 = vunpack.c.l.b16 %v3320
        %v3449 = vpack.c.b16 %v3374, %v3369
        %v3450 = vpack.c.b16 %v3375, %v3370
        %v3451 = vpack.c.b16 %v3376, %v3371
        %v3452 = vpack.c.b16 %v3377, %v3372
        %v3453 = vpack.c.b16 %v3378, %v3373
        %v3454 = vpack.c.b16 %v3384, %v3379
        %v3455 = vpack.c.b16 %v3385, %v3380
        %v3456 = vpack.c.b16 %v3386, %v3381
        %v3457 = vpack.c.b16 %v3387, %v3382
        %v3458 = vpack.c.b16 %v3388, %v3383
        %v3459 = vpack.c.b16 %v3394, %v3389
        %v3460 = vpack.c.b16 %v3395, %v3390
        %v3461 = vpack.c.b16 %v3396, %v3391
        %v3462 = vpack.c.b16 %v3397, %v3392
        %v3463 = vpack.c.b16 %v3398, %v3393
        %v3464 = vpack.c.b16 %v3404, %v3399
        %v3465 = vpack.c.b16 %v3405, %v3400
        %v3466 = vpack.c.b16 %v3406, %v3401
        %v3467 = vpack.c.b16 %v3407, %v3402
        %v3468 = vpack.c.b16 %v3408, %v3403
        %v3469 = vpack.c.b16 %v3414, %v3409
        %v3470 = vpack.c.b16 %v3415, %v3410
        %v3471 = vpack.c.b16 %v3416, %v3411
        %v3472 = vpack.c.b16 %v3417, %v3412
        %v3473 = vpack.c.b16 %v3418, %v3413
        %v3474 = vpack.c.b16 %v3424, %v3419
        %v3475 = vpack.c.b16 %v3425, %v3420
        %v3476 = vpack.c.b16 %v3426, %v3421
        %v3477 = vpack.c.b16 %v3427, %v3422
        %v3478 = vpack.c.b16 %v3428, %v3423
        %v3479 = vpack.c.b16 %v3434, %v3429
        %v3480 = vpack.c.b16 %v3435, %v3430
        %v3481 = vpack.c.b16 %v3436, %v3431
        %v3482 = vpack.c.b16 %v3437, %v3432
        %v3483 = vpack.c.b16 %v3438, %v3433
        %v3484 = vpack.c.b16 %v3444, %v3439
        %v3485 = vpack.c.b16 %v3445, %v3440
        %v3486 = vpack.c.b16 %v3446, %v3441
        %v3487 = vpack.c.b16 %v3447, %v3442
        %v3488 = vpack.c.b16 %v3448, %v3443
        %3529 = vmatpush.bf16.msra.mxu0 %v3484
        %3530 = vmatpush.bf16.msra.mxu0 %v3479
        %3531 = vmatpush.bf16.msra.mxu0 %v3474
        %3532 = vmatpush.bf16.msra.mxu0 %v3469
        %3533 = vmatpush.bf16.msra.mxu0 %v3464
        %3534 = vmatpush.bf16.msra.mxu0 %v3459
        %3535 = vmatpush.bf16.msra.mxu0 %v3454
        %3536 = vmatpush.bf16.msra.mxu0 %v3449
        %3537 = vmatmul.bf16.gmra.mxu0 %v3272
        %v3538 = vpop.f32.mrf.mxu0
        %v3539 = vadd.f32 0.0, %v3538
        %v3540 = vpop.f32.mrf.mxu0
        %3541 = vdwg.mxu0
        %3542 = vmatpush.bf16.msra.mxu0 %v3485
        %3543 = vmatpush.bf16.msra.mxu0 %v3480
        %3544 = vmatpush.bf16.msra.mxu0 %v3475
        %3545 = vmatpush.bf16.msra.mxu0 %v3470
        %3546 = vmatpush.bf16.msra.mxu0 %v3465
        %3547 = vmatpush.bf16.msra.mxu0 %v3460
        %3548 = vmatpush.bf16.msra.mxu0 %v3455
        %3549 = vmatpush.bf16.msra.mxu0 %v3450
        %3550 = vmatmul.bf16.gmra.mxu0 %v3272
        %v3551 = vpop.f32.mrf.mxu0
        %v3552 = vadd.f32 0.0, %v3551
        %v3553 = vpop.f32.mrf.mxu0
        %3554 = vdwg.mxu0
        %3555 = vmatpush.bf16.msra.mxu0 %v3486
        %3556 = vmatpush.bf16.msra.mxu0 %v3481
        %3557 = vmatpush.bf16.msra.mxu0 %v3476
        %3558 = vmatpush.bf16.msra.mxu0 %v3471
        %3559 = vmatpush.bf16.msra.mxu0 %v3466
        %3560 = vmatpush.bf16.msra.mxu0 %v3461
        %3561 = vmatpush.bf16.msra.mxu0 %v3456
        %3562 = vmatpush.bf16.msra.mxu0 %v3451
        %3563 = vmatmul.bf16.gmra.mxu0 %v3272
        %v3564 = vpop.f32.mrf.mxu0
        %v3565 = vadd.f32 0.0, %v3564
        %v3566 = vpop.f32.mrf.mxu0
        %3567 = vdwg.mxu0
        %3568 = vmatpush.bf16.msra.mxu0 %v3487
        %3569 = vmatpush.bf16.msra.mxu0 %v3482
        %3570 = vmatpush.bf16.msra.mxu0 %v3477
        %3571 = vmatpush.bf16.msra.mxu0 %v3472
        %3572 = vmatpush.bf16.msra.mxu0 %v3467
        %3573 = vmatpush.bf16.msra.mxu0 %v3462
        %3574 = vmatpush.bf16.msra.mxu0 %v3457
        %3575 = vmatpush.bf16.msra.mxu0 %v3452
        %3576 = vmatmul.bf16.gmra.mxu0 %v3272
        %v3577 = vpop.f32.mrf.mxu0
        %v3578 = vadd.f32 0.0, %v3577
        %v3579 = vpop.f32.mrf.mxu0
        %3580 = vdwg.mxu0
        %3581 = vmatpush.bf16.msra.mxu0 %v3488
        %3582 = vmatpush.bf16.msra.mxu0 %v3483
        %3583 = vmatpush.bf16.msra.mxu0 %v3478
        %3584 = vmatpush.bf16.msra.mxu0 %v3473
        %3585 = vmatpush.bf16.msra.mxu0 %v3468
        %3586 = vmatpush.bf16.msra.mxu0 %v3463
        %3587 = vmatpush.bf16.msra.mxu0 %v3458
        %3588 = vmatpush.bf16.msra.mxu0 %v3453
        %3589 = vmatmul.bf16.gmra.mxu0 %v3272
        %v3590 = vpop.f32.mrf.mxu0
        %v3591 = vadd.f32 0.0, %v3590
        %v3592 = vpop.f32.mrf.mxu0
        %3593 = vdwg.mxu0
        %v3595 = vrot.slane %v3565, 7
        %v3597 = vadd.f32 %v3539, %v3595
        %v3599 = vrot.slane %v3578, 7
        %v3601 = vadd.f32 %v3552, %v3599
        %v3603 = vrot.slane %v3591, 6
        %v3605 = vadd.f32 %v3597, %v3603
        %v3606 = vrot.slane %v3591, 7
        %v3608 = vadd.f32 %v3565, %v3606
        %v3610 = vrot.slane %v3552, 7
        %v3613 = vrot.slane %v3597, 7
        %v3616 = vrot.slane %v3601, 6
        %v3619 = vrot.slane %v3605, 6
        %v3621 = vrot.slane %v3601, 5
        %v3623 = vrot.slane %v3605, 5
        %v3625 = vrot.slane %v3601, 4
        %v3627 = vrot.slane %v3605, 4
        %v3629 = vrot.slane %v3601, 3
        %v3632 = vrot.slane %v3608, 2
        %v3634 = vrot.slane %v3578, 1
        %v3636 = vsel %vm3264, %v3539, %v3610
        %v3637 = vsel %vm3266, %v3636, %v3613
        %v3638 = vsel %vm3268, %v3637, %v3616
        %v3639 = vsel %vm3270, %v3638, %v3619
        %vm3640 = vcmask 1044480
        %v3641 = vsel %vm3640, %v3639, %v3621
        %vm3642 = vcmask 1045504
        %v3643 = vsel %vm3642, %v3641, %v3623
        %vm3644 = vcmask 1046528
        %v3645 = vsel %vm3644, %v3643, %v3625
        %v3646 = vsel %vm3264, %v3627, %v3629
        %v3647 = vsel %vm3266, %v3646, %v3632
        %v3648 = vsel %vm3268, %v3647, %v3634
        %v3649 = vsel %vm3270, %v3648, %v3591
        %v3650 = vsel %vm3640, %v3649, 0.0
        %v3651 = vld [vmem:[%s10] sm:$0x1]
        %v3653 = vperm.slane %v3651, 0
        %v3655 = vadd.f32 %v3645, %v3653
        %v3656 = vadd.f32 %v3650, %v3653
        %3657 = vst [vmem:[%s403] sm:$0xff] %v3655
        %3658 = vst [vmem:[%s403 + $0x8] sm:$0xff] %v3656
        %p3659 = scmp.lt.s32.totalorder %s23, 1
        %s3660 = scalar_select %p3659, %s23, 1
        %s3661 = smul.addr %s3660, 2
        %s3662 = smul.addr %s3661, 8
        %s3663 = scalar_lea.vmem %s11, %s3662
        // Predicated region
        $region69: #{autoencoder_forward.1} parent=63 // pred_check
          %p3664 = pneg %p277
        $region70: #{autoencoder_forward.1} parent=63 // pred_check_branch
          %3666 = sbr.rel (%p3664) target = $region72
        $region71: #{autoencoder_forward.1} parent=63 // pred_region
          _
        $region72: #{autoencoder_forward.1} parent=63 // pred_fallthru
          _
      $region64: #{autoencoder_forward.1} parent=5 // pred_fallthru
        _
      %p3667 = scmp.le.s32.totalorder 2, %s18
      // Predicated region
      $region73: #{autoencoder_forward.1} parent=5 // pred_check
        %p3668 = pneg %p3667
      $region74: #{autoencoder_forward.1} parent=5 // pred_check_branch
        %3670 = sbr.rel (%p3668) target = $region76
      $region75: #{autoencoder_forward.1} parent=5 // pred_region
        %s3671 = ssub.s32 %s18, 2
        // Predicated region
        $region77: #{autoencoder_forward.1} parent=75 // pred_check
          %p3672 = pneg %p283
        $region78: #{autoencoder_forward.1} parent=75 // pred_check_branch
          %3674 = sbr.rel (%p3672) target = $region80
        $region79: #{autoencoder_forward.1} parent=75 // pred_region
          %p3675 = scmp.lt.s32.totalorder %s24, 1
          %s3676 = scalar_select %p3675, %s24, 1
          %s3677 = smul.addr %s3676, 2
          %s3678 = smul.addr %s3677, 8
          %s3679 = scalar_lea.vmem %s11, %s3678
        $region80: #{autoencoder_forward.1} parent=75 // pred_fallthru
          _
      $region76: #{autoencoder_forward.1} parent=5 // pred_fallthru
        _
    $region6: #{autoencoder_forward.1} parent=1 // loop_footer
      %s22 = sadd.s32 1, %s18
    $region7: #{autoencoder_forward.1} parent=1 // loop_footer_branch
      %17 = sbr.rel target = $region3
    $region8: #{autoencoder_forward.1} parent=1 // loop_exit
      _
    %3680 = vsyncpa [#allocation3], 1
    %s3681 = scalar_lea.sflag [#allocation3], 1
    %3682 = vsyncpa %s3681, 1

</llo_original>
